<compile_context>
chip_gen: v7x
topology: tpu7x:2x2x1
jax: 0.10.0
libtpu: 0.0.40
codegen_flags: <defaults>
</compile_context>

<pallas_src>
import jax
import jax.numpy as jnp
from jax.experimental import pallas as pl
from jax.experimental.pallas import tpu as pltpu

N, DV, DE = 8, 6, 6          # nodes, vertex-attr dim, edge-attr dim
HE, HV, HO = 64, 32, 32      # hidden sizes of the three DoubleLayerMLPs
LANES = 128                  # slab lane width (one full vreg lane extent)


def _r8(r):                  # round rows up to a sublane (8) boundary
    return (r + 7) & ~7


# ----------------------------- parameter slab (built ONCE) -----------------------------
_PARAM_LAYOUT = [
    ("bsr",   2 * N * N, N),   # [128, 8] constant broadcast matrix: rows 0:64 pick sender i=k//N,
    #                            rows 64:128 pick receiver j=k%N  (h_add via MXU, no repeat/tile)
    ("w1e_s", DV, HE),         # edge-MLP-1, sender-column block
    ("w1e_r", DV, HE),         # edge-MLP-1, receiver-column block
    ("w1e_e", DE, HE),         # edge-MLP-1, edge-attr block
    ("b1e",   1, HE),
    ("w2e",   HE, DE),
    ("b2e",   1, DE),
    ("w1v_v", DV, HV),         # node-MLP-1, node-feature block
    ("w1v_m", DE, HV),         # node-MLP-1, message block
    ("b1v",   1, HV),
    ("w2v",   HV, DV),
    ("b2v",   1, DV),
    ("w1o",   DV, HO),
    ("b1o",   1, HO),
    ("w2o",   HO, 1),
    ("b2o",   1, 1),
]


def _layout(entries):
    offs, shapes, cur = {}, {}, 0
    for name, r, c in entries:
        offs[name], shapes[name] = cur, (r, c)
        cur += _r8(r)
    return offs, shapes, cur


P_OFF, P_SHAPE, P_ROWS = _layout(_PARAM_LAYOUT)   # 352 rows x 128 lanes (~176 KiB, VMEM-resident)

# ----------------------------- data slab (built per call) ------------------------------
# rows 0:8   : lanes 0:6 = V, lane 6 = deg (in-degree per node), lanes 64:128 = S_A scatter matrix
# rows 8:72  : lanes 0:6 = flattened edge attrs Ef (row k = edge i=k//N -> j=k%N)
D_ROWS = 8 + N * N            # 72


def pack_params(params):
    """Pack all shared MLP weights + the constant broadcast matrix into one [P_ROWS, 128] slab.
    Called ONCE (weights are static / shared across l1-l3); keeps slab packing off the hot path."""
    (w1e, b1e, w2e, b2e, w1v, b1v, w2v, b2v, w1o, b1o, w2o, b2o) = params
    idx = jnp.arange(N * N)
    b_s = (idx[:, None] // N == jnp.arange(N)[None, :]).astype(jnp.float32)   # [64, 8]
    b_r = (idx[:, None] % N == jnp.arange(N)[None, :]).astype(jnp.float32)    # [64, 8]
    tensors = {
        "bsr": jnp.concatenate([b_s, b_r], axis=0),
        "w1e_s": w1e[:DV], "w1e_r": w1e[DV:2 * DV], "w1e_e": w1e[2 * DV:],
        "b1e": b1e, "w2e": w2e, "b2e": b2e,
        "w1v_v": w1v[:DV], "w1v_m": w1v[DV:], "b1v": b1v,
        "w2v": w2v, "b2v": b2v,
        "w1o": w1o, "b1o": b1o, "w2o": w2o, "b2o": b2o,
    }
    bands = []
    for name, r, c in _PARAM_LAYOUT:
        t = tensors[name].astype(jnp.float32)
        bands.append(jnp.pad(t, ((0, _r8(r) - r), (0, LANES - c))))
    return jnp.concatenate(bands, axis=0)


# ----------------------------------- kernel --------------------------------------------
def _mpnn3_kernel(d_ref, p_ref, out_ref):
    # ---- unpack per-graph data slab (static slices; block leading dim is the batch slot) ----
    V0  = d_ref[0, 0:N, 0:DV]                    # [8, 6]
    deg = d_ref[0, 0:N, DV:DV + 1]               # [8, 1]  in-degree per node
    S_A = d_ref[0, 0:N, 64:128]                  # [8, 64] S_A[j, i*N + j] = A[i, j]
    Ef  = d_ref[0, N:N + N * N, 0:DE]            # [64, 6]

    # ---- unpack parameter slab ----
    def par(name):
        off = P_OFF[name]
        r, c = P_SHAPE[name]
        return p_ref[off:off + r, 0:c]

    Bsr   = par("bsr")                           # [128, 8]
    W1e_s, W1e_r, W1e_e = par("w1e_s"), par("w1e_r"), par("w1e_e")
    b1e, W2e, b2e = par("b1e"), par("w2e"), par("b2e")
    W1v_v, W1v_m, b1v = par("w1v_v"), par("w1v_m"), par("b1v")
    W2v, b2v = par("w2v"), par("b2v")
    W1o, b1o, W2o, b2o = par("w1o"), par("b1o"), par("w2o"), par("b2o")

    # Layer-invariant terms (E, A and the bias fold are identical in all 3 shared layers).
    te_b  = jnp.dot(Ef, W1e_e, preferred_element_type=jnp.float32) + b1e     # [64, 64]
    degb2 = deg * b2e                                                        # [8, 6]

    def mpnn_layer(Vc):
        # Sender / receiver broadcast on the MXU: vsr[k] = Vc[k//N] (rows 0:64), Vc[k%N] (rows 64:128).
        vsr = jnp.dot(Bsr, Vc, preferred_element_type=jnp.float32)           # [128, 6]
        vs, vr = vsr[0:N * N], vsr[N * N:2 * N * N]                          # sublane-aligned splits
        h1 = te_b \
            + jnp.dot(vs, W1e_s, preferred_element_type=jnp.float32) \
            + jnp.dot(vr, W1e_r, preferred_element_type=jnp.float32)         # [64, 64]
        h1 = jnp.maximum(h1, 0.0)
        # Reassociated masked aggregation: m = (S_A @ relu(h1)) @ W2e + deg * b2e
        sm = jnp.dot(S_A, h1, preferred_element_type=jnp.float32)            # [8, 64] lane-dense
        m  = jnp.dot(sm, W2e, preferred_element_type=jnp.float32) + degb2    # [8, 6]
        # Node MLP with W1v split into node / message blocks (no lane concat).
        h2 = jnp.maximum(
            jnp.dot(Vc, W1v_v, preferred_element_type=jnp.float32)
            + jnp.dot(m, W1v_m, preferred_element_type=jnp.float32) + b1v, 0.0)   # [8, 32]
        return jnp.dot(h2, W2v, preferred_element_type=jnp.float32) + b2v    # [8, 6]

    V3 = mpnn_layer(mpnn_layer(mpnn_layer(V0)))          # l1, l2, l3 (shared weights)

    # Global readout of l3 + sigmoid.
    agg = jnp.sum(V3, axis=0, keepdims=True)                                 # [1, 6]
    h3 = jnp.maximum(jnp.dot(agg, W1o, preferred_element_type=jnp.float32) + b1o, 0.0)
    u = jnp.dot(h3, W2o, preferred_element_type=jnp.float32) + b2o           # [1, 1]
    # Lane-dense, (8,128)-aligned output block (unmasked store); wrapper slices [0, 0].
    out_ref[0, :, :] = jnp.broadcast_to(jax.nn.sigmoid(u), (8, LANES))


# --------------------------------- wrappers ---------------------------------------------
@jax.jit
def multi_mpnn_moa_batched(Vb, Eb, Ab, p_slab):
    """Vb: [B, N, DV], Eb: [B, N, N, DE], Ab: [B, N, N]; p_slab from pack_params(). Returns [B, 1]."""
    B = Vb.shape[0]

    # --- per-call XLA-side glue: pads + two concats (no .at[].set chain) ---
    Ef = Eb.reshape(B, N * N, DE).astype(jnp.float32)
    At = jnp.swapaxes(Ab, 1, 2).astype(jnp.float32)                          # [B, j, i]
    S_A = (jnp.eye(N, dtype=jnp.float32)[None, :, None, :]
           * At[:, :, :, None]).reshape(B, N, N * N)                         # [B, 8, 64]
    deg = jnp.sum(Ab.astype(jnp.float32), axis=1)[..., None]                 # [B, 8, 1]
    band0 = jnp.concatenate(
        [Vb.astype(jnp.float32), deg,
         jnp.zeros((B, N, 64 - DV - 1), jnp.float32), S_A], axis=-1)         # [B, 8, 128]
    band1 = jnp.pad(Ef, ((0, 0), (0, 0), (0, LANES - DE)))                   # [B, 64, 128]
    d_slab = jnp.concatenate([band0, band1], axis=1)                         # [B, 72, 128]

    cost = pl.CostEstimate(
        flops=650_000 * B,
        transcendentals=2 * B,
        bytes_accessed=P_ROWS * LANES * 4 + B * (D_ROWS + 8) * LANES * 4,
    )

    out = pl.pallas_call(
        _mpnn3_kernel,
        out_shape=jax.ShapeDtypeStruct((B, 8, LANES), jnp.float32),
        grid=(B,),
        in_specs=[
            pl.BlockSpec((1, D_ROWS, LANES), lambda b: (b, 0, 0)),   # per-graph data block
            pl.BlockSpec((P_ROWS, LANES), lambda b: (0, 0)),         # weight slab stays resident
        ],
        out_specs=pl.BlockSpec((1, 8, LANES), lambda b: (b, 0, 0)),
        compiler_params=pltpu.CompilerParams(dimension_semantics=("parallel",)),
        cost_estimate=cost,
    )(d_slab, p_slab)
    return out[:, 0, 0:1]                                                    # [B, 1]


def multi_mpnn_moa(V, E, A, p_slab):
    """Single-graph path matching the PyTorch module's forward. Returns [1, 1]."""
    return multi_mpnn_moa_batched(V[None], E[None], A[None], p_slab)


# --------------------------- reference + init (for testing) -----------------------------
def init_double_layer_mlp(key, din, dh, dout):
    k1, k2, k3, k4 = jax.random.split(key, 4)
    s1, s2 = 1.0 / jnp.sqrt(din), 1.0 / jnp.sqrt(dh)
    w1 = jax.random.normal(k1, (din, dh), jnp.float32) * s1
    b1 = jax.random.normal(k2, (1, dh), jnp.float32) * 0.01
    w2 = jax.random.normal(k3, (dh, dout), jnp.float32) * s2
    b2 = jax.random.normal(k4, (1, dout), jnp.float32) * 0.01
    return w1, b1, w2, b2


def ref_forward(V, E, A, params):
    (w1e, b1e, w2e, b2e, w1v, b1v, w2v, b2v, w1o, b1o, w2o, b2o) = params
    Ef = E.reshape(N * N, DE)
    te = Ef @ w1e[2 * DV:]

    def layer(Vc):
        ts, tr = Vc @ w1e[:DV], Vc @ w1e[DV:2 * DV]
        h1 = jnp.maximum(te.reshape(N, N, HE) + ts[:, None, :] + tr[None, :, :] + b1e[None], 0.0)
        en = h1.reshape(N * N, HE) @ w2e + b2e
        m = jnp.sum(A[:, :, None] * en.reshape(N, N, DE), axis=0)
        h2 = jnp.maximum(Vc @ w1v[:DV] + m @ w1v[DV:] + b1v, 0.0)
        return h2 @ w2v + b2v

    Vc = layer(layer(layer(V)))
    agg = jnp.sum(Vc, axis=0, keepdims=True)
    h3 = jnp.maximum(agg @ w1o + b1o, 0.0)
    return jax.nn.sigmoid(h3 @ w2o + b2o)


if __name__ == "__main__":
    root = jax.random.PRNGKey(0)
    k_v, k_e, k_a, k_mlp_e, k_mlp_v, k_mlp_o = jax.random.split(root, 6)

    Bsz = 4
    Vb = jax.random.normal(k_v, (Bsz, N, DV), jnp.float32)
    Eb = jax.random.normal(k_e, (Bsz, N, N, DE), jnp.float32)
    Ab = jax.random.bernoulli(k_a, 0.4, (Bsz, N, N)).astype(jnp.float32)

    # Shared weights across l1/l2/l3 (same nn.Module objects in the PyTorch code).
    params = (init_double_layer_mlp(k_mlp_e, 2 * DV + DE, HE, DE)
              + init_double_layer_mlp(k_mlp_v, DV + DE, HV, DV)
              + init_double_layer_mlp(k_mlp_o, DV, HO, 1))

    p_slab = jax.block_until_ready(pack_params(params))      # packed ONCE, off the hot path

    out = jax.block_until_ready(multi_mpnn_moa_batched(Vb, Eb, Ab, p_slab))      # [4, 1]
    out0 = jax.block_until_ready(multi_mpnn_moa(Vb[0], Eb[0], Ab[0], p_slab))    # [1, 1]

    expected = jnp.stack([ref_forward(Vb[b], Eb[b], Ab[b], params)[0] for b in range(Bsz)])
    assert out.shape == (Bsz, 1) and bool(jnp.all(jnp.isfinite(out)))
    assert jnp.allclose(out, expected, rtol=1e-4, atol=1e-5), (out, expected)
    assert out0.shape == (1, 1) and jnp.allclose(out0, expected[0:1], rtol=1e-4, atol=1e-5)
    print("KERNEL_OK")
</pallas_src>

<mosaic_0001>
module attributes {stable_mosaic.version = 11 : i64} {
  func.func @_mpnn3_kernel(%arg0: i32, %arg1: memref<1x72x128xf32, #tpu.memory_space<vmem>>, %arg2: memref<352x128xf32, #tpu.memory_space<vmem>>, %arg3: memref<1x8x128xf32, #tpu.memory_space<vmem>>) attributes {dimension_semantics = [#tpu.dimension_semantics<parallel>], iteration_bounds = array<i64: 4>, scalar_prefetch = 0 : i64, scratch_operands = 0 : i64, tpu.core_type = #tpu.core_type<tc>, window_params = [{transform_indices = @transform_0, window_bounds = array<i64: 1, 72, 128>}, {pipeline_mode = #tpu.pipeline_mode<synchronous>, transform_indices = @transform_1, window_bounds = array<i64: 352, 128>}, {transform_indices = @transform_2, window_bounds = array<i64: 1, 8, 128>}]} {
    %c0 = arith.constant 0 : index
    %c0_0 = arith.constant 0 : index
    %c0_1 = arith.constant 0 : index
    %0 = vector.load %arg1[%c0, %c0_0, %c0_1] : memref<1x72x128xf32, #tpu.memory_space<vmem>>, vector<1x8x6xf32>
    %1 = vector.shape_cast %0 : vector<1x8x6xf32> to vector<8x6xf32>
    %c0_2 = arith.constant 0 : index
    %c0_3 = arith.constant 0 : index
    %c6 = arith.constant 6 : index
    %2 = vector.load %arg1[%c0_2, %c0_3, %c6] : memref<1x72x128xf32, #tpu.memory_space<vmem>>, vector<1x8x1xf32>
    %3 = vector.shape_cast %2 : vector<1x8x1xf32> to vector<8x1xf32>
    %c0_4 = arith.constant 0 : index
    %c0_5 = arith.constant 0 : index
    %c64 = arith.constant 64 : index
    %4 = vector.load %arg1[%c0_4, %c0_5, %c64] : memref<1x72x128xf32, #tpu.memory_space<vmem>>, vector<1x8x64xf32>
    %5 = vector.shape_cast %4 : vector<1x8x64xf32> to vector<8x64xf32>
    %c0_6 = arith.constant 0 : index
    %c8 = arith.constant 8 : index
    %c0_7 = arith.constant 0 : index
    %6 = vector.load %arg1[%c0_6, %c8, %c0_7] : memref<1x72x128xf32, #tpu.memory_space<vmem>>, vector<1x64x6xf32>
    %7 = vector.shape_cast %6 : vector<1x64x6xf32> to vector<64x6xf32>
    %c0_8 = arith.constant 0 : index
    %c0_9 = arith.constant 0 : index
    %8 = vector.load %arg2[%c0_8, %c0_9] : memref<352x128xf32, #tpu.memory_space<vmem>>, vector<128x8xf32>
    %c128 = arith.constant 128 : index
    %c0_10 = arith.constant 0 : index
    %9 = vector.load %arg2[%c128, %c0_10] : memref<352x128xf32, #tpu.memory_space<vmem>>, vector<6x64xf32>
    %c136 = arith.constant 136 : index
    %c0_11 = arith.constant 0 : index
    %10 = vector.load %arg2[%c136, %c0_11] : memref<352x128xf32, #tpu.memory_space<vmem>>, vector<6x64xf32>
    %c144 = arith.constant 144 : index
    %c0_12 = arith.constant 0 : index
    %11 = vector.load %arg2[%c144, %c0_12] : memref<352x128xf32, #tpu.memory_space<vmem>>, vector<6x64xf32>
    %c152 = arith.constant 152 : index
    %c0_13 = arith.constant 0 : index
    %12 = vector.load %arg2[%c152, %c0_13] : memref<352x128xf32, #tpu.memory_space<vmem>>, vector<1x64xf32>
    %c160 = arith.constant 160 : index
    %c0_14 = arith.constant 0 : index
    %13 = vector.load %arg2[%c160, %c0_14] : memref<352x128xf32, #tpu.memory_space<vmem>>, vector<64x6xf32>
    %c224 = arith.constant 224 : index
    %c0_15 = arith.constant 0 : index
    %14 = vector.load %arg2[%c224, %c0_15] : memref<352x128xf32, #tpu.memory_space<vmem>>, vector<1x6xf32>
    %c232 = arith.constant 232 : index
    %c0_16 = arith.constant 0 : index
    %15 = vector.load %arg2[%c232, %c0_16] : memref<352x128xf32, #tpu.memory_space<vmem>>, vector<6x32xf32>
    %c240 = arith.constant 240 : index
    %c0_17 = arith.constant 0 : index
    %16 = vector.load %arg2[%c240, %c0_17] : memref<352x128xf32, #tpu.memory_space<vmem>>, vector<6x32xf32>
    %c248 = arith.constant 248 : index
    %c0_18 = arith.constant 0 : index
    %17 = vector.load %arg2[%c248, %c0_18] : memref<352x128xf32, #tpu.memory_space<vmem>>, vector<1x32xf32>
    %c256 = arith.constant 256 : index
    %c0_19 = arith.constant 0 : index
    %18 = vector.load %arg2[%c256, %c0_19] : memref<352x128xf32, #tpu.memory_space<vmem>>, vector<32x6xf32>
    %c288 = arith.constant 288 : index
    %c0_20 = arith.constant 0 : index
    %19 = vector.load %arg2[%c288, %c0_20] : memref<352x128xf32, #tpu.memory_space<vmem>>, vector<1x6xf32>
    %c296 = arith.constant 296 : index
    %c0_21 = arith.constant 0 : index
    %20 = vector.load %arg2[%c296, %c0_21] : memref<352x128xf32, #tpu.memory_space<vmem>>, vector<6x32xf32>
    %c304 = arith.constant 304 : index
    %c0_22 = arith.constant 0 : index
    %21 = vector.load %arg2[%c304, %c0_22] : memref<352x128xf32, #tpu.memory_space<vmem>>, vector<1x32xf32>
    %c312 = arith.constant 312 : index
    %c0_23 = arith.constant 0 : index
    %22 = vector.load %arg2[%c312, %c0_23] : memref<352x128xf32, #tpu.memory_space<vmem>>, vector<32x1xf32>
    %c344 = arith.constant 344 : index
    %c0_24 = arith.constant 0 : index
    %23 = vector.load %arg2[%c344, %c0_24] : memref<352x128xf32, #tpu.memory_space<vmem>>, vector<1x1xf32>
    %cst = arith.constant dense<0.000000e+00> : vector<64x64xf32>
    %24 = tpu.matmul %7, %11, %cst {dimension_numbers = #tpu.dot_dimension_numbers<[1], [0], [0], [1], [0, 0, 1, 1], [], []>} : vector<64x6xf32>, vector<6x64xf32>, vector<64x64xf32> -> vector<64x64xf32>
    %25 = vector.broadcast %12 : vector<1x64xf32> to vector<64x64xf32>
    %26 = arith.addf %24, %25 : vector<64x64xf32>
    %27 = vector.broadcast %3 : vector<8x1xf32> to vector<8x6xf32>
    %28 = vector.broadcast %14 : vector<1x6xf32> to vector<8x6xf32>
    %29 = arith.mulf %27, %28 : vector<8x6xf32>
    %cst_25 = arith.constant dense<0.000000e+00> : vector<128x6xf32>
    %30 = tpu.matmul %8, %1, %cst_25 {dimension_numbers = #tpu.dot_dimension_numbers<[1], [0], [0], [1], [0, 0, 1, 1], [], []>} : vector<128x8xf32>, vector<8x6xf32>, vector<128x6xf32> -> vector<128x6xf32>
    %31 = vector.extract_strided_slice %30 {offsets = [0, 0], sizes = [64, 6], strides = [1, 1]} : vector<128x6xf32> to vector<64x6xf32>
    %32 = vector.extract_strided_slice %30 {offsets = [64, 0], sizes = [64, 6], strides = [1, 1]} : vector<128x6xf32> to vector<64x6xf32>
    %cst_26 = arith.constant dense<0.000000e+00> : vector<64x64xf32>
    %33 = tpu.matmul %31, %9, %cst_26 {dimension_numbers = #tpu.dot_dimension_numbers<[1], [0], [0], [1], [0, 0, 1, 1], [], []>} : vector<64x6xf32>, vector<6x64xf32>, vector<64x64xf32> -> vector<64x64xf32>
    %34 = arith.addf %26, %33 : vector<64x64xf32>
    %cst_27 = arith.constant dense<0.000000e+00> : vector<64x64xf32>
    %35 = tpu.matmul %32, %10, %cst_27 {dimension_numbers = #tpu.dot_dimension_numbers<[1], [0], [0], [1], [0, 0, 1, 1], [], []>} : vector<64x6xf32>, vector<6x64xf32>, vector<64x64xf32> -> vector<64x64xf32>
    %36 = arith.addf %34, %35 : vector<64x64xf32>
    %cst_28 = arith.constant 0.000000e+00 : f32
    %37 = vector.broadcast %cst_28 : f32 to vector<64x64xf32>
    %38 = arith.maximumf %36, %37 : vector<64x64xf32>
    %cst_29 = arith.constant dense<0.000000e+00> : vector<8x64xf32>
    %39 = tpu.matmul %5, %38, %cst_29 {dimension_numbers = #tpu.dot_dimension_numbers<[1], [0], [0], [1], [0, 0, 1, 1], [], []>} : vector<8x64xf32>, vector<64x64xf32>, vector<8x64xf32> -> vector<8x64xf32>
    %cst_30 = arith.constant dense<0.000000e+00> : vector<8x6xf32>
    %40 = tpu.matmul %39, %13, %cst_30 {dimension_numbers = #tpu.dot_dimension_numbers<[1], [0], [0], [1], [0, 0, 1, 1], [], []>} : vector<8x64xf32>, vector<64x6xf32>, vector<8x6xf32> -> vector<8x6xf32>
    %41 = arith.addf %40, %29 : vector<8x6xf32>
    %cst_31 = arith.constant dense<0.000000e+00> : vector<8x32xf32>
    %42 = tpu.matmul %1, %15, %cst_31 {dimension_numbers = #tpu.dot_dimension_numbers<[1], [0], [0], [1], [0, 0, 1, 1], [], []>} : vector<8x6xf32>, vector<6x32xf32>, vector<8x32xf32> -> vector<8x32xf32>
    %cst_32 = arith.constant dense<0.000000e+00> : vector<8x32xf32>
    %43 = tpu.matmul %41, %16, %cst_32 {dimension_numbers = #tpu.dot_dimension_numbers<[1], [0], [0], [1], [0, 0, 1, 1], [], []>} : vector<8x6xf32>, vector<6x32xf32>, vector<8x32xf32> -> vector<8x32xf32>
    %44 = arith.addf %42, %43 : vector<8x32xf32>
    %45 = vector.broadcast %17 : vector<1x32xf32> to vector<8x32xf32>
    %46 = arith.addf %44, %45 : vector<8x32xf32>
    %cst_33 = arith.constant 0.000000e+00 : f32
    %47 = vector.broadcast %cst_33 : f32 to vector<8x32xf32>
    %48 = arith.maximumf %46, %47 : vector<8x32xf32>
    %cst_34 = arith.constant dense<0.000000e+00> : vector<8x6xf32>
    %49 = tpu.matmul %48, %18, %cst_34 {dimension_numbers = #tpu.dot_dimension_numbers<[1], [0], [0], [1], [0, 0, 1, 1], [], []>} : vector<8x32xf32>, vector<32x6xf32>, vector<8x6xf32> -> vector<8x6xf32>
    %50 = vector.broadcast %19 : vector<1x6xf32> to vector<8x6xf32>
    %51 = arith.addf %49, %50 : vector<8x6xf32>
    %cst_35 = arith.constant dense<0.000000e+00> : vector<128x6xf32>
    %52 = tpu.matmul %8, %51, %cst_35 {dimension_numbers = #tpu.dot_dimension_numbers<[1], [0], [0], [1], [0, 0, 1, 1], [], []>} : vector<128x8xf32>, vector<8x6xf32>, vector<128x6xf32> -> vector<128x6xf32>
    %53 = vector.extract_strided_slice %52 {offsets = [0, 0], sizes = [64, 6], strides = [1, 1]} : vector<128x6xf32> to vector<64x6xf32>
    %54 = vector.extract_strided_slice %52 {offsets = [64, 0], sizes = [64, 6], strides = [1, 1]} : vector<128x6xf32> to vector<64x6xf32>
    %cst_36 = arith.constant dense<0.000000e+00> : vector<64x64xf32>
    %55 = tpu.matmul %53, %9, %cst_36 {dimension_numbers = #tpu.dot_dimension_numbers<[1], [0], [0], [1], [0, 0, 1, 1], [], []>} : vector<64x6xf32>, vector<6x64xf32>, vector<64x64xf32> -> vector<64x64xf32>
    %56 = arith.addf %26, %55 : vector<64x64xf32>
    %cst_37 = arith.constant dense<0.000000e+00> : vector<64x64xf32>
    %57 = tpu.matmul %54, %10, %cst_37 {dimension_numbers = #tpu.dot_dimension_numbers<[1], [0], [0], [1], [0, 0, 1, 1], [], []>} : vector<64x6xf32>, vector<6x64xf32>, vector<64x64xf32> -> vector<64x64xf32>
    %58 = arith.addf %56, %57 : vector<64x64xf32>
    %cst_38 = arith.constant 0.000000e+00 : f32
    %59 = vector.broadcast %cst_38 : f32 to vector<64x64xf32>
    %60 = arith.maximumf %58, %59 : vector<64x64xf32>
    %cst_39 = arith.constant dense<0.000000e+00> : vector<8x64xf32>
    %61 = tpu.matmul %5, %60, %cst_39 {dimension_numbers = #tpu.dot_dimension_numbers<[1], [0], [0], [1], [0, 0, 1, 1], [], []>} : vector<8x64xf32>, vector<64x64xf32>, vector<8x64xf32> -> vector<8x64xf32>
    %cst_40 = arith.constant dense<0.000000e+00> : vector<8x6xf32>
    %62 = tpu.matmul %61, %13, %cst_40 {dimension_numbers = #tpu.dot_dimension_numbers<[1], [0], [0], [1], [0, 0, 1, 1], [], []>} : vector<8x64xf32>, vector<64x6xf32>, vector<8x6xf32> -> vector<8x6xf32>
    %63 = arith.addf %62, %29 : vector<8x6xf32>
    %cst_41 = arith.constant dense<0.000000e+00> : vector<8x32xf32>
    %64 = tpu.matmul %51, %15, %cst_41 {dimension_numbers = #tpu.dot_dimension_numbers<[1], [0], [0], [1], [0, 0, 1, 1], [], []>} : vector<8x6xf32>, vector<6x32xf32>, vector<8x32xf32> -> vector<8x32xf32>
    %cst_42 = arith.constant dense<0.000000e+00> : vector<8x32xf32>
    %65 = tpu.matmul %63, %16, %cst_42 {dimension_numbers = #tpu.dot_dimension_numbers<[1], [0], [0], [1], [0, 0, 1, 1], [], []>} : vector<8x6xf32>, vector<6x32xf32>, vector<8x32xf32> -> vector<8x32xf32>
    %66 = arith.addf %64, %65 : vector<8x32xf32>
    %67 = vector.broadcast %17 : vector<1x32xf32> to vector<8x32xf32>
    %68 = arith.addf %66, %67 : vector<8x32xf32>
    %cst_43 = arith.constant 0.000000e+00 : f32
    %69 = vector.broadcast %cst_43 : f32 to vector<8x32xf32>
    %70 = arith.maximumf %68, %69 : vector<8x32xf32>
    %cst_44 = arith.constant dense<0.000000e+00> : vector<8x6xf32>
    %71 = tpu.matmul %70, %18, %cst_44 {dimension_numbers = #tpu.dot_dimension_numbers<[1], [0], [0], [1], [0, 0, 1, 1], [], []>} : vector<8x32xf32>, vector<32x6xf32>, vector<8x6xf32> -> vector<8x6xf32>
    %72 = vector.broadcast %19 : vector<1x6xf32> to vector<8x6xf32>
    %73 = arith.addf %71, %72 : vector<8x6xf32>
    %cst_45 = arith.constant dense<0.000000e+00> : vector<128x6xf32>
    %74 = tpu.matmul %8, %73, %cst_45 {dimension_numbers = #tpu.dot_dimension_numbers<[1], [0], [0], [1], [0, 0, 1, 1], [], []>} : vector<128x8xf32>, vector<8x6xf32>, vector<128x6xf32> -> vector<128x6xf32>
    %75 = vector.extract_strided_slice %74 {offsets = [0, 0], sizes = [64, 6], strides = [1, 1]} : vector<128x6xf32> to vector<64x6xf32>
    %76 = vector.extract_strided_slice %74 {offsets = [64, 0], sizes = [64, 6], strides = [1, 1]} : vector<128x6xf32> to vector<64x6xf32>
    %cst_46 = arith.constant dense<0.000000e+00> : vector<64x64xf32>
    %77 = tpu.matmul %75, %9, %cst_46 {dimension_numbers = #tpu.dot_dimension_numbers<[1], [0], [0], [1], [0, 0, 1, 1], [], []>} : vector<64x6xf32>, vector<6x64xf32>, vector<64x64xf32> -> vector<64x64xf32>
    %78 = arith.addf %26, %77 : vector<64x64xf32>
    %cst_47 = arith.constant dense<0.000000e+00> : vector<64x64xf32>
    %79 = tpu.matmul %76, %10, %cst_47 {dimension_numbers = #tpu.dot_dimension_numbers<[1], [0], [0], [1], [0, 0, 1, 1], [], []>} : vector<64x6xf32>, vector<6x64xf32>, vector<64x64xf32> -> vector<64x64xf32>
    %80 = arith.addf %78, %79 : vector<64x64xf32>
    %cst_48 = arith.constant 0.000000e+00 : f32
    %81 = vector.broadcast %cst_48 : f32 to vector<64x64xf32>
    %82 = arith.maximumf %80, %81 : vector<64x64xf32>
    %cst_49 = arith.constant dense<0.000000e+00> : vector<8x64xf32>
    %83 = tpu.matmul %5, %82, %cst_49 {dimension_numbers = #tpu.dot_dimension_numbers<[1], [0], [0], [1], [0, 0, 1, 1], [], []>} : vector<8x64xf32>, vector<64x64xf32>, vector<8x64xf32> -> vector<8x64xf32>
    %cst_50 = arith.constant dense<0.000000e+00> : vector<8x6xf32>
    %84 = tpu.matmul %83, %13, %cst_50 {dimension_numbers = #tpu.dot_dimension_numbers<[1], [0], [0], [1], [0, 0, 1, 1], [], []>} : vector<8x64xf32>, vector<64x6xf32>, vector<8x6xf32> -> vector<8x6xf32>
    %85 = arith.addf %84, %29 : vector<8x6xf32>
    %cst_51 = arith.constant dense<0.000000e+00> : vector<8x32xf32>
    %86 = tpu.matmul %73, %15, %cst_51 {dimension_numbers = #tpu.dot_dimension_numbers<[1], [0], [0], [1], [0, 0, 1, 1], [], []>} : vector<8x6xf32>, vector<6x32xf32>, vector<8x32xf32> -> vector<8x32xf32>
    %cst_52 = arith.constant dense<0.000000e+00> : vector<8x32xf32>
    %87 = tpu.matmul %85, %16, %cst_52 {dimension_numbers = #tpu.dot_dimension_numbers<[1], [0], [0], [1], [0, 0, 1, 1], [], []>} : vector<8x6xf32>, vector<6x32xf32>, vector<8x32xf32> -> vector<8x32xf32>
    %88 = arith.addf %86, %87 : vector<8x32xf32>
    %89 = vector.broadcast %17 : vector<1x32xf32> to vector<8x32xf32>
    %90 = arith.addf %88, %89 : vector<8x32xf32>
    %cst_53 = arith.constant 0.000000e+00 : f32
    %91 = vector.broadcast %cst_53 : f32 to vector<8x32xf32>
    %92 = arith.maximumf %90, %91 : vector<8x32xf32>
    %cst_54 = arith.constant dense<0.000000e+00> : vector<8x6xf32>
    %93 = tpu.matmul %92, %18, %cst_54 {dimension_numbers = #tpu.dot_dimension_numbers<[1], [0], [0], [1], [0, 0, 1, 1], [], []>} : vector<8x32xf32>, vector<32x6xf32>, vector<8x6xf32> -> vector<8x6xf32>
    %94 = vector.broadcast %19 : vector<1x6xf32> to vector<8x6xf32>
    %95 = arith.addf %93, %94 : vector<8x6xf32>
    %cst_55 = arith.constant dense<0.000000e+00> : vector<6xf32>
    %96 = vector.multi_reduction <add>, %95, %cst_55 [0] : vector<8x6xf32> to vector<6xf32>
    %97 = vector.shape_cast %96 : vector<6xf32> to vector<1x6xf32>
    %cst_56 = arith.constant dense<0.000000e+00> : vector<1x32xf32>
    %98 = tpu.matmul %97, %20, %cst_56 {dimension_numbers = #tpu.dot_dimension_numbers<[1], [0], [0], [1], [0, 0, 1, 1], [], []>} : vector<1x6xf32>, vector<6x32xf32>, vector<1x32xf32> -> vector<1x32xf32>
    %99 = arith.addf %98, %21 : vector<1x32xf32>
    %cst_57 = arith.constant 0.000000e+00 : f32
    %100 = vector.broadcast %cst_57 : f32 to vector<1x32xf32>
    %101 = arith.maximumf %99, %100 : vector<1x32xf32>
    %cst_58 = arith.constant dense<0.000000e+00> : vector<1x1xf32>
    %102 = tpu.matmul %101, %22, %cst_58 {dimension_numbers = #tpu.dot_dimension_numbers<[1], [0], [0], [1], [0, 0, 1, 1], [], []>} : vector<1x32xf32>, vector<32x1xf32>, vector<1x1xf32> -> vector<1x1xf32>
    %103 = arith.addf %102, %23 : vector<1x1xf32>
    %104 = arith.negf %103 : vector<1x1xf32>
    %105 = math.exp %104 : vector<1x1xf32>
    %cst_59 = arith.constant 1.000000e+00 : f32
    %106 = vector.broadcast %cst_59 : f32 to vector<1x1xf32>
    %107 = arith.addf %106, %105 : vector<1x1xf32>
    %108 = arith.divf %106, %107 : vector<1x1xf32>
    %109 = vector.shape_cast %108 : vector<1x1xf32> to vector<1x1xf32>
    %110 = vector.broadcast %109 : vector<1x1xf32> to vector<8x128xf32>
    %c0_60 = arith.constant 0 : index
    %c0_61 = arith.constant 0 : index
    %c0_62 = arith.constant 0 : index
    %111 = vector.load %arg3[%c0_60, %c0_61, %c0_62] : memref<1x8x128xf32, #tpu.memory_space<vmem>>, vector<1x8x128xf32>
    %112 = vector.shape_cast %111 : vector<1x8x128xf32> to vector<8x128xf32>
    %113 = vector.shape_cast %110 : vector<8x128xf32> to vector<1x8x128xf32>
    tpu.vector_store %arg3[%c0_60, %c0_61, %c0_62], %113 {strides = array<i32>} : memref<1x8x128xf32, #tpu.memory_space<vmem>>, vector<1x8x128xf32>,
    return
  }
  func.func @transform_0(%arg0: i32) -> (i32, i32, i32) {
    %c0_i32 = arith.constant 0 : i32
    %c0_i32_0 = arith.constant 0 : i32
    %c0_i32_1 = arith.constant 0 : i32
    return %arg0, %c0_i32, %c0_i32_0 : i32, i32, i32
  }
  func.func @transform_1(%arg0: i32) -> (i32, i32) {
    %c0_i32 = arith.constant 0 : i32
    %c0_i32_0 = arith.constant 0 : i32
    %c0_i32_1 = arith.constant 0 : i32
    return %c0_i32, %c0_i32_0 : i32, i32
  }
  func.func @transform_2(%arg0: i32) -> (i32, i32, i32) {
    %c0_i32 = arith.constant 0 : i32
    %c0_i32_0 = arith.constant 0 : i32
    %c0_i32_1 = arith.constant 0 : i32
    return %arg0, %c0_i32, %c0_i32_0 : i32, i32, i32
  }
}

</mosaic_0001>

<llo_original>
// kernel: multi_mpnn_moa_batched.1
$region0: #{multi_mpnn_moa_batched.1}
  #allocation0 [shape = 'u32[]', space=smem, size = 0x4, offset = 0x4, fixed_abs, tag = 'smem constant byte address 0x4 - core index']
  #allocation1 [shape = 'u32[144,128]{1,0:T(1,128)}', space=vmem, size = 0x12000, scoped, tag = 'internal scratch']
  %s0 = inlined_call_operand.vmem [shape: f32[4,72,128], index: 0, kind: input, shape index: {}]
  %s1 = inlined_call_operand.vmem [shape: f32[352,128], index: 1, kind: input, shape index: {}]
  %s2 = inlined_call_operand.vmem [shape: f32[4,8,128], index: 2, kind: output, shape index: {}]
  %s3 = sld [smem:[#allocation0]]
  $region41: #{multi_mpnn_moa_batched.1} parent=0
    _
  %s5 = ssub.s32 1, %s3
  %s6 = scalar_select 0, %s5, %s3
  loop: start=0, step=1, limit=6
  $region2: #{multi_mpnn_moa_batched.1} parent=0 // loop_pre_header
    _
  $region3: #{multi_mpnn_moa_batched.1} parent=0 // loop_header
    %s8 = sphi 0, %s12
    %p9 = scmp.ge.s32.totalorder %s8, 6
    %s18 = sphi 0, %s20
    %s21 = sphi 0, %s18
    %s22 = sphi 0, %s21
    %s38 = sphi 0, %s22
    %s42 = sphi 0, %s42
    %s44 = sphi 0, %s42
    %s45 = sphi 0, %s44
    %s59 = sphi 0, %s45
    %s65 = sphi 0, %s67
    %s68 = sphi 0, %s65
    %s69 = sphi 0, %s68
    %s85 = sphi 0, %s69
  $region4: #{multi_mpnn_moa_batched.1} parent=0 // loop_header_branch
    %11 = sbr.rel (%p9) target = $region8
  $region5: #{multi_mpnn_moa_batched.1} parent=0 // loop_body
    %s13 = ssub.s32 %s8, 1
    %s14 = ssub.s32 %s8, 2
    %s15 = sadd.s32 %s8, 1
    %s16 = ssub.s32 %s8, %s15
    %p17 = scmp.eq.s32.totalorder %s16, 0
    %s19 = sadd.s32 %s18, 1
    %s20 = scalar_select %p17, %s18, %s19
    %p23 = pneg %p17
    %p24 = scmp.eq.s32.totalorder %s8, 3
    %p25 = por %p23, %p24
    %p26 = scmp.ne.s32.totalorder %s18, %s21
    %p27 = scmp.eq.s32.totalorder %s8, 0
    %p28 = por %p26, %p27
    %p29 = scmp.ne.s32.totalorder %s18, %s21
    %p30 = scmp.eq.s32.totalorder %s13, 3
    %p31 = por %p29, %p30
    %p32 = scmp.ne.s32.totalorder %s21, %s22
    %p33 = scmp.eq.s32.totalorder %s13, 0
    %p34 = por %p32, %p33
    %p35 = scmp.ne.s32.totalorder %s21, %s22
    %p36 = scmp.eq.s32.totalorder %s14, 3
    %p37 = por %p35, %p36
    %p39 = scmp.ne.s32.totalorder %s22, %s38
    %p40 = scmp.eq.s32.totalorder %s14, 0
    %p41 = por %p39, %p40
    %s43 = sadd.s32 %s42, 1
    %p46 = scmp.eq.s32.totalorder %s8, 3
    %p47 = scmp.ne.s32.totalorder %s42, %s44
    %p48 = scmp.eq.s32.totalorder %s8, 0
    %p49 = por %p47, %p48
    %p50 = scmp.ne.s32.totalorder %s42, %s44
    %p51 = scmp.eq.s32.totalorder %s13, 3
    %p52 = por %p50, %p51
    %p53 = scmp.ne.s32.totalorder %s44, %s45
    %p54 = scmp.eq.s32.totalorder %s13, 0
    %p55 = por %p53, %p54
    %p56 = scmp.ne.s32.totalorder %s44, %s45
    %p57 = scmp.eq.s32.totalorder %s14, 3
    %p58 = por %p56, %p57
    %p60 = scmp.ne.s32.totalorder %s45, %s59
    %p61 = scmp.eq.s32.totalorder %s14, 0
    %p62 = por %p60, %p61
    %s63 = ssub.s32 %s8, %s15
    %p64 = scmp.eq.s32.totalorder %s63, 0
    %s66 = sadd.s32 %s65, 1
    %s67 = scalar_select %p64, %s65, %s66
    %p70 = pneg %p64
    %p71 = scmp.eq.s32.totalorder %s8, 3
    %p72 = por %p70, %p71
    %p73 = scmp.ne.s32.totalorder %s65, %s68
    %p74 = scmp.eq.s32.totalorder %s8, 0
    %p75 = por %p73, %p74
    %p76 = scmp.ne.s32.totalorder %s65, %s68
    %p77 = scmp.eq.s32.totalorder %s13, 3
    %p78 = por %p76, %p77
    %p79 = scmp.ne.s32.totalorder %s68, %s69
    %p80 = scmp.eq.s32.totalorder %s13, 0
    %p81 = por %p79, %p80
    %p82 = scmp.ne.s32.totalorder %s68, %s69
    %p83 = scmp.eq.s32.totalorder %s14, 3
    %p84 = por %p82, %p83
    %p86 = scmp.ne.s32.totalorder %s69, %s85
    %p87 = scmp.eq.s32.totalorder %s14, 0
    %p88 = por %p86, %p87
    %p89 = scmp.le.s32.totalorder 1, %s8
    %p90 = scmp.lt.s32.totalorder %s8, 5
    %p91 = pnand %p89, %p90
    %p92 = pneg %p91
    // Predicated region
    $region9: #{multi_mpnn_moa_batched.1} parent=5 // pred_check
      _
    $region10: #{multi_mpnn_moa_batched.1} parent=5 // pred_check_branch
      %94 = sbr.rel (%p91) target = $region12
    $region11: #{multi_mpnn_moa_batched.1} parent=5 // pred_region
      %s95 = ssub.s32 %s8, 1
      // Predicated region
      $region13: #{multi_mpnn_moa_batched.1} parent=11 // pred_check
        %p96 = pneg %p55
      $region14: #{multi_mpnn_moa_batched.1} parent=11 // pred_check_branch
        %98 = sbr.rel (%p96) target = $region16
      $region15: #{multi_mpnn_moa_batched.1} parent=11 // pred_region
        _
      $region16: #{multi_mpnn_moa_batched.1} parent=11 // pred_fallthru
        _
    $region12: #{multi_mpnn_moa_batched.1} parent=5 // pred_fallthru
      _
    %p99 = scmp.lt.s32.totalorder %s8, 4
    // Predicated region
    $region17: #{multi_mpnn_moa_batched.1} parent=5 // pred_check
      %p100 = pneg %p99
    $region18: #{multi_mpnn_moa_batched.1} parent=5 // pred_check_branch
      %102 = sbr.rel (%p100) target = $region20
    $region19: #{multi_mpnn_moa_batched.1} parent=5 // pred_region
      // Predicated region
      $region21: #{multi_mpnn_moa_batched.1} parent=19 // pred_check
        %p103 = pneg %p28
      $region22: #{multi_mpnn_moa_batched.1} parent=19 // pred_check_branch
        %105 = sbr.rel (%p103) target = $region24
      $region23: #{multi_mpnn_moa_batched.1} parent=19 // pred_region
        %p106 = scmp.lt.s32.totalorder %s8, 3
        %s107 = scalar_select %p106, %s8, 3
        %s108 = smul.addr %s107, 9
        %s109 = smul.addr %s108, 8
        %s110 = scalar_lea.vmem %s0, %s109
      $region24: #{multi_mpnn_moa_batched.1} parent=19 // pred_fallthru
        _
    $region20: #{multi_mpnn_moa_batched.1} parent=5 // pred_fallthru
      _
    %p111 = scmp.le.s32.totalorder 1, %s8
    %p112 = scmp.lt.s32.totalorder %s8, 5
    %p113 = pnand %p111, %p112
    %p114 = pneg %p113
    // Predicated region
    $region25: #{multi_mpnn_moa_batched.1} parent=5 // pred_check
      _
    $region26: #{multi_mpnn_moa_batched.1} parent=5 // pred_check_branch
      %116 = sbr.rel (%p113) target = $region28
    $region27: #{multi_mpnn_moa_batched.1} parent=5 // pred_region
      %s117 = ssub.s32 %s8, 1
      %p118 = scmp.lt.s32.totalorder %s13, 3
      %s119 = scalar_select %p118, %s13, 3
      %s120 = smul.addr %s119, 9
      %s121 = smul.addr %s120, 8
      %s122 = scalar_lea.vmem %s0, %s121
      %p123 = pneg %p34
      %p124 = pneg %p31
      %p125 = pneg %p55
      %p126 = pneg %p52
      %p127 = pneg %p81
      %p128 = pneg %p78
      %p129 = scmp.lt.s32.totalorder %s13, 3
      %s130 = scalar_select %p129, %s13, 3
      %s131 = smul.addr %s130, 8
      %s132 = scalar_lea.vmem %s2, %s131
      %p133 = scmp.lt.s32.totalorder %s13, 3
      %s134 = scalar_select %p133, %s13, 3
      %s135 = smul.addr %s134, 9
      %s136 = smul.addr %s135, 8
      %s137 = scalar_lea.vmem %s0, %s136
      %p138 = scmp.lt.s32.totalorder %s13, 3
      %s139 = scalar_select %p138, %s13, 3
      %s140 = smul.addr %s139, 8
      %s141 = scalar_lea.vmem %s2, %s140
      %v142 = vld [vmem:[%s137] sm:$0xff]
      %v143 = vld [vmem:[%s137 + $0x8] sm:$0xff]
      %v144 = vld [vmem:[%s137 + $0x10] sm:$0xff]
      %v145 = vld [vmem:[%s137 + $0x18] sm:$0xff]
      %v146 = vld [vmem:[%s137 + $0x20] sm:$0xff]
      %v147 = vld [vmem:[%s137 + $0x28] sm:$0xff]
      %v148 = vld [vmem:[%s137 + $0x30] sm:$0xff]
      %v149 = vld [vmem:[%s137 + $0x38] sm:$0xff]
      %v150 = vld [vmem:[%s137 + $0x40] sm:$0xff]
      %v151 = vld [vmem:[%s1] sm:$0xff]
      %v152 = vld [vmem:[%s1 + $0x8] sm:$0xff]
      %v153 = vld [vmem:[%s1 + $0x10] sm:$0xff]
      %v154 = vld [vmem:[%s1 + $0x18] sm:$0xff]
      %v155 = vld [vmem:[%s1 + $0x20] sm:$0xff]
      %v156 = vld [vmem:[%s1 + $0x28] sm:$0xff]
      %v157 = vld [vmem:[%s1 + $0x30] sm:$0xff]
      %v158 = vld [vmem:[%s1 + $0x38] sm:$0xff]
      %v159 = vld [vmem:[%s1 + $0x40] sm:$0xff]
      %v160 = vld [vmem:[%s1 + $0x48] sm:$0xff]
      %v161 = vld [vmem:[%s1 + $0x50] sm:$0xff]
      %v162 = vld [vmem:[%s1 + $0x58] sm:$0xff]
      %v163 = vld [vmem:[%s1 + $0x60] sm:$0xff]
      %v164 = vld [vmem:[%s1 + $0x68] sm:$0xff]
      %v165 = vld [vmem:[%s1 + $0x70] sm:$0xff]
      %v166 = vld [vmem:[%s1 + $0x78] sm:$0xff]
      %v167 = vld [vmem:[%s1 + $0x80] sm:$0x3f]
      %v168 = vld [vmem:[%s1 + $0x88] sm:$0x3f]
      %v169 = vld [vmem:[%s1 + $0x90] sm:$0x3f]
      %v170 = vld [vmem:[%s1 + $0x98] sm:$0x1]
      %v171 = vld [vmem:[%s1 + $0xa0] sm:$0xff]
      %v172 = vld [vmem:[%s1 + $0xa8] sm:$0xff]
      %v173 = vld [vmem:[%s1 + $0xb0] sm:$0xff]
      %v174 = vld [vmem:[%s1 + $0xb8] sm:$0xff]
      %v175 = vld [vmem:[%s1 + $0xc0] sm:$0xff]
      %v176 = vld [vmem:[%s1 + $0xc8] sm:$0xff]
      %v177 = vld [vmem:[%s1 + $0xd0] sm:$0xff]
      %v178 = vld [vmem:[%s1 + $0xd8] sm:$0xff]
      %v179 = vld [vmem:[%s1 + $0xe0] sm:$0x1]
      %v180 = vld [vmem:[%s1 + $0xe8] sm:$0x3f]
      %v181 = vld [vmem:[%s1 + $0xf0] sm:$0x3f]
      %v182 = vld [vmem:[%s1 + $0xf8] sm:$0x1]
      %v183 = vld [vmem:[%s1 + $0x100] sm:$0xff]
      %v184 = vld [vmem:[%s1 + $0x108] sm:$0xff]
      %v185 = vld [vmem:[%s1 + $0x110] sm:$0xff]
      %v186 = vld [vmem:[%s1 + $0x118] sm:$0xff]
      %v187 = vld [vmem:[%s1 + $0x120] sm:$0x1]
      %v188 = vld [vmem:[%s1 + $0x128] sm:$0x3f]
      %v189 = vld [vmem:[%s1 + $0x130] sm:$0x1]
      %v190 = vld [vmem:[%s1 + $0x138] sm:$0xff]
      %v191 = vld [vmem:[%s1 + $0x140] sm:$0xff]
      %v192 = vld [vmem:[%s1 + $0x148] sm:$0xff]
      %v193 = vld [vmem:[%s1 + $0x150] sm:$0xff]
      %v194 = vld [vmem:[%s1 + $0x158] sm:$0x1]
      %v195 = vlaneseq
      %v196 = vshrl.u32 %v195, 7
      %v197 = vsub.s32 0, %v196
      %v198 = vrot.slane %v170, %v197
      %vm199 = vcmask 48128
      %v201 = vsel %vm199, %v143, 0
      %v204 = vsel %vm199, %v144, 0
      %v207 = vsel %vm199, %v145, 0
      %v210 = vsel %vm199, %v146, 0
      %v213 = vsel %vm199, %v147, 0
      %v216 = vsel %vm199, %v148, 0
      %v219 = vsel %vm199, %v149, 0
      %v222 = vsel %vm199, %v150, 0
      %vm224 = vcmask 1045504
      %v226 = vsel %vm224, %v169, 0
      %228 = vmatprep.subr.mxu0 0.0
      %229 = vmatpush1.msra.mxu0 %v226
      %230 = vmatprep.subr.mxu0 0.0
      %231 = vmatpush1.msra.mxu0 0.0
      %232 = vmatprep.subr.mxu0 0.0
      %233 = vmatpush1.msra.mxu0 0.0
      %234 = vmatprep.subr.mxu0 0.0
      %235 = vmatpush1.msra.mxu0 0.0
      %236 = vmatprep.subr.mxu0 0.0
      %237 = vmatpush1.msra.mxu0 0.0
      %238 = vmatprep.subr.mxu0 0.0
      %239 = vmatpush1.msra.mxu0 0.0
      %240 = vmatprep.subr.mxu0 0.0
      %241 = vmatpush1.msra.mxu0 0.0
      %242 = vmatprep.subr.mxu0 0.0
      %243 = vmatpush1.msra.mxu0 0.0
      %244 = vmatprep.subr.mxu0 0.0
      %245 = vmatpush1.msra.mxu0 0.0
      %246 = vmatprep.subr.mxu0 0.0
      %247 = vmatpush1.msra.mxu0 0.0
      %248 = vmatprep.subr.mxu0 0.0
      %249 = vmatpush1.msra.mxu0 0.0
      %250 = vmatprep.subr.mxu0 0.0
      %251 = vmatpush1.msra.mxu0 0.0
      %252 = vmatprep.subr.mxu0 0.0
      %253 = vmatpush1.msra.mxu0 0.0
      %254 = vmatprep.subr.mxu0 0.0
      %255 = vmatpush1.msra.mxu0 0.0
      %256 = vmatprep.subr.mxu0 0.0
      %257 = vmatpush1.msra.mxu0 0.0
      %258 = vmatprep.subr.mxu0 0.0
      %259 = vmatpush1.msra.mxu0 0.0
      %260 = vmatprep.subr.mxu0 0.0
      %261 = vmatpush1.msra.mxu0 0.0
      %262 = vmatprep.subr.mxu0 0.0
      %263 = vmatpush1.msra.mxu0 0.0
      %264 = vmatprep.subr.mxu0 0.0
      %265 = vmatpush1.msra.mxu0 0.0
      %266 = vmatprep.subr.mxu0 0.0
      %267 = vmatpush1.msra.mxu0 0.0
      %268 = vmatprep.subr.mxu0 0.0
      %269 = vmatpush1.msra.mxu0 0.0
      %270 = vmatprep.subr.mxu0 0.0
      %271 = vmatpush1.msra.mxu0 0.0
      %272 = vmatprep.subr.mxu0 0.0
      %273 = vmatpush1.msra.mxu0 0.0
      %274 = vmatprep.subr.mxu0 0.0
      %275 = vmatpush1.msra.mxu0 0.0
      %276 = vmatprep.subr.mxu0 0.0
      %277 = vmatpush1.msra.mxu0 0.0
      %278 = vmatprep.subr.mxu0 0.0
      %279 = vmatpush1.msra.mxu0 0.0
      %280 = vmatprep.subr.mxu0 0.0
      %281 = vmatpush1.msra.mxu0 0.0
      %282 = vmatprep.subr.mxu0 0.0
      %283 = vmatpush1.msra.mxu0 0.0
      %284 = vmatprep.subr.mxu0 0.0
      %285 = vmatpush1.msra.mxu0 0.0
      %286 = vmatprep.subr.mxu0 0.0
      %287 = vmatpush1.msra.mxu0 0.0
      %288 = vmatprep.subr.mxu0 0.0
      %289 = vmatpush1.msra.mxu0 0.0
      %290 = vmatprep.subr.mxu0 0.0
      %291 = vmatpush1.msra.mxu0 0.0
      %292 = vmatprep.mubr.f32.mxu0 0.0
      %293 = vmatmul.mubr.f32.gmra.mrb[0].mxu0 %v201
      %v294 = vpop.f32.mrb[0].mxu0
      %v295 = vadd.f32 %v198, %v294
      %v296 = vpop.f32.mrb[0].mxu0
      %297 = vmatprep.mubr.f32.mxu0 0.0
      %298 = vmatmul.mubr.f32.gmra.mrb[0].mxu0 %v204
      %v299 = vpop.f32.mrb[0].mxu0
      %v300 = vadd.f32 %v198, %v299
      %v301 = vpop.f32.mrb[0].mxu0
      %302 = vmatprep.mubr.f32.mxu0 0.0
      %303 = vmatmul.mubr.f32.gmra.mrb[0].mxu0 %v207
      %v304 = vpop.f32.mrb[0].mxu0
      %v305 = vadd.f32 %v198, %v304
      %v306 = vpop.f32.mrb[0].mxu0
      %307 = vmatprep.mubr.f32.mxu0 0.0
      %308 = vmatmul.mubr.f32.gmra.mrb[0].mxu0 %v210
      %v309 = vpop.f32.mrb[0].mxu0
      %v310 = vadd.f32 %v198, %v309
      %v311 = vpop.f32.mrb[0].mxu0
      %312 = vmatprep.mubr.f32.mxu0 0.0
      %313 = vmatmul.mubr.f32.gmra.mrb[0].mxu0 %v213
      %v314 = vpop.f32.mrb[0].mxu0
      %v315 = vadd.f32 %v198, %v314
      %v316 = vpop.f32.mrb[0].mxu0
      %317 = vmatprep.mubr.f32.mxu0 0.0
      %318 = vmatmul.mubr.f32.gmra.mrb[0].mxu0 %v216
      %v319 = vpop.f32.mrb[0].mxu0
      %v320 = vadd.f32 %v198, %v319
      %v321 = vpop.f32.mrb[0].mxu0
      %322 = vmatprep.mubr.f32.mxu0 0.0
      %323 = vmatmul.mubr.f32.gmra.mrb[0].mxu0 %v219
      %v324 = vpop.f32.mrb[0].mxu0
      %v325 = vadd.f32 %v198, %v324
      %v326 = vpop.f32.mrb[0].mxu0
      %327 = vmatprep.mubr.f32.mxu0 0.0
      %328 = vmatmul.mubr.f32.gmra.mrb[0].mxu0 %v222
      %v329 = vpop.f32.mrb[0].mxu0
      %v330 = vadd.f32 %v198, %v329
      %v331 = vpop.f32.mrb[0].mxu0
      %332 = vdwg.mxu0
      %334 = vset.pattern.permute.xlu0 6
      %335 = vperm.xlu0 %334, %v142
      %v336 = vpop.permute.xlu0 %335
      %v338 = vlaneseq
      %v339 = vshrl.u32 %v338, 7
      %v340 = vsub.s32 0, %v339
      %v341 = vrot.slane %v179, %v340
      %v342 = vmul.f32 %v336, %v341
      %vm343 = vcmask 64512
      %v345 = vsel %vm343, %v151, 0
      %v348 = vsel %vm343, %v152, 0
      %v351 = vsel %vm343, %v153, 0
      %v354 = vsel %vm343, %v154, 0
      %v357 = vsel %vm343, %v155, 0
      %v360 = vsel %vm343, %v156, 0
      %v363 = vsel %vm343, %v157, 0
      %v366 = vsel %vm343, %v158, 0
      %v369 = vsel %vm343, %v159, 0
      %v372 = vsel %vm343, %v160, 0
      %v375 = vsel %vm343, %v161, 0
      %v378 = vsel %vm343, %v162, 0
      %v381 = vsel %vm343, %v163, 0
      %v384 = vsel %vm343, %v164, 0
      %v387 = vsel %vm343, %v165, 0
      %v390 = vsel %vm343, %v166, 0
      %392 = vmatprep.subr.mxu0 0.0
      %393 = vmatpush1.msra.mxu0 %v142
      %394 = vmatprep.subr.mxu0 0.0
      %395 = vmatpush1.msra.mxu0 0.0
      %396 = vmatprep.subr.mxu0 0.0
      %397 = vmatpush1.msra.mxu0 0.0
      %398 = vmatprep.subr.mxu0 0.0
      %399 = vmatpush1.msra.mxu0 0.0
      %400 = vmatprep.subr.mxu0 0.0
      %401 = vmatpush1.msra.mxu0 0.0
      %402 = vmatprep.subr.mxu0 0.0
      %403 = vmatpush1.msra.mxu0 0.0
      %404 = vmatprep.subr.mxu0 0.0
      %405 = vmatpush1.msra.mxu0 0.0
      %406 = vmatprep.subr.mxu0 0.0
      %407 = vmatpush1.msra.mxu0 0.0
      %408 = vmatprep.subr.mxu0 0.0
      %409 = vmatpush1.msra.mxu0 0.0
      %410 = vmatprep.subr.mxu0 0.0
      %411 = vmatpush1.msra.mxu0 0.0
      %412 = vmatprep.subr.mxu0 0.0
      %413 = vmatpush1.msra.mxu0 0.0
      %414 = vmatprep.subr.mxu0 0.0
      %415 = vmatpush1.msra.mxu0 0.0
      %416 = vmatprep.subr.mxu0 0.0
      %417 = vmatpush1.msra.mxu0 0.0
      %418 = vmatprep.subr.mxu0 0.0
      %419 = vmatpush1.msra.mxu0 0.0
      %420 = vmatprep.subr.mxu0 0.0
      %421 = vmatpush1.msra.mxu0 0.0
      %422 = vmatprep.subr.mxu0 0.0
      %423 = vmatpush1.msra.mxu0 0.0
      %424 = vmatprep.subr.mxu0 0.0
      %425 = vmatpush1.msra.mxu0 0.0
      %426 = vmatprep.subr.mxu0 0.0
      %427 = vmatpush1.msra.mxu0 0.0
      %428 = vmatprep.subr.mxu0 0.0
      %429 = vmatpush1.msra.mxu0 0.0
      %430 = vmatprep.subr.mxu0 0.0
      %431 = vmatpush1.msra.mxu0 0.0
      %432 = vmatprep.subr.mxu0 0.0
      %433 = vmatpush1.msra.mxu0 0.0
      %434 = vmatprep.subr.mxu0 0.0
      %435 = vmatpush1.msra.mxu0 0.0
      %436 = vmatprep.subr.mxu0 0.0
      %437 = vmatpush1.msra.mxu0 0.0
      %438 = vmatprep.subr.mxu0 0.0
      %439 = vmatpush1.msra.mxu0 0.0
      %440 = vmatprep.subr.mxu0 0.0
      %441 = vmatpush1.msra.mxu0 0.0
      %442 = vmatprep.subr.mxu0 0.0
      %443 = vmatpush1.msra.mxu0 0.0
      %444 = vmatprep.subr.mxu0 0.0
      %445 = vmatpush1.msra.mxu0 0.0
      %446 = vmatprep.subr.mxu0 0.0
      %447 = vmatpush1.msra.mxu0 0.0
      %448 = vmatprep.subr.mxu0 0.0
      %449 = vmatpush1.msra.mxu0 0.0
      %450 = vmatprep.subr.mxu0 0.0
      %451 = vmatpush1.msra.mxu0 0.0
      %452 = vmatprep.subr.mxu0 0.0
      %453 = vmatpush1.msra.mxu0 0.0
      %454 = vmatprep.subr.mxu0 0.0
      %455 = vmatpush1.msra.mxu0 0.0
      %456 = vmatprep.mubr.f32.mxu0 0.0
      %457 = vmatmul.mubr.f32.gmra.mrb[0].mxu0 %v345
      %v458 = vpop.f32.mrb[0].mxu0
      %v459 = vadd.f32 0.0, %v458
      %v460 = vpop.f32.mrb[0].mxu0
      %461 = vmatprep.mubr.f32.mxu0 0.0
      %462 = vmatmul.mubr.f32.gmra.mrb[0].mxu0 %v348
      %v463 = vpop.f32.mrb[0].mxu0
      %v464 = vadd.f32 0.0, %v463
      %v465 = vpop.f32.mrb[0].mxu0
      %466 = vmatprep.mubr.f32.mxu0 0.0
      %467 = vmatmul.mubr.f32.gmra.mrb[0].mxu0 %v351
      %v468 = vpop.f32.mrb[0].mxu0
      %v469 = vadd.f32 0.0, %v468
      %v470 = vpop.f32.mrb[0].mxu0
      %471 = vmatprep.mubr.f32.mxu0 0.0
      %472 = vmatmul.mubr.f32.gmra.mrb[0].mxu0 %v354
      %v473 = vpop.f32.mrb[0].mxu0
      %v474 = vadd.f32 0.0, %v473
      %v475 = vpop.f32.mrb[0].mxu0
      %476 = vmatprep.mubr.f32.mxu0 0.0
      %477 = vmatmul.mubr.f32.gmra.mrb[0].mxu0 %v357
      %v478 = vpop.f32.mrb[0].mxu0
      %v479 = vadd.f32 0.0, %v478
      %v480 = vpop.f32.mrb[0].mxu0
      %481 = vmatprep.mubr.f32.mxu0 0.0
      %482 = vmatmul.mubr.f32.gmra.mrb[0].mxu0 %v360
      %v483 = vpop.f32.mrb[0].mxu0
      %v484 = vadd.f32 0.0, %v483
      %v485 = vpop.f32.mrb[0].mxu0
      %486 = vmatprep.mubr.f32.mxu0 0.0
      %487 = vmatmul.mubr.f32.gmra.mrb[0].mxu0 %v363
      %v488 = vpop.f32.mrb[0].mxu0
      %v489 = vadd.f32 0.0, %v488
      %v490 = vpop.f32.mrb[0].mxu0
      %491 = vmatprep.mubr.f32.mxu0 0.0
      %492 = vmatmul.mubr.f32.gmra.mrb[0].mxu0 %v366
      %v493 = vpop.f32.mrb[0].mxu0
      %v494 = vadd.f32 0.0, %v493
      %v495 = vpop.f32.mrb[0].mxu0
      %496 = vmatprep.mubr.f32.mxu0 0.0
      %497 = vmatmul.mubr.f32.gmra.mrb[0].mxu0 %v369
      %v498 = vpop.f32.mrb[0].mxu0
      %v499 = vadd.f32 0.0, %v498
      %v500 = vpop.f32.mrb[0].mxu0
      %501 = vmatprep.mubr.f32.mxu0 0.0
      %502 = vmatmul.mubr.f32.gmra.mrb[0].mxu0 %v372
      %v503 = vpop.f32.mrb[0].mxu0
      %v504 = vadd.f32 0.0, %v503
      %v505 = vpop.f32.mrb[0].mxu0
      %506 = vmatprep.mubr.f32.mxu0 0.0
      %507 = vmatmul.mubr.f32.gmra.mrb[0].mxu0 %v375
      %v508 = vpop.f32.mrb[0].mxu0
      %v509 = vadd.f32 0.0, %v508
      %v510 = vpop.f32.mrb[0].mxu0
      %511 = vmatprep.mubr.f32.mxu0 0.0
      %512 = vmatmul.mubr.f32.gmra.mrb[0].mxu0 %v378
      %v513 = vpop.f32.mrb[0].mxu0
      %v514 = vadd.f32 0.0, %v513
      %v515 = vpop.f32.mrb[0].mxu0
      %516 = vmatprep.mubr.f32.mxu0 0.0
      %517 = vmatmul.mubr.f32.gmra.mrb[0].mxu0 %v381
      %v518 = vpop.f32.mrb[0].mxu0
      %v519 = vadd.f32 0.0, %v518
      %v520 = vpop.f32.mrb[0].mxu0
      %521 = vmatprep.mubr.f32.mxu0 0.0
      %522 = vmatmul.mubr.f32.gmra.mrb[0].mxu0 %v384
      %v523 = vpop.f32.mrb[0].mxu0
      %v524 = vadd.f32 0.0, %v523
      %v525 = vpop.f32.mrb[0].mxu0
      %526 = vmatprep.mubr.f32.mxu0 0.0
      %527 = vmatmul.mubr.f32.gmra.mrb[0].mxu0 %v387
      %v528 = vpop.f32.mrb[0].mxu0
      %v529 = vadd.f32 0.0, %v528
      %v530 = vpop.f32.mrb[0].mxu0
      %531 = vmatprep.mubr.f32.mxu0 0.0
      %532 = vmatmul.mubr.f32.gmra.mrb[0].mxu0 %v390
      %v533 = vpop.f32.mrb[0].mxu0
      %v534 = vadd.f32 0.0, %v533
      %v535 = vpop.f32.mrb[0].mxu0
      %536 = vdwg.mxu0
      %v538 = vsel %vm199, %v459, 0
      %v541 = vsel %vm199, %v464, 0
      %v544 = vsel %vm199, %v469, 0
      %v547 = vsel %vm199, %v474, 0
      %v550 = vsel %vm199, %v479, 0
      %v553 = vsel %vm199, %v484, 0
      %v556 = vsel %vm199, %v489, 0
      %v559 = vsel %vm199, %v494, 0
      %v562 = vsel %vm224, %v167, 0
      %564 = vmatprep.subr.mxu0 0.0
      %565 = vmatpush1.msra.mxu0 %v562
      %566 = vmatprep.subr.mxu0 0.0
      %567 = vmatpush1.msra.mxu0 0.0
      %568 = vmatprep.subr.mxu0 0.0
      %569 = vmatpush1.msra.mxu0 0.0
      %570 = vmatprep.subr.mxu0 0.0
      %571 = vmatpush1.msra.mxu0 0.0
      %572 = vmatprep.subr.mxu0 0.0
      %573 = vmatpush1.msra.mxu0 0.0
      %574 = vmatprep.subr.mxu0 0.0
      %575 = vmatpush1.msra.mxu0 0.0
      %576 = vmatprep.subr.mxu0 0.0
      %577 = vmatpush1.msra.mxu0 0.0
      %578 = vmatprep.subr.mxu0 0.0
      %579 = vmatpush1.msra.mxu0 0.0
      %580 = vmatprep.subr.mxu0 0.0
      %581 = vmatpush1.msra.mxu0 0.0
      %582 = vmatprep.subr.mxu0 0.0
      %583 = vmatpush1.msra.mxu0 0.0
      %584 = vmatprep.subr.mxu0 0.0
      %585 = vmatpush1.msra.mxu0 0.0
      %586 = vmatprep.subr.mxu0 0.0
      %587 = vmatpush1.msra.mxu0 0.0
      %588 = vmatprep.subr.mxu0 0.0
      %589 = vmatpush1.msra.mxu0 0.0
      %590 = vmatprep.subr.mxu0 0.0
      %591 = vmatpush1.msra.mxu0 0.0
      %592 = vmatprep.subr.mxu0 0.0
      %593 = vmatpush1.msra.mxu0 0.0
      %594 = vmatprep.subr.mxu0 0.0
      %595 = vmatpush1.msra.mxu0 0.0
      %596 = vmatprep.subr.mxu0 0.0
      %597 = vmatpush1.msra.mxu0 0.0
      %598 = vmatprep.subr.mxu0 0.0
      %599 = vmatpush1.msra.mxu0 0.0
      %600 = vmatprep.subr.mxu0 0.0
      %601 = vmatpush1.msra.mxu0 0.0
      %602 = vmatprep.subr.mxu0 0.0
      %603 = vmatpush1.msra.mxu0 0.0
      %604 = vmatprep.subr.mxu0 0.0
      %605 = vmatpush1.msra.mxu0 0.0
      %606 = vmatprep.subr.mxu0 0.0
      %607 = vmatpush1.msra.mxu0 0.0
      %608 = vmatprep.subr.mxu0 0.0
      %609 = vmatpush1.msra.mxu0 0.0
      %610 = vmatprep.subr.mxu0 0.0
      %611 = vmatpush1.msra.mxu0 0.0
      %612 = vmatprep.subr.mxu0 0.0
      %613 = vmatpush1.msra.mxu0 0.0
      %614 = vmatprep.subr.mxu0 0.0
      %615 = vmatpush1.msra.mxu0 0.0
      %616 = vmatprep.subr.mxu0 0.0
      %617 = vmatpush1.msra.mxu0 0.0
      %618 = vmatprep.subr.mxu0 0.0
      %619 = vmatpush1.msra.mxu0 0.0
      %620 = vmatprep.subr.mxu0 0.0
      %621 = vmatpush1.msra.mxu0 0.0
      %622 = vmatprep.subr.mxu0 0.0
      %623 = vmatpush1.msra.mxu0 0.0
      %624 = vmatprep.subr.mxu0 0.0
      %625 = vmatpush1.msra.mxu0 0.0
      %626 = vmatprep.subr.mxu0 0.0
      %627 = vmatpush1.msra.mxu0 0.0
      %628 = vmatprep.mubr.f32.mxu0 0.0
      %629 = vmatmul.mubr.f32.gmra.mrb[0].mxu0 %v538
      %v630 = vpop.f32.mrb[0].mxu0
      %v631 = vadd.f32 0.0, %v630
      %v632 = vpop.f32.mrb[0].mxu0
      %633 = vmatprep.mubr.f32.mxu0 0.0
      %634 = vmatmul.mubr.f32.gmra.mrb[0].mxu0 %v541
      %v635 = vpop.f32.mrb[0].mxu0
      %v636 = vadd.f32 0.0, %v635
      %v637 = vpop.f32.mrb[0].mxu0
      %638 = vmatprep.mubr.f32.mxu0 0.0
      %639 = vmatmul.mubr.f32.gmra.mrb[0].mxu0 %v544
      %v640 = vpop.f32.mrb[0].mxu0
      %v641 = vadd.f32 0.0, %v640
      %v642 = vpop.f32.mrb[0].mxu0
      %643 = vmatprep.mubr.f32.mxu0 0.0
      %644 = vmatmul.mubr.f32.gmra.mrb[0].mxu0 %v547
      %v645 = vpop.f32.mrb[0].mxu0
      %v646 = vadd.f32 0.0, %v645
      %v647 = vpop.f32.mrb[0].mxu0
      %648 = vmatprep.mubr.f32.mxu0 0.0
      %649 = vmatmul.mubr.f32.gmra.mrb[0].mxu0 %v550
      %v650 = vpop.f32.mrb[0].mxu0
      %v651 = vadd.f32 0.0, %v650
      %v652 = vpop.f32.mrb[0].mxu0
      %653 = vmatprep.mubr.f32.mxu0 0.0
      %654 = vmatmul.mubr.f32.gmra.mrb[0].mxu0 %v553
      %v655 = vpop.f32.mrb[0].mxu0
      %v656 = vadd.f32 0.0, %v655
      %v657 = vpop.f32.mrb[0].mxu0
      %658 = vmatprep.mubr.f32.mxu0 0.0
      %659 = vmatmul.mubr.f32.gmra.mrb[0].mxu0 %v556
      %v660 = vpop.f32.mrb[0].mxu0
      %v661 = vadd.f32 0.0, %v660
      %v662 = vpop.f32.mrb[0].mxu0
      %663 = vmatprep.mubr.f32.mxu0 0.0
      %664 = vmatmul.mubr.f32.gmra.mrb[0].mxu0 %v559
      %v665 = vpop.f32.mrb[0].mxu0
      %v666 = vadd.f32 0.0, %v665
      %v667 = vpop.f32.mrb[0].mxu0
      %668 = vdwg.mxu0
      %v669 = vadd.f32 %v295, %v631
      %v670 = vadd.f32 %v300, %v636
      %v671 = vadd.f32 %v305, %v641
      %v672 = vadd.f32 %v310, %v646
      %v673 = vadd.f32 %v315, %v651
      %v674 = vadd.f32 %v320, %v656
      %v675 = vadd.f32 %v325, %v661
      %v676 = vadd.f32 %v330, %v666
      %v678 = vsel %vm199, %v499, 0
      %v681 = vsel %vm199, %v504, 0
      %v684 = vsel %vm199, %v509, 0
      %v687 = vsel %vm199, %v514, 0
      %v690 = vsel %vm199, %v519, 0
      %v693 = vsel %vm199, %v524, 0
      %v696 = vsel %vm199, %v529, 0
      %v699 = vsel %vm199, %v534, 0
      %v702 = vsel %vm224, %v168, 0
      %704 = vmatprep.subr.mxu0 0.0
      %705 = vmatpush1.msra.mxu0 %v702
      %706 = vmatprep.subr.mxu0 0.0
      %707 = vmatpush1.msra.mxu0 0.0
      %708 = vmatprep.subr.mxu0 0.0
      %709 = vmatpush1.msra.mxu0 0.0
      %710 = vmatprep.subr.mxu0 0.0
      %711 = vmatpush1.msra.mxu0 0.0
      %712 = vmatprep.subr.mxu0 0.0
      %713 = vmatpush1.msra.mxu0 0.0
      %714 = vmatprep.subr.mxu0 0.0
      %715 = vmatpush1.msra.mxu0 0.0
      %716 = vmatprep.subr.mxu0 0.0
      %717 = vmatpush1.msra.mxu0 0.0
      %718 = vmatprep.subr.mxu0 0.0
      %719 = vmatpush1.msra.mxu0 0.0
      %720 = vmatprep.subr.mxu0 0.0
      %721 = vmatpush1.msra.mxu0 0.0
      %722 = vmatprep.subr.mxu0 0.0
      %723 = vmatpush1.msra.mxu0 0.0
      %724 = vmatprep.subr.mxu0 0.0
      %725 = vmatpush1.msra.mxu0 0.0
      %726 = vmatprep.subr.mxu0 0.0
      %727 = vmatpush1.msra.mxu0 0.0
      %728 = vmatprep.subr.mxu0 0.0
      %729 = vmatpush1.msra.mxu0 0.0
      %730 = vmatprep.subr.mxu0 0.0
      %731 = vmatpush1.msra.mxu0 0.0
      %732 = vmatprep.subr.mxu0 0.0
      %733 = vmatpush1.msra.mxu0 0.0
      %734 = vmatprep.subr.mxu0 0.0
      %735 = vmatpush1.msra.mxu0 0.0
      %736 = vmatprep.subr.mxu0 0.0
      %737 = vmatpush1.msra.mxu0 0.0
      %738 = vmatprep.subr.mxu0 0.0
      %739 = vmatpush1.msra.mxu0 0.0
      %740 = vmatprep.subr.mxu0 0.0
      %741 = vmatpush1.msra.mxu0 0.0
      %742 = vmatprep.subr.mxu0 0.0
      %743 = vmatpush1.msra.mxu0 0.0
      %744 = vmatprep.subr.mxu0 0.0
      %745 = vmatpush1.msra.mxu0 0.0
      %746 = vmatprep.subr.mxu0 0.0
      %747 = vmatpush1.msra.mxu0 0.0
      %748 = vmatprep.subr.mxu0 0.0
      %749 = vmatpush1.msra.mxu0 0.0
      %750 = vmatprep.subr.mxu0 0.0
      %751 = vmatpush1.msra.mxu0 0.0
      %752 = vmatprep.subr.mxu0 0.0
      %753 = vmatpush1.msra.mxu0 0.0
      %754 = vmatprep.subr.mxu0 0.0
      %755 = vmatpush1.msra.mxu0 0.0
      %756 = vmatprep.subr.mxu0 0.0
      %757 = vmatpush1.msra.mxu0 0.0
      %758 = vmatprep.subr.mxu0 0.0
      %759 = vmatpush1.msra.mxu0 0.0
      %760 = vmatprep.subr.mxu0 0.0
      %761 = vmatpush1.msra.mxu0 0.0
      %762 = vmatprep.subr.mxu0 0.0
      %763 = vmatpush1.msra.mxu0 0.0
      %764 = vmatprep.subr.mxu0 0.0
      %765 = vmatpush1.msra.mxu0 0.0
      %766 = vmatprep.subr.mxu0 0.0
      %767 = vmatpush1.msra.mxu0 0.0
      %768 = vmatprep.mubr.f32.mxu0 0.0
      %769 = vmatmul.mubr.f32.gmra.mrb[0].mxu0 %v678
      %v770 = vpop.f32.mrb[0].mxu0
      %v771 = vadd.f32 0.0, %v770
      %v772 = vpop.f32.mrb[0].mxu0
      %773 = vmatprep.mubr.f32.mxu0 0.0
      %774 = vmatmul.mubr.f32.gmra.mrb[0].mxu0 %v681
      %v775 = vpop.f32.mrb[0].mxu0
      %v776 = vadd.f32 0.0, %v775
      %v777 = vpop.f32.mrb[0].mxu0
      %778 = vmatprep.mubr.f32.mxu0 0.0
      %779 = vmatmul.mubr.f32.gmra.mrb[0].mxu0 %v684
      %v780 = vpop.f32.mrb[0].mxu0
      %v781 = vadd.f32 0.0, %v780
      %v782 = vpop.f32.mrb[0].mxu0
      %783 = vmatprep.mubr.f32.mxu0 0.0
      %784 = vmatmul.mubr.f32.gmra.mrb[0].mxu0 %v687
      %v785 = vpop.f32.mrb[0].mxu0
      %v786 = vadd.f32 0.0, %v785
      %v787 = vpop.f32.mrb[0].mxu0
      %788 = vmatprep.mubr.f32.mxu0 0.0
      %789 = vmatmul.mubr.f32.gmra.mrb[0].mxu0 %v690
      %v790 = vpop.f32.mrb[0].mxu0
      %v791 = vadd.f32 0.0, %v790
      %v792 = vpop.f32.mrb[0].mxu0
      %793 = vmatprep.mubr.f32.mxu0 0.0
      %794 = vmatmul.mubr.f32.gmra.mrb[0].mxu0 %v693
      %v795 = vpop.f32.mrb[0].mxu0
      %v796 = vadd.f32 0.0, %v795
      %v797 = vpop.f32.mrb[0].mxu0
      %798 = vmatprep.mubr.f32.mxu0 0.0
      %799 = vmatmul.mubr.f32.gmra.mrb[0].mxu0 %v696
      %v800 = vpop.f32.mrb[0].mxu0
      %v801 = vadd.f32 0.0, %v800
      %v802 = vpop.f32.mrb[0].mxu0
      %803 = vmatprep.mubr.f32.mxu0 0.0
      %804 = vmatmul.mubr.f32.gmra.mrb[0].mxu0 %v699
      %v805 = vpop.f32.mrb[0].mxu0
      %v806 = vadd.f32 0.0, %v805
      %v807 = vpop.f32.mrb[0].mxu0
      %808 = vdwg.mxu0
      %v809 = vadd.f32 %v669, %v771
      %v810 = vadd.f32 %v670, %v776
      %v811 = vadd.f32 %v671, %v781
      %v812 = vadd.f32 %v672, %v786
      %v813 = vadd.f32 %v673, %v791
      %v814 = vadd.f32 %v674, %v796
      %v815 = vadd.f32 %v675, %v801
      %v816 = vadd.f32 %v676, %v806
      %v817 = vmax.f32 %v809, 0.0
      %v818 = vmax.f32 %v810, 0.0
      %v819 = vmax.f32 %v811, 0.0
      %v820 = vmax.f32 %v812, 0.0
      %v821 = vmax.f32 %v813, 0.0
      %v822 = vmax.f32 %v814, 0.0
      %v823 = vmax.f32 %v815, 0.0
      %v824 = vmax.f32 %v816, 0.0
      %825 = vrot.lane.b32.xlu0 %v142, 64
      %v826 = vpop.permute.xlu0 %825
      %vm827 = vcmask 523264
      %v828 = vsel %vm827, %v826, 0
      %830 = vmatprep.subr.mxu0 0.0
      %831 = vmatpush1.msra.mxu0 %v817
      %832 = vmatprep.subr.mxu0 0.0
      %833 = vmatpush1.msra.mxu0 %v818
      %834 = vmatprep.subr.mxu0 0.0
      %835 = vmatpush1.msra.mxu0 %v819
      %836 = vmatprep.subr.mxu0 0.0
      %837 = vmatpush1.msra.mxu0 %v820
      %838 = vmatprep.subr.mxu0 0.0
      %839 = vmatpush1.msra.mxu0 %v821
      %840 = vmatprep.subr.mxu0 0.0
      %841 = vmatpush1.msra.mxu0 %v822
      %842 = vmatprep.subr.mxu0 0.0
      %843 = vmatpush1.msra.mxu0 %v823
      %844 = vmatprep.subr.mxu0 0.0
      %845 = vmatpush1.msra.mxu0 %v824
      %846 = vmatprep.subr.mxu0 0.0
      %847 = vmatpush1.msra.mxu0 0.0
      %848 = vmatprep.subr.mxu0 0.0
      %849 = vmatpush1.msra.mxu0 0.0
      %850 = vmatprep.subr.mxu0 0.0
      %851 = vmatpush1.msra.mxu0 0.0
      %852 = vmatprep.subr.mxu0 0.0
      %853 = vmatpush1.msra.mxu0 0.0
      %854 = vmatprep.subr.mxu0 0.0
      %855 = vmatpush1.msra.mxu0 0.0
      %856 = vmatprep.subr.mxu0 0.0
      %857 = vmatpush1.msra.mxu0 0.0
      %858 = vmatprep.subr.mxu0 0.0
      %859 = vmatpush1.msra.mxu0 0.0
      %860 = vmatprep.subr.mxu0 0.0
      %861 = vmatpush1.msra.mxu0 0.0
      %862 = vmatprep.subr.mxu0 0.0
      %863 = vmatpush1.msra.mxu0 0.0
      %864 = vmatprep.subr.mxu0 0.0
      %865 = vmatpush1.msra.mxu0 0.0
      %866 = vmatprep.subr.mxu0 0.0
      %867 = vmatpush1.msra.mxu0 0.0
      %868 = vmatprep.subr.mxu0 0.0
      %869 = vmatpush1.msra.mxu0 0.0
      %870 = vmatprep.subr.mxu0 0.0
      %871 = vmatpush1.msra.mxu0 0.0
      %872 = vmatprep.subr.mxu0 0.0
      %873 = vmatpush1.msra.mxu0 0.0
      %874 = vmatprep.subr.mxu0 0.0
      %875 = vmatpush1.msra.mxu0 0.0
      %876 = vmatprep.subr.mxu0 0.0
      %877 = vmatpush1.msra.mxu0 0.0
      %878 = vmatprep.subr.mxu0 0.0
      %879 = vmatpush1.msra.mxu0 0.0
      %880 = vmatprep.subr.mxu0 0.0
      %881 = vmatpush1.msra.mxu0 0.0
      %882 = vmatprep.subr.mxu0 0.0
      %883 = vmatpush1.msra.mxu0 0.0
      %884 = vmatprep.subr.mxu0 0.0
      %885 = vmatpush1.msra.mxu0 0.0
      %886 = vmatprep.subr.mxu0 0.0
      %887 = vmatpush1.msra.mxu0 0.0
      %888 = vmatprep.subr.mxu0 0.0
      %889 = vmatpush1.msra.mxu0 0.0
      %890 = vmatprep.subr.mxu0 0.0
      %891 = vmatpush1.msra.mxu0 0.0
      %892 = vmatprep.subr.mxu0 0.0
      %893 = vmatpush1.msra.mxu0 0.0
      %894 = vmatprep.mubr.f32.mxu0 0.0
      %895 = vmatmul.mubr.f32.gmra.mrb[0].mxu0 %v828
      %v896 = vpop.f32.mrb[0].mxu0
      %v897 = vadd.f32 0.0, %v896
      %v898 = vpop.f32.mrb[0].mxu0
      %899 = vdwg.mxu0
      %v901 = vsel %vm827, %v897, 0
      %903 = vmatprep.subr.mxu0 0.0
      %904 = vmatpush1.msra.mxu0 %v171
      %905 = vmatprep.subr.mxu0 0.0
      %906 = vmatpush1.msra.mxu0 %v172
      %907 = vmatprep.subr.mxu0 0.0
      %908 = vmatpush1.msra.mxu0 %v173
      %909 = vmatprep.subr.mxu0 0.0
      %910 = vmatpush1.msra.mxu0 %v174
      %911 = vmatprep.subr.mxu0 0.0
      %912 = vmatpush1.msra.mxu0 %v175
      %913 = vmatprep.subr.mxu0 0.0
      %914 = vmatpush1.msra.mxu0 %v176
      %915 = vmatprep.subr.mxu0 0.0
      %916 = vmatpush1.msra.mxu0 %v177
      %917 = vmatprep.subr.mxu0 0.0
      %918 = vmatpush1.msra.mxu0 %v178
      %919 = vmatprep.subr.mxu0 0.0
      %920 = vmatpush1.msra.mxu0 0.0
      %921 = vmatprep.subr.mxu0 0.0
      %922 = vmatpush1.msra.mxu0 0.0
      %923 = vmatprep.subr.mxu0 0.0
      %924 = vmatpush1.msra.mxu0 0.0
      %925 = vmatprep.subr.mxu0 0.0
      %926 = vmatpush1.msra.mxu0 0.0
      %927 = vmatprep.subr.mxu0 0.0
      %928 = vmatpush1.msra.mxu0 0.0
      %929 = vmatprep.subr.mxu0 0.0
      %930 = vmatpush1.msra.mxu0 0.0
      %931 = vmatprep.subr.mxu0 0.0
      %932 = vmatpush1.msra.mxu0 0.0
      %933 = vmatprep.subr.mxu0 0.0
      %934 = vmatpush1.msra.mxu0 0.0
      %935 = vmatprep.subr.mxu0 0.0
      %936 = vmatpush1.msra.mxu0 0.0
      %937 = vmatprep.subr.mxu0 0.0
      %938 = vmatpush1.msra.mxu0 0.0
      %939 = vmatprep.subr.mxu0 0.0
      %940 = vmatpush1.msra.mxu0 0.0
      %941 = vmatprep.subr.mxu0 0.0
      %942 = vmatpush1.msra.mxu0 0.0
      %943 = vmatprep.subr.mxu0 0.0
      %944 = vmatpush1.msra.mxu0 0.0
      %945 = vmatprep.subr.mxu0 0.0
      %946 = vmatpush1.msra.mxu0 0.0
      %947 = vmatprep.subr.mxu0 0.0
      %948 = vmatpush1.msra.mxu0 0.0
      %949 = vmatprep.subr.mxu0 0.0
      %950 = vmatpush1.msra.mxu0 0.0
      %951 = vmatprep.subr.mxu0 0.0
      %952 = vmatpush1.msra.mxu0 0.0
      %953 = vmatprep.subr.mxu0 0.0
      %954 = vmatpush1.msra.mxu0 0.0
      %955 = vmatprep.subr.mxu0 0.0
      %956 = vmatpush1.msra.mxu0 0.0
      %957 = vmatprep.subr.mxu0 0.0
      %958 = vmatpush1.msra.mxu0 0.0
      %959 = vmatprep.subr.mxu0 0.0
      %960 = vmatpush1.msra.mxu0 0.0
      %961 = vmatprep.subr.mxu0 0.0
      %962 = vmatpush1.msra.mxu0 0.0
      %963 = vmatprep.subr.mxu0 0.0
      %964 = vmatpush1.msra.mxu0 0.0
      %965 = vmatprep.subr.mxu0 0.0
      %966 = vmatpush1.msra.mxu0 0.0
      %967 = vmatprep.mubr.f32.mxu0 0.0
      %968 = vmatmul.mubr.f32.gmra.mrb[0].mxu0 %v901
      %v969 = vpop.f32.mrb[0].mxu0
      %v970 = vadd.f32 %v342, %v969
      %v971 = vpop.f32.mrb[0].mxu0
      %972 = vdwg.mxu0
      %v974 = vsel %vm199, %v970, 0
      %v977 = vsel %vm224, %v181, 0
      %979 = vmatprep.subr.mxu0 0.0
      %980 = vmatpush1.msra.mxu0 %v977
      %981 = vmatprep.subr.mxu0 0.0
      %982 = vmatpush1.msra.mxu0 0.0
      %983 = vmatprep.subr.mxu0 0.0
      %984 = vmatpush1.msra.mxu0 0.0
      %985 = vmatprep.subr.mxu0 0.0
      %986 = vmatpush1.msra.mxu0 0.0
      %987 = vmatprep.subr.mxu0 0.0
      %988 = vmatpush1.msra.mxu0 0.0
      %989 = vmatprep.subr.mxu0 0.0
      %990 = vmatpush1.msra.mxu0 0.0
      %991 = vmatprep.subr.mxu0 0.0
      %992 = vmatpush1.msra.mxu0 0.0
      %993 = vmatprep.subr.mxu0 0.0
      %994 = vmatpush1.msra.mxu0 0.0
      %995 = vmatprep.subr.mxu0 0.0
      %996 = vmatpush1.msra.mxu0 0.0
      %997 = vmatprep.subr.mxu0 0.0
      %998 = vmatpush1.msra.mxu0 0.0
      %999 = vmatprep.subr.mxu0 0.0
      %1000 = vmatpush1.msra.mxu0 0.0
      %1001 = vmatprep.subr.mxu0 0.0
      %1002 = vmatpush1.msra.mxu0 0.0
      %1003 = vmatprep.subr.mxu0 0.0
      %1004 = vmatpush1.msra.mxu0 0.0
      %1005 = vmatprep.subr.mxu0 0.0
      %1006 = vmatpush1.msra.mxu0 0.0
      %1007 = vmatprep.subr.mxu0 0.0
      %1008 = vmatpush1.msra.mxu0 0.0
      %1009 = vmatprep.subr.mxu0 0.0
      %1010 = vmatpush1.msra.mxu0 0.0
      %1011 = vmatprep.subr.mxu0 0.0
      %1012 = vmatpush1.msra.mxu0 0.0
      %1013 = vmatprep.subr.mxu0 0.0
      %1014 = vmatpush1.msra.mxu0 0.0
      %1015 = vmatprep.subr.mxu0 0.0
      %1016 = vmatpush1.msra.mxu0 0.0
      %1017 = vmatprep.subr.mxu0 0.0
      %1018 = vmatpush1.msra.mxu0 0.0
      %1019 = vmatprep.subr.mxu0 0.0
      %1020 = vmatpush1.msra.mxu0 0.0
      %1021 = vmatprep.subr.mxu0 0.0
      %1022 = vmatpush1.msra.mxu0 0.0
      %1023 = vmatprep.subr.mxu0 0.0
      %1024 = vmatpush1.msra.mxu0 0.0
      %1025 = vmatprep.subr.mxu0 0.0
      %1026 = vmatpush1.msra.mxu0 0.0
      %1027 = vmatprep.subr.mxu0 0.0
      %1028 = vmatpush1.msra.mxu0 0.0
      %1029 = vmatprep.subr.mxu0 0.0
      %1030 = vmatpush1.msra.mxu0 0.0
      %1031 = vmatprep.subr.mxu0 0.0
      %1032 = vmatpush1.msra.mxu0 0.0
      %1033 = vmatprep.subr.mxu0 0.0
      %1034 = vmatpush1.msra.mxu0 0.0
      %1035 = vmatprep.subr.mxu0 0.0
      %1036 = vmatpush1.msra.mxu0 0.0
      %1037 = vmatprep.subr.mxu0 0.0
      %1038 = vmatpush1.msra.mxu0 0.0
      %1039 = vmatprep.subr.mxu0 0.0
      %1040 = vmatpush1.msra.mxu0 0.0
      %1041 = vmatprep.subr.mxu0 0.0
      %1042 = vmatpush1.msra.mxu0 0.0
      %1043 = vmatprep.mubr.f32.mxu0 0.0
      %1044 = vmatmul.mubr.f32.gmra.mrb[0].mxu0 %v974
      %v1045 = vpop.f32.mrb[0].mxu0
      %v1046 = vadd.f32 0.0, %v1045
      %v1047 = vpop.f32.mrb[0].mxu0
      %1048 = vdwg.mxu0
      %v1049 = vsel %vm199, %v142, 0
      %v1052 = vsel %vm224, %v180, 0
      %1054 = vmatprep.subr.mxu0 0.0
      %1055 = vmatpush1.msra.mxu0 %v1052
      %1056 = vmatprep.subr.mxu0 0.0
      %1057 = vmatpush1.msra.mxu0 0.0
      %1058 = vmatprep.subr.mxu0 0.0
      %1059 = vmatpush1.msra.mxu0 0.0
      %1060 = vmatprep.subr.mxu0 0.0
      %1061 = vmatpush1.msra.mxu0 0.0
      %1062 = vmatprep.subr.mxu0 0.0
      %1063 = vmatpush1.msra.mxu0 0.0
      %1064 = vmatprep.subr.mxu0 0.0
      %1065 = vmatpush1.msra.mxu0 0.0
      %1066 = vmatprep.subr.mxu0 0.0
      %1067 = vmatpush1.msra.mxu0 0.0
      %1068 = vmatprep.subr.mxu0 0.0
      %1069 = vmatpush1.msra.mxu0 0.0
      %1070 = vmatprep.subr.mxu0 0.0
      %1071 = vmatpush1.msra.mxu0 0.0
      %1072 = vmatprep.subr.mxu0 0.0
      %1073 = vmatpush1.msra.mxu0 0.0
      %1074 = vmatprep.subr.mxu0 0.0
      %1075 = vmatpush1.msra.mxu0 0.0
      %1076 = vmatprep.subr.mxu0 0.0
      %1077 = vmatpush1.msra.mxu0 0.0
      %1078 = vmatprep.subr.mxu0 0.0
      %1079 = vmatpush1.msra.mxu0 0.0
      %1080 = vmatprep.subr.mxu0 0.0
      %1081 = vmatpush1.msra.mxu0 0.0
      %1082 = vmatprep.subr.mxu0 0.0
      %1083 = vmatpush1.msra.mxu0 0.0
      %1084 = vmatprep.subr.mxu0 0.0
      %1085 = vmatpush1.msra.mxu0 0.0
      %1086 = vmatprep.subr.mxu0 0.0
      %1087 = vmatpush1.msra.mxu0 0.0
      %1088 = vmatprep.subr.mxu0 0.0
      %1089 = vmatpush1.msra.mxu0 0.0
      %1090 = vmatprep.subr.mxu0 0.0
      %1091 = vmatpush1.msra.mxu0 0.0
      %1092 = vmatprep.subr.mxu0 0.0
      %1093 = vmatpush1.msra.mxu0 0.0
      %1094 = vmatprep.subr.mxu0 0.0
      %1095 = vmatpush1.msra.mxu0 0.0
      %1096 = vmatprep.subr.mxu0 0.0
      %1097 = vmatpush1.msra.mxu0 0.0
      %1098 = vmatprep.subr.mxu0 0.0
      %1099 = vmatpush1.msra.mxu0 0.0
      %1100 = vmatprep.subr.mxu0 0.0
      %1101 = vmatpush1.msra.mxu0 0.0
      %1102 = vmatprep.subr.mxu0 0.0
      %1103 = vmatpush1.msra.mxu0 0.0
      %1104 = vmatprep.subr.mxu0 0.0
      %1105 = vmatpush1.msra.mxu0 0.0
      %1106 = vmatprep.subr.mxu0 0.0
      %1107 = vmatpush1.msra.mxu0 0.0
      %1108 = vmatprep.subr.mxu0 0.0
      %1109 = vmatpush1.msra.mxu0 0.0
      %1110 = vmatprep.subr.mxu0 0.0
      %1111 = vmatpush1.msra.mxu0 0.0
      %1112 = vmatprep.subr.mxu0 0.0
      %1113 = vmatpush1.msra.mxu0 0.0
      %1114 = vmatprep.subr.mxu0 0.0
      %1115 = vmatpush1.msra.mxu0 0.0
      %1116 = vmatprep.subr.mxu0 0.0
      %1117 = vmatpush1.msra.mxu0 0.0
      %1118 = vmatprep.mubr.f32.mxu0 0.0
      %1119 = vmatmul.mubr.f32.gmra.mrb[0].mxu0 %v1049
      %v1120 = vpop.f32.mrb[0].mxu0
      %v1121 = vadd.f32 %v1046, %v1120
      %v1122 = vpop.f32.mrb[0].mxu0
      %1123 = vdwg.mxu0
      %v1124 = vlaneseq
      %v1125 = vshrl.u32 %v1124, 7
      %v1126 = vsub.s32 0, %v1125
      %v1127 = vrot.slane %v182, %v1126
      %v1128 = vadd.f32 %v1121, %v1127
      %v1129 = vmax.f32 %v1128, 0.0
      %v1130 = vlaneseq
      %v1131 = vshrl.u32 %v1130, 7
      %v1132 = vsub.s32 0, %v1131
      %v1133 = vrot.slane %v187, %v1132
      %vm1134 = vcmask 261120
      %v1136 = vsel %vm1134, %v1129, 0
      %1138 = vmatprep.subr.mxu0 0.0
      %1139 = vmatpush1.msra.mxu0 %v183
      %1140 = vmatprep.subr.mxu0 0.0
      %1141 = vmatpush1.msra.mxu0 %v184
      %1142 = vmatprep.subr.mxu0 0.0
      %1143 = vmatpush1.msra.mxu0 %v185
      %1144 = vmatprep.subr.mxu0 0.0
      %1145 = vmatpush1.msra.mxu0 %v186
      %1146 = vmatprep.subr.mxu0 0.0
      %1147 = vmatpush1.msra.mxu0 0.0
      %1148 = vmatprep.subr.mxu0 0.0
      %1149 = vmatpush1.msra.mxu0 0.0
      %1150 = vmatprep.subr.mxu0 0.0
      %1151 = vmatpush1.msra.mxu0 0.0
      %1152 = vmatprep.subr.mxu0 0.0
      %1153 = vmatpush1.msra.mxu0 0.0
      %1154 = vmatprep.subr.mxu0 0.0
      %1155 = vmatpush1.msra.mxu0 0.0
      %1156 = vmatprep.subr.mxu0 0.0
      %1157 = vmatpush1.msra.mxu0 0.0
      %1158 = vmatprep.subr.mxu0 0.0
      %1159 = vmatpush1.msra.mxu0 0.0
      %1160 = vmatprep.subr.mxu0 0.0
      %1161 = vmatpush1.msra.mxu0 0.0
      %1162 = vmatprep.subr.mxu0 0.0
      %1163 = vmatpush1.msra.mxu0 0.0
      %1164 = vmatprep.subr.mxu0 0.0
      %1165 = vmatpush1.msra.mxu0 0.0
      %1166 = vmatprep.subr.mxu0 0.0
      %1167 = vmatpush1.msra.mxu0 0.0
      %1168 = vmatprep.subr.mxu0 0.0
      %1169 = vmatpush1.msra.mxu0 0.0
      %1170 = vmatprep.subr.mxu0 0.0
      %1171 = vmatpush1.msra.mxu0 0.0
      %1172 = vmatprep.subr.mxu0 0.0
      %1173 = vmatpush1.msra.mxu0 0.0
      %1174 = vmatprep.subr.mxu0 0.0
      %1175 = vmatpush1.msra.mxu0 0.0
      %1176 = vmatprep.subr.mxu0 0.0
      %1177 = vmatpush1.msra.mxu0 0.0
      %1178 = vmatprep.subr.mxu0 0.0
      %1179 = vmatpush1.msra.mxu0 0.0
      %1180 = vmatprep.subr.mxu0 0.0
      %1181 = vmatpush1.msra.mxu0 0.0
      %1182 = vmatprep.subr.mxu0 0.0
      %1183 = vmatpush1.msra.mxu0 0.0
      %1184 = vmatprep.subr.mxu0 0.0
      %1185 = vmatpush1.msra.mxu0 0.0
      %1186 = vmatprep.subr.mxu0 0.0
      %1187 = vmatpush1.msra.mxu0 0.0
      %1188 = vmatprep.subr.mxu0 0.0
      %1189 = vmatpush1.msra.mxu0 0.0
      %1190 = vmatprep.subr.mxu0 0.0
      %1191 = vmatpush1.msra.mxu0 0.0
      %1192 = vmatprep.subr.mxu0 0.0
      %1193 = vmatpush1.msra.mxu0 0.0
      %1194 = vmatprep.subr.mxu0 0.0
      %1195 = vmatpush1.msra.mxu0 0.0
      %1196 = vmatprep.subr.mxu0 0.0
      %1197 = vmatpush1.msra.mxu0 0.0
      %1198 = vmatprep.subr.mxu0 0.0
      %1199 = vmatpush1.msra.mxu0 0.0
      %1200 = vmatprep.subr.mxu0 0.0
      %1201 = vmatpush1.msra.mxu0 0.0
      %1202 = vmatprep.mubr.f32.mxu0 0.0
      %1203 = vmatmul.mubr.f32.gmra.mrb[0].mxu0 %v1136
      %v1204 = vpop.f32.mrb[0].mxu0
      %v1205 = vadd.f32 %v1133, %v1204
      %v1206 = vpop.f32.mrb[0].mxu0
      %1207 = vdwg.mxu0
      %1208 = vmatprep.subr.mxu0 0.0
      %1209 = vmatpush1.msra.mxu0 %v1205
      %1210 = vmatprep.subr.mxu0 0.0
      %1211 = vmatpush1.msra.mxu0 0.0
      %1212 = vmatprep.subr.mxu0 0.0
      %1213 = vmatpush1.msra.mxu0 0.0
      %1214 = vmatprep.subr.mxu0 0.0
      %1215 = vmatpush1.msra.mxu0 0.0
      %1216 = vmatprep.subr.mxu0 0.0
      %1217 = vmatpush1.msra.mxu0 0.0
      %1218 = vmatprep.subr.mxu0 0.0
      %1219 = vmatpush1.msra.mxu0 0.0
      %1220 = vmatprep.subr.mxu0 0.0
      %1221 = vmatpush1.msra.mxu0 0.0
      %1222 = vmatprep.subr.mxu0 0.0
      %1223 = vmatpush1.msra.mxu0 0.0
      %1224 = vmatprep.subr.mxu0 0.0
      %1225 = vmatpush1.msra.mxu0 0.0
      %1226 = vmatprep.subr.mxu0 0.0
      %1227 = vmatpush1.msra.mxu0 0.0
      %1228 = vmatprep.subr.mxu0 0.0
      %1229 = vmatpush1.msra.mxu0 0.0
      %1230 = vmatprep.subr.mxu0 0.0
      %1231 = vmatpush1.msra.mxu0 0.0
      %1232 = vmatprep.subr.mxu0 0.0
      %1233 = vmatpush1.msra.mxu0 0.0
      %1234 = vmatprep.subr.mxu0 0.0
      %1235 = vmatpush1.msra.mxu0 0.0
      %1236 = vmatprep.subr.mxu0 0.0
      %1237 = vmatpush1.msra.mxu0 0.0
      %1238 = vmatprep.subr.mxu0 0.0
      %1239 = vmatpush1.msra.mxu0 0.0
      %1240 = vmatprep.subr.mxu0 0.0
      %1241 = vmatpush1.msra.mxu0 0.0
      %1242 = vmatprep.subr.mxu0 0.0
      %1243 = vmatpush1.msra.mxu0 0.0
      %1244 = vmatprep.subr.mxu0 0.0
      %1245 = vmatpush1.msra.mxu0 0.0
      %1246 = vmatprep.subr.mxu0 0.0
      %1247 = vmatpush1.msra.mxu0 0.0
      %1248 = vmatprep.subr.mxu0 0.0
      %1249 = vmatpush1.msra.mxu0 0.0
      %1250 = vmatprep.subr.mxu0 0.0
      %1251 = vmatpush1.msra.mxu0 0.0
      %1252 = vmatprep.subr.mxu0 0.0
      %1253 = vmatpush1.msra.mxu0 0.0
      %1254 = vmatprep.subr.mxu0 0.0
      %1255 = vmatpush1.msra.mxu0 0.0
      %1256 = vmatprep.subr.mxu0 0.0
      %1257 = vmatpush1.msra.mxu0 0.0
      %1258 = vmatprep.subr.mxu0 0.0
      %1259 = vmatpush1.msra.mxu0 0.0
      %1260 = vmatprep.subr.mxu0 0.0
      %1261 = vmatpush1.msra.mxu0 0.0
      %1262 = vmatprep.subr.mxu0 0.0
      %1263 = vmatpush1.msra.mxu0 0.0
      %1264 = vmatprep.subr.mxu0 0.0
      %1265 = vmatpush1.msra.mxu0 0.0
      %1266 = vmatprep.subr.mxu0 0.0
      %1267 = vmatpush1.msra.mxu0 0.0
      %1268 = vmatprep.subr.mxu0 0.0
      %1269 = vmatpush1.msra.mxu0 0.0
      %1270 = vmatprep.subr.mxu0 0.0
      %1271 = vmatpush1.msra.mxu0 0.0
      %1272 = vmatprep.mubr.f32.mxu0 0.0
      %1273 = vmatmul.mubr.f32.gmra.mrb[0].mxu0 %v345
      %v1274 = vpop.f32.mrb[0].mxu0
      %v1275 = vadd.f32 0.0, %v1274
      %v1276 = vpop.f32.mrb[0].mxu0
      %1277 = vmatprep.mubr.f32.mxu0 0.0
      %1278 = vmatmul.mubr.f32.gmra.mrb[0].mxu0 %v348
      %v1279 = vpop.f32.mrb[0].mxu0
      %v1280 = vadd.f32 0.0, %v1279
      %v1281 = vpop.f32.mrb[0].mxu0
      %1282 = vmatprep.mubr.f32.mxu0 0.0
      %1283 = vmatmul.mubr.f32.gmra.mrb[0].mxu0 %v351
      %v1284 = vpop.f32.mrb[0].mxu0
      %v1285 = vadd.f32 0.0, %v1284
      %v1286 = vpop.f32.mrb[0].mxu0
      %1287 = vmatprep.mubr.f32.mxu0 0.0
      %1288 = vmatmul.mubr.f32.gmra.mrb[0].mxu0 %v354
      %v1289 = vpop.f32.mrb[0].mxu0
      %v1290 = vadd.f32 0.0, %v1289
      %v1291 = vpop.f32.mrb[0].mxu0
      %1292 = vmatprep.mubr.f32.mxu0 0.0
      %1293 = vmatmul.mubr.f32.gmra.mrb[0].mxu0 %v357
      %v1294 = vpop.f32.mrb[0].mxu0
      %v1295 = vadd.f32 0.0, %v1294
      %v1296 = vpop.f32.mrb[0].mxu0
      %1297 = vmatprep.mubr.f32.mxu0 0.0
      %1298 = vmatmul.mubr.f32.gmra.mrb[0].mxu0 %v360
      %v1299 = vpop.f32.mrb[0].mxu0
      %v1300 = vadd.f32 0.0, %v1299
      %v1301 = vpop.f32.mrb[0].mxu0
      %1302 = vmatprep.mubr.f32.mxu0 0.0
      %1303 = vmatmul.mubr.f32.gmra.mrb[0].mxu0 %v363
      %v1304 = vpop.f32.mrb[0].mxu0
      %v1305 = vadd.f32 0.0, %v1304
      %v1306 = vpop.f32.mrb[0].mxu0
      %1307 = vmatprep.mubr.f32.mxu0 0.0
      %1308 = vmatmul.mubr.f32.gmra.mrb[0].mxu0 %v366
      %v1309 = vpop.f32.mrb[0].mxu0
      %v1310 = vadd.f32 0.0, %v1309
      %v1311 = vpop.f32.mrb[0].mxu0
      %1312 = vmatprep.mubr.f32.mxu0 0.0
      %1313 = vmatmul.mubr.f32.gmra.mrb[0].mxu0 %v369
      %v1314 = vpop.f32.mrb[0].mxu0
      %v1315 = vadd.f32 0.0, %v1314
      %v1316 = vpop.f32.mrb[0].mxu0
      %1317 = vmatprep.mubr.f32.mxu0 0.0
      %1318 = vmatmul.mubr.f32.gmra.mrb[0].mxu0 %v372
      %v1319 = vpop.f32.mrb[0].mxu0
      %v1320 = vadd.f32 0.0, %v1319
      %v1321 = vpop.f32.mrb[0].mxu0
      %1322 = vmatprep.mubr.f32.mxu0 0.0
      %1323 = vmatmul.mubr.f32.gmra.mrb[0].mxu0 %v375
      %v1324 = vpop.f32.mrb[0].mxu0
      %v1325 = vadd.f32 0.0, %v1324
      %v1326 = vpop.f32.mrb[0].mxu0
      %1327 = vmatprep.mubr.f32.mxu0 0.0
      %1328 = vmatmul.mubr.f32.gmra.mrb[0].mxu0 %v378
      %v1329 = vpop.f32.mrb[0].mxu0
      %v1330 = vadd.f32 0.0, %v1329
      %v1331 = vpop.f32.mrb[0].mxu0
      %1332 = vmatprep.mubr.f32.mxu0 0.0
      %1333 = vmatmul.mubr.f32.gmra.mrb[0].mxu0 %v381
      %v1334 = vpop.f32.mrb[0].mxu0
      %v1335 = vadd.f32 0.0, %v1334
      %v1336 = vpop.f32.mrb[0].mxu0
      %1337 = vmatprep.mubr.f32.mxu0 0.0
      %1338 = vmatmul.mubr.f32.gmra.mrb[0].mxu0 %v384
      %v1339 = vpop.f32.mrb[0].mxu0
      %v1340 = vadd.f32 0.0, %v1339
      %v1341 = vpop.f32.mrb[0].mxu0
      %1342 = vmatprep.mubr.f32.mxu0 0.0
      %1343 = vmatmul.mubr.f32.gmra.mrb[0].mxu0 %v387
      %v1344 = vpop.f32.mrb[0].mxu0
      %v1345 = vadd.f32 0.0, %v1344
      %v1346 = vpop.f32.mrb[0].mxu0
      %1347 = vmatprep.mubr.f32.mxu0 0.0
      %1348 = vmatmul.mubr.f32.gmra.mrb[0].mxu0 %v390
      %v1349 = vpop.f32.mrb[0].mxu0
      %v1350 = vadd.f32 0.0, %v1349
      %v1351 = vpop.f32.mrb[0].mxu0
      %1352 = vdwg.mxu0
      %v1354 = vsel %vm199, %v1275, 0
      %v1357 = vsel %vm199, %v1280, 0
      %v1360 = vsel %vm199, %v1285, 0
      %v1363 = vsel %vm199, %v1290, 0
      %v1366 = vsel %vm199, %v1295, 0
      %v1369 = vsel %vm199, %v1300, 0
      %v1372 = vsel %vm199, %v1305, 0
      %v1375 = vsel %vm199, %v1310, 0
      %1377 = vmatprep.subr.mxu0 0.0
      %1378 = vmatpush1.msra.mxu0 %v562
      %1379 = vmatprep.subr.mxu0 0.0
      %1380 = vmatpush1.msra.mxu0 0.0
      %1381 = vmatprep.subr.mxu0 0.0
      %1382 = vmatpush1.msra.mxu0 0.0
      %1383 = vmatprep.subr.mxu0 0.0
      %1384 = vmatpush1.msra.mxu0 0.0
      %1385 = vmatprep.subr.mxu0 0.0
      %1386 = vmatpush1.msra.mxu0 0.0
      %1387 = vmatprep.subr.mxu0 0.0
      %1388 = vmatpush1.msra.mxu0 0.0
      %1389 = vmatprep.subr.mxu0 0.0
      %1390 = vmatpush1.msra.mxu0 0.0
      %1391 = vmatprep.subr.mxu0 0.0
      %1392 = vmatpush1.msra.mxu0 0.0
      %1393 = vmatprep.subr.mxu0 0.0
      %1394 = vmatpush1.msra.mxu0 0.0
      %1395 = vmatprep.subr.mxu0 0.0
      %1396 = vmatpush1.msra.mxu0 0.0
      %1397 = vmatprep.subr.mxu0 0.0
      %1398 = vmatpush1.msra.mxu0 0.0
      %1399 = vmatprep.subr.mxu0 0.0
      %1400 = vmatpush1.msra.mxu0 0.0
      %1401 = vmatprep.subr.mxu0 0.0
      %1402 = vmatpush1.msra.mxu0 0.0
      %1403 = vmatprep.subr.mxu0 0.0
      %1404 = vmatpush1.msra.mxu0 0.0
      %1405 = vmatprep.subr.mxu0 0.0
      %1406 = vmatpush1.msra.mxu0 0.0
      %1407 = vmatprep.subr.mxu0 0.0
      %1408 = vmatpush1.msra.mxu0 0.0
      %1409 = vmatprep.subr.mxu0 0.0
      %1410 = vmatpush1.msra.mxu0 0.0
      %1411 = vmatprep.subr.mxu0 0.0
      %1412 = vmatpush1.msra.mxu0 0.0
      %1413 = vmatprep.subr.mxu0 0.0
      %1414 = vmatpush1.msra.mxu0 0.0
      %1415 = vmatprep.subr.mxu0 0.0
      %1416 = vmatpush1.msra.mxu0 0.0
      %1417 = vmatprep.subr.mxu0 0.0
      %1418 = vmatpush1.msra.mxu0 0.0
      %1419 = vmatprep.subr.mxu0 0.0
      %1420 = vmatpush1.msra.mxu0 0.0
      %1421 = vmatprep.subr.mxu0 0.0
      %1422 = vmatpush1.msra.mxu0 0.0
      %1423 = vmatprep.subr.mxu0 0.0
      %1424 = vmatpush1.msra.mxu0 0.0
      %1425 = vmatprep.subr.mxu0 0.0
      %1426 = vmatpush1.msra.mxu0 0.0
      %1427 = vmatprep.subr.mxu0 0.0
      %1428 = vmatpush1.msra.mxu0 0.0
      %1429 = vmatprep.subr.mxu0 0.0
      %1430 = vmatpush1.msra.mxu0 0.0
      %1431 = vmatprep.subr.mxu0 0.0
      %1432 = vmatpush1.msra.mxu0 0.0
      %1433 = vmatprep.subr.mxu0 0.0
      %1434 = vmatpush1.msra.mxu0 0.0
      %1435 = vmatprep.subr.mxu0 0.0
      %1436 = vmatpush1.msra.mxu0 0.0
      %1437 = vmatprep.subr.mxu0 0.0
      %1438 = vmatpush1.msra.mxu0 0.0
      %1439 = vmatprep.subr.mxu0 0.0
      %1440 = vmatpush1.msra.mxu0 0.0
      %1441 = vmatprep.mubr.f32.mxu0 0.0
      %1442 = vmatmul.mubr.f32.gmra.mrb[0].mxu0 %v1354
      %v1443 = vpop.f32.mrb[0].mxu0
      %v1444 = vadd.f32 0.0, %v1443
      %v1445 = vpop.f32.mrb[0].mxu0
      %1446 = vmatprep.mubr.f32.mxu0 0.0
      %1447 = vmatmul.mubr.f32.gmra.mrb[0].mxu0 %v1357
      %v1448 = vpop.f32.mrb[0].mxu0
      %v1449 = vadd.f32 0.0, %v1448
      %v1450 = vpop.f32.mrb[0].mxu0
      %1451 = vmatprep.mubr.f32.mxu0 0.0
      %1452 = vmatmul.mubr.f32.gmra.mrb[0].mxu0 %v1360
      %v1453 = vpop.f32.mrb[0].mxu0
      %v1454 = vadd.f32 0.0, %v1453
      %v1455 = vpop.f32.mrb[0].mxu0
      %1456 = vmatprep.mubr.f32.mxu0 0.0
      %1457 = vmatmul.mubr.f32.gmra.mrb[0].mxu0 %v1363
      %v1458 = vpop.f32.mrb[0].mxu0
      %v1459 = vadd.f32 0.0, %v1458
      %v1460 = vpop.f32.mrb[0].mxu0
      %1461 = vmatprep.mubr.f32.mxu0 0.0
      %1462 = vmatmul.mubr.f32.gmra.mrb[0].mxu0 %v1366
      %v1463 = vpop.f32.mrb[0].mxu0
      %v1464 = vadd.f32 0.0, %v1463
      %v1465 = vpop.f32.mrb[0].mxu0
      %1466 = vmatprep.mubr.f32.mxu0 0.0
      %1467 = vmatmul.mubr.f32.gmra.mrb[0].mxu0 %v1369
      %v1468 = vpop.f32.mrb[0].mxu0
      %v1469 = vadd.f32 0.0, %v1468
      %v1470 = vpop.f32.mrb[0].mxu0
      %1471 = vmatprep.mubr.f32.mxu0 0.0
      %1472 = vmatmul.mubr.f32.gmra.mrb[0].mxu0 %v1372
      %v1473 = vpop.f32.mrb[0].mxu0
      %v1474 = vadd.f32 0.0, %v1473
      %v1475 = vpop.f32.mrb[0].mxu0
      %1476 = vmatprep.mubr.f32.mxu0 0.0
      %1477 = vmatmul.mubr.f32.gmra.mrb[0].mxu0 %v1375
      %v1478 = vpop.f32.mrb[0].mxu0
      %v1479 = vadd.f32 0.0, %v1478
      %v1480 = vpop.f32.mrb[0].mxu0
      %1481 = vdwg.mxu0
      %v1482 = vadd.f32 %v295, %v1444
      %v1483 = vadd.f32 %v300, %v1449
      %v1484 = vadd.f32 %v305, %v1454
      %v1485 = vadd.f32 %v310, %v1459
      %v1486 = vadd.f32 %v315, %v1464
      %v1487 = vadd.f32 %v320, %v1469
      %v1488 = vadd.f32 %v325, %v1474
      %v1489 = vadd.f32 %v330, %v1479
      %v1491 = vsel %vm199, %v1315, 0
      %v1494 = vsel %vm199, %v1320, 0
      %v1497 = vsel %vm199, %v1325, 0
      %v1500 = vsel %vm199, %v1330, 0
      %v1503 = vsel %vm199, %v1335, 0
      %v1506 = vsel %vm199, %v1340, 0
      %v1509 = vsel %vm199, %v1345, 0
      %v1512 = vsel %vm199, %v1350, 0
      %1514 = vmatprep.subr.mxu0 0.0
      %1515 = vmatpush1.msra.mxu0 %v702
      %1516 = vmatprep.subr.mxu0 0.0
      %1517 = vmatpush1.msra.mxu0 0.0
      %1518 = vmatprep.subr.mxu0 0.0
      %1519 = vmatpush1.msra.mxu0 0.0
      %1520 = vmatprep.subr.mxu0 0.0
      %1521 = vmatpush1.msra.mxu0 0.0
      %1522 = vmatprep.subr.mxu0 0.0
      %1523 = vmatpush1.msra.mxu0 0.0
      %1524 = vmatprep.subr.mxu0 0.0
      %1525 = vmatpush1.msra.mxu0 0.0
      %1526 = vmatprep.subr.mxu0 0.0
      %1527 = vmatpush1.msra.mxu0 0.0
      %1528 = vmatprep.subr.mxu0 0.0
      %1529 = vmatpush1.msra.mxu0 0.0
      %1530 = vmatprep.subr.mxu0 0.0
      %1531 = vmatpush1.msra.mxu0 0.0
      %1532 = vmatprep.subr.mxu0 0.0
      %1533 = vmatpush1.msra.mxu0 0.0
      %1534 = vmatprep.subr.mxu0 0.0
      %1535 = vmatpush1.msra.mxu0 0.0
      %1536 = vmatprep.subr.mxu0 0.0
      %1537 = vmatpush1.msra.mxu0 0.0
      %1538 = vmatprep.subr.mxu0 0.0
      %1539 = vmatpush1.msra.mxu0 0.0
      %1540 = vmatprep.subr.mxu0 0.0
      %1541 = vmatpush1.msra.mxu0 0.0
      %1542 = vmatprep.subr.mxu0 0.0
      %1543 = vmatpush1.msra.mxu0 0.0
      %1544 = vmatprep.subr.mxu0 0.0
      %1545 = vmatpush1.msra.mxu0 0.0
      %1546 = vmatprep.subr.mxu0 0.0
      %1547 = vmatpush1.msra.mxu0 0.0
      %1548 = vmatprep.subr.mxu0 0.0
      %1549 = vmatpush1.msra.mxu0 0.0
      %1550 = vmatprep.subr.mxu0 0.0
      %1551 = vmatpush1.msra.mxu0 0.0
      %1552 = vmatprep.subr.mxu0 0.0
      %1553 = vmatpush1.msra.mxu0 0.0
      %1554 = vmatprep.subr.mxu0 0.0
      %1555 = vmatpush1.msra.mxu0 0.0
      %1556 = vmatprep.subr.mxu0 0.0
      %1557 = vmatpush1.msra.mxu0 0.0
      %1558 = vmatprep.subr.mxu0 0.0
      %1559 = vmatpush1.msra.mxu0 0.0
      %1560 = vmatprep.subr.mxu0 0.0
      %1561 = vmatpush1.msra.mxu0 0.0
      %1562 = vmatprep.subr.mxu0 0.0
      %1563 = vmatpush1.msra.mxu0 0.0
      %1564 = vmatprep.subr.mxu0 0.0
      %1565 = vmatpush1.msra.mxu0 0.0
      %1566 = vmatprep.subr.mxu0 0.0
      %1567 = vmatpush1.msra.mxu0 0.0
      %1568 = vmatprep.subr.mxu0 0.0
      %1569 = vmatpush1.msra.mxu0 0.0
      %1570 = vmatprep.subr.mxu0 0.0
      %1571 = vmatpush1.msra.mxu0 0.0
      %1572 = vmatprep.subr.mxu0 0.0
      %1573 = vmatpush1.msra.mxu0 0.0
      %1574 = vmatprep.subr.mxu0 0.0
      %1575 = vmatpush1.msra.mxu0 0.0
      %1576 = vmatprep.subr.mxu0 0.0
      %1577 = vmatpush1.msra.mxu0 0.0
      %1578 = vmatprep.mubr.f32.mxu0 0.0
      %1579 = vmatmul.mubr.f32.gmra.mrb[0].mxu0 %v1491
      %v1580 = vpop.f32.mrb[0].mxu0
      %v1581 = vadd.f32 0.0, %v1580
      %v1582 = vpop.f32.mrb[0].mxu0
      %1583 = vmatprep.mubr.f32.mxu0 0.0
      %1584 = vmatmul.mubr.f32.gmra.mrb[0].mxu0 %v1494
      %v1585 = vpop.f32.mrb[0].mxu0
      %v1586 = vadd.f32 0.0, %v1585
      %v1587 = vpop.f32.mrb[0].mxu0
      %1588 = vmatprep.mubr.f32.mxu0 0.0
      %1589 = vmatmul.mubr.f32.gmra.mrb[0].mxu0 %v1497
      %v1590 = vpop.f32.mrb[0].mxu0
      %v1591 = vadd.f32 0.0, %v1590
      %v1592 = vpop.f32.mrb[0].mxu0
      %1593 = vmatprep.mubr.f32.mxu0 0.0
      %1594 = vmatmul.mubr.f32.gmra.mrb[0].mxu0 %v1500
      %v1595 = vpop.f32.mrb[0].mxu0
      %v1596 = vadd.f32 0.0, %v1595
      %v1597 = vpop.f32.mrb[0].mxu0
      %1598 = vmatprep.mubr.f32.mxu0 0.0
      %1599 = vmatmul.mubr.f32.gmra.mrb[0].mxu0 %v1503
      %v1600 = vpop.f32.mrb[0].mxu0
      %v1601 = vadd.f32 0.0, %v1600
      %v1602 = vpop.f32.mrb[0].mxu0
      %1603 = vmatprep.mubr.f32.mxu0 0.0
      %1604 = vmatmul.mubr.f32.gmra.mrb[0].mxu0 %v1506
      %v1605 = vpop.f32.mrb[0].mxu0
      %v1606 = vadd.f32 0.0, %v1605
      %v1607 = vpop.f32.mrb[0].mxu0
      %1608 = vmatprep.mubr.f32.mxu0 0.0
      %1609 = vmatmul.mubr.f32.gmra.mrb[0].mxu0 %v1509
      %v1610 = vpop.f32.mrb[0].mxu0
      %v1611 = vadd.f32 0.0, %v1610
      %v1612 = vpop.f32.mrb[0].mxu0
      %1613 = vmatprep.mubr.f32.mxu0 0.0
      %1614 = vmatmul.mubr.f32.gmra.mrb[0].mxu0 %v1512
      %v1615 = vpop.f32.mrb[0].mxu0
      %v1616 = vadd.f32 0.0, %v1615
      %v1617 = vpop.f32.mrb[0].mxu0
      %1618 = vdwg.mxu0
      %v1619 = vadd.f32 %v1482, %v1581
      %v1620 = vadd.f32 %v1483, %v1586
      %v1621 = vadd.f32 %v1484, %v1591
      %v1622 = vadd.f32 %v1485, %v1596
      %v1623 = vadd.f32 %v1486, %v1601
      %v1624 = vadd.f32 %v1487, %v1606
      %v1625 = vadd.f32 %v1488, %v1611
      %v1626 = vadd.f32 %v1489, %v1616
      %v1627 = vmax.f32 %v1619, 0.0
      %v1628 = vmax.f32 %v1620, 0.0
      %v1629 = vmax.f32 %v1621, 0.0
      %v1630 = vmax.f32 %v1622, 0.0
      %v1631 = vmax.f32 %v1623, 0.0
      %v1632 = vmax.f32 %v1624, 0.0
      %v1633 = vmax.f32 %v1625, 0.0
      %v1634 = vmax.f32 %v1626, 0.0
      %1635 = vmatprep.subr.mxu0 0.0
      %1636 = vmatpush1.msra.mxu0 %v1627
      %1637 = vmatprep.subr.mxu0 0.0
      %1638 = vmatpush1.msra.mxu0 %v1628
      %1639 = vmatprep.subr.mxu0 0.0
      %1640 = vmatpush1.msra.mxu0 %v1629
      %1641 = vmatprep.subr.mxu0 0.0
      %1642 = vmatpush1.msra.mxu0 %v1630
      %1643 = vmatprep.subr.mxu0 0.0
      %1644 = vmatpush1.msra.mxu0 %v1631
      %1645 = vmatprep.subr.mxu0 0.0
      %1646 = vmatpush1.msra.mxu0 %v1632
      %1647 = vmatprep.subr.mxu0 0.0
      %1648 = vmatpush1.msra.mxu0 %v1633
      %1649 = vmatprep.subr.mxu0 0.0
      %1650 = vmatpush1.msra.mxu0 %v1634
      %1651 = vmatprep.subr.mxu0 0.0
      %1652 = vmatpush1.msra.mxu0 0.0
      %1653 = vmatprep.subr.mxu0 0.0
      %1654 = vmatpush1.msra.mxu0 0.0
      %1655 = vmatprep.subr.mxu0 0.0
      %1656 = vmatpush1.msra.mxu0 0.0
      %1657 = vmatprep.subr.mxu0 0.0
      %1658 = vmatpush1.msra.mxu0 0.0
      %1659 = vmatprep.subr.mxu0 0.0
      %1660 = vmatpush1.msra.mxu0 0.0
      %1661 = vmatprep.subr.mxu0 0.0
      %1662 = vmatpush1.msra.mxu0 0.0
      %1663 = vmatprep.subr.mxu0 0.0
      %1664 = vmatpush1.msra.mxu0 0.0
      %1665 = vmatprep.subr.mxu0 0.0
      %1666 = vmatpush1.msra.mxu0 0.0
      %1667 = vmatprep.subr.mxu0 0.0
      %1668 = vmatpush1.msra.mxu0 0.0
      %1669 = vmatprep.subr.mxu0 0.0
      %1670 = vmatpush1.msra.mxu0 0.0
      %1671 = vmatprep.subr.mxu0 0.0
      %1672 = vmatpush1.msra.mxu0 0.0
      %1673 = vmatprep.subr.mxu0 0.0
      %1674 = vmatpush1.msra.mxu0 0.0
      %1675 = vmatprep.subr.mxu0 0.0
      %1676 = vmatpush1.msra.mxu0 0.0
      %1677 = vmatprep.subr.mxu0 0.0
      %1678 = vmatpush1.msra.mxu0 0.0
      %1679 = vmatprep.subr.mxu0 0.0
      %1680 = vmatpush1.msra.mxu0 0.0
      %1681 = vmatprep.subr.mxu0 0.0
      %1682 = vmatpush1.msra.mxu0 0.0
      %1683 = vmatprep.subr.mxu0 0.0
      %1684 = vmatpush1.msra.mxu0 0.0
      %1685 = vmatprep.subr.mxu0 0.0
      %1686 = vmatpush1.msra.mxu0 0.0
      %1687 = vmatprep.subr.mxu0 0.0
      %1688 = vmatpush1.msra.mxu0 0.0
      %1689 = vmatprep.subr.mxu0 0.0
      %1690 = vmatpush1.msra.mxu0 0.0
      %1691 = vmatprep.subr.mxu0 0.0
      %1692 = vmatpush1.msra.mxu0 0.0
      %1693 = vmatprep.subr.mxu0 0.0
      %1694 = vmatpush1.msra.mxu0 0.0
      %1695 = vmatprep.subr.mxu0 0.0
      %1696 = vmatpush1.msra.mxu0 0.0
      %1697 = vmatprep.subr.mxu0 0.0
      %1698 = vmatpush1.msra.mxu0 0.0
      %1699 = vmatprep.mubr.f32.mxu0 0.0
      %1700 = vmatmul.mubr.f32.gmra.mrb[0].mxu0 %v828
      %v1701 = vpop.f32.mrb[0].mxu0
      %v1702 = vadd.f32 0.0, %v1701
      %v1703 = vpop.f32.mrb[0].mxu0
      %1704 = vdwg.mxu0
      %v1706 = vsel %vm827, %v1702, 0
      %1708 = vmatprep.subr.mxu0 0.0
      %1709 = vmatpush1.msra.mxu0 %v171
      %1710 = vmatprep.subr.mxu0 0.0
      %1711 = vmatpush1.msra.mxu0 %v172
      %1712 = vmatprep.subr.mxu0 0.0
      %1713 = vmatpush1.msra.mxu0 %v173
      %1714 = vmatprep.subr.mxu0 0.0
      %1715 = vmatpush1.msra.mxu0 %v174
      %1716 = vmatprep.subr.mxu0 0.0
      %1717 = vmatpush1.msra.mxu0 %v175
      %1718 = vmatprep.subr.mxu0 0.0
      %1719 = vmatpush1.msra.mxu0 %v176
      %1720 = vmatprep.subr.mxu0 0.0
      %1721 = vmatpush1.msra.mxu0 %v177
      %1722 = vmatprep.subr.mxu0 0.0
      %1723 = vmatpush1.msra.mxu0 %v178
      %1724 = vmatprep.subr.mxu0 0.0
      %1725 = vmatpush1.msra.mxu0 0.0
      %1726 = vmatprep.subr.mxu0 0.0
      %1727 = vmatpush1.msra.mxu0 0.0
      %1728 = vmatprep.subr.mxu0 0.0
      %1729 = vmatpush1.msra.mxu0 0.0
      %1730 = vmatprep.subr.mxu0 0.0
      %1731 = vmatpush1.msra.mxu0 0.0
      %1732 = vmatprep.subr.mxu0 0.0
      %1733 = vmatpush1.msra.mxu0 0.0
      %1734 = vmatprep.subr.mxu0 0.0
      %1735 = vmatpush1.msra.mxu0 0.0
      %1736 = vmatprep.subr.mxu0 0.0
      %1737 = vmatpush1.msra.mxu0 0.0
      %1738 = vmatprep.subr.mxu0 0.0
      %1739 = vmatpush1.msra.mxu0 0.0
      %1740 = vmatprep.subr.mxu0 0.0
      %1741 = vmatpush1.msra.mxu0 0.0
      %1742 = vmatprep.subr.mxu0 0.0
      %1743 = vmatpush1.msra.mxu0 0.0
      %1744 = vmatprep.subr.mxu0 0.0
      %1745 = vmatpush1.msra.mxu0 0.0
      %1746 = vmatprep.subr.mxu0 0.0
      %1747 = vmatpush1.msra.mxu0 0.0
      %1748 = vmatprep.subr.mxu0 0.0
      %1749 = vmatpush1.msra.mxu0 0.0
      %1750 = vmatprep.subr.mxu0 0.0
      %1751 = vmatpush1.msra.mxu0 0.0
      %1752 = vmatprep.subr.mxu0 0.0
      %1753 = vmatpush1.msra.mxu0 0.0
      %1754 = vmatprep.subr.mxu0 0.0
      %1755 = vmatpush1.msra.mxu0 0.0
      %1756 = vmatprep.subr.mxu0 0.0
      %1757 = vmatpush1.msra.mxu0 0.0
      %1758 = vmatprep.subr.mxu0 0.0
      %1759 = vmatpush1.msra.mxu0 0.0
      %1760 = vmatprep.subr.mxu0 0.0
      %1761 = vmatpush1.msra.mxu0 0.0
      %1762 = vmatprep.subr.mxu0 0.0
      %1763 = vmatpush1.msra.mxu0 0.0
      %1764 = vmatprep.subr.mxu0 0.0
      %1765 = vmatpush1.msra.mxu0 0.0
      %1766 = vmatprep.subr.mxu0 0.0
      %1767 = vmatpush1.msra.mxu0 0.0
      %1768 = vmatprep.subr.mxu0 0.0
      %1769 = vmatpush1.msra.mxu0 0.0
      %1770 = vmatprep.subr.mxu0 0.0
      %1771 = vmatpush1.msra.mxu0 0.0
      %1772 = vmatprep.mubr.f32.mxu0 0.0
      %1773 = vmatmul.mubr.f32.gmra.mrb[0].mxu0 %v1706
      %v1774 = vpop.f32.mrb[0].mxu0
      %v1775 = vadd.f32 %v342, %v1774
      %v1776 = vpop.f32.mrb[0].mxu0
      %1777 = vdwg.mxu0
      %v1779 = vsel %vm199, %v1775, 0
      %1781 = vmatprep.subr.mxu0 0.0
      %1782 = vmatpush1.msra.mxu0 %v977
      %1783 = vmatprep.subr.mxu0 0.0
      %1784 = vmatpush1.msra.mxu0 0.0
      %1785 = vmatprep.subr.mxu0 0.0
      %1786 = vmatpush1.msra.mxu0 0.0
      %1787 = vmatprep.subr.mxu0 0.0
      %1788 = vmatpush1.msra.mxu0 0.0
      %1789 = vmatprep.subr.mxu0 0.0
      %1790 = vmatpush1.msra.mxu0 0.0
      %1791 = vmatprep.subr.mxu0 0.0
      %1792 = vmatpush1.msra.mxu0 0.0
      %1793 = vmatprep.subr.mxu0 0.0
      %1794 = vmatpush1.msra.mxu0 0.0
      %1795 = vmatprep.subr.mxu0 0.0
      %1796 = vmatpush1.msra.mxu0 0.0
      %1797 = vmatprep.subr.mxu0 0.0
      %1798 = vmatpush1.msra.mxu0 0.0
      %1799 = vmatprep.subr.mxu0 0.0
      %1800 = vmatpush1.msra.mxu0 0.0
      %1801 = vmatprep.subr.mxu0 0.0
      %1802 = vmatpush1.msra.mxu0 0.0
      %1803 = vmatprep.subr.mxu0 0.0
      %1804 = vmatpush1.msra.mxu0 0.0
      %1805 = vmatprep.subr.mxu0 0.0
      %1806 = vmatpush1.msra.mxu0 0.0
      %1807 = vmatprep.subr.mxu0 0.0
      %1808 = vmatpush1.msra.mxu0 0.0
      %1809 = vmatprep.subr.mxu0 0.0
      %1810 = vmatpush1.msra.mxu0 0.0
      %1811 = vmatprep.subr.mxu0 0.0
      %1812 = vmatpush1.msra.mxu0 0.0
      %1813 = vmatprep.subr.mxu0 0.0
      %1814 = vmatpush1.msra.mxu0 0.0
      %1815 = vmatprep.subr.mxu0 0.0
      %1816 = vmatpush1.msra.mxu0 0.0
      %1817 = vmatprep.subr.mxu0 0.0
      %1818 = vmatpush1.msra.mxu0 0.0
      %1819 = vmatprep.subr.mxu0 0.0
      %1820 = vmatpush1.msra.mxu0 0.0
      %1821 = vmatprep.subr.mxu0 0.0
      %1822 = vmatpush1.msra.mxu0 0.0
      %1823 = vmatprep.subr.mxu0 0.0
      %1824 = vmatpush1.msra.mxu0 0.0
      %1825 = vmatprep.subr.mxu0 0.0
      %1826 = vmatpush1.msra.mxu0 0.0
      %1827 = vmatprep.subr.mxu0 0.0
      %1828 = vmatpush1.msra.mxu0 0.0
      %1829 = vmatprep.subr.mxu0 0.0
      %1830 = vmatpush1.msra.mxu0 0.0
      %1831 = vmatprep.subr.mxu0 0.0
      %1832 = vmatpush1.msra.mxu0 0.0
      %1833 = vmatprep.subr.mxu0 0.0
      %1834 = vmatpush1.msra.mxu0 0.0
      %1835 = vmatprep.subr.mxu0 0.0
      %1836 = vmatpush1.msra.mxu0 0.0
      %1837 = vmatprep.subr.mxu0 0.0
      %1838 = vmatpush1.msra.mxu0 0.0
      %1839 = vmatprep.subr.mxu0 0.0
      %1840 = vmatpush1.msra.mxu0 0.0
      %1841 = vmatprep.subr.mxu0 0.0
      %1842 = vmatpush1.msra.mxu0 0.0
      %1843 = vmatprep.subr.mxu0 0.0
      %1844 = vmatpush1.msra.mxu0 0.0
      %1845 = vmatprep.mubr.f32.mxu0 0.0
      %1846 = vmatmul.mubr.f32.gmra.mrb[0].mxu0 %v1779
      %v1847 = vpop.f32.mrb[0].mxu0
      %v1848 = vadd.f32 0.0, %v1847
      %v1849 = vpop.f32.mrb[0].mxu0
      %1850 = vdwg.mxu0
      %v1852 = vsel %vm199, %v1205, 0
      %1854 = vmatprep.subr.mxu0 0.0
      %1855 = vmatpush1.msra.mxu0 %v1052
      %1856 = vmatprep.subr.mxu0 0.0
      %1857 = vmatpush1.msra.mxu0 0.0
      %1858 = vmatprep.subr.mxu0 0.0
      %1859 = vmatpush1.msra.mxu0 0.0
      %1860 = vmatprep.subr.mxu0 0.0
      %1861 = vmatpush1.msra.mxu0 0.0
      %1862 = vmatprep.subr.mxu0 0.0
      %1863 = vmatpush1.msra.mxu0 0.0
      %1864 = vmatprep.subr.mxu0 0.0
      %1865 = vmatpush1.msra.mxu0 0.0
      %1866 = vmatprep.subr.mxu0 0.0
      %1867 = vmatpush1.msra.mxu0 0.0
      %1868 = vmatprep.subr.mxu0 0.0
      %1869 = vmatpush1.msra.mxu0 0.0
      %1870 = vmatprep.subr.mxu0 0.0
      %1871 = vmatpush1.msra.mxu0 0.0
      %1872 = vmatprep.subr.mxu0 0.0
      %1873 = vmatpush1.msra.mxu0 0.0
      %1874 = vmatprep.subr.mxu0 0.0
      %1875 = vmatpush1.msra.mxu0 0.0
      %1876 = vmatprep.subr.mxu0 0.0
      %1877 = vmatpush1.msra.mxu0 0.0
      %1878 = vmatprep.subr.mxu0 0.0
      %1879 = vmatpush1.msra.mxu0 0.0
      %1880 = vmatprep.subr.mxu0 0.0
      %1881 = vmatpush1.msra.mxu0 0.0
      %1882 = vmatprep.subr.mxu0 0.0
      %1883 = vmatpush1.msra.mxu0 0.0
      %1884 = vmatprep.subr.mxu0 0.0
      %1885 = vmatpush1.msra.mxu0 0.0
      %1886 = vmatprep.subr.mxu0 0.0
      %1887 = vmatpush1.msra.mxu0 0.0
      %1888 = vmatprep.subr.mxu0 0.0
      %1889 = vmatpush1.msra.mxu0 0.0
      %1890 = vmatprep.subr.mxu0 0.0
      %1891 = vmatpush1.msra.mxu0 0.0
      %1892 = vmatprep.subr.mxu0 0.0
      %1893 = vmatpush1.msra.mxu0 0.0
      %1894 = vmatprep.subr.mxu0 0.0
      %1895 = vmatpush1.msra.mxu0 0.0
      %1896 = vmatprep.subr.mxu0 0.0
      %1897 = vmatpush1.msra.mxu0 0.0
      %1898 = vmatprep.subr.mxu0 0.0
      %1899 = vmatpush1.msra.mxu0 0.0
      %1900 = vmatprep.subr.mxu0 0.0
      %1901 = vmatpush1.msra.mxu0 0.0
      %1902 = vmatprep.subr.mxu0 0.0
      %1903 = vmatpush1.msra.mxu0 0.0
      %1904 = vmatprep.subr.mxu0 0.0
      %1905 = vmatpush1.msra.mxu0 0.0
      %1906 = vmatprep.subr.mxu0 0.0
      %1907 = vmatpush1.msra.mxu0 0.0
      %1908 = vmatprep.subr.mxu0 0.0
      %1909 = vmatpush1.msra.mxu0 0.0
      %1910 = vmatprep.subr.mxu0 0.0
      %1911 = vmatpush1.msra.mxu0 0.0
      %1912 = vmatprep.subr.mxu0 0.0
      %1913 = vmatpush1.msra.mxu0 0.0
      %1914 = vmatprep.subr.mxu0 0.0
      %1915 = vmatpush1.msra.mxu0 0.0
      %1916 = vmatprep.subr.mxu0 0.0
      %1917 = vmatpush1.msra.mxu0 0.0
      %1918 = vmatprep.mubr.f32.mxu0 0.0
      %1919 = vmatmul.mubr.f32.gmra.mrb[0].mxu0 %v1852
      %v1920 = vpop.f32.mrb[0].mxu0
      %v1921 = vadd.f32 %v1848, %v1920
      %v1922 = vpop.f32.mrb[0].mxu0
      %1923 = vdwg.mxu0
      %v1924 = vadd.f32 %v1921, %v1127
      %v1925 = vmax.f32 %v1924, 0.0
      %v1927 = vsel %vm1134, %v1925, 0
      %1929 = vmatprep.subr.mxu0 0.0
      %1930 = vmatpush1.msra.mxu0 %v183
      %1931 = vmatprep.subr.mxu0 0.0
      %1932 = vmatpush1.msra.mxu0 %v184
      %1933 = vmatprep.subr.mxu0 0.0
      %1934 = vmatpush1.msra.mxu0 %v185
      %1935 = vmatprep.subr.mxu0 0.0
      %1936 = vmatpush1.msra.mxu0 %v186
      %1937 = vmatprep.subr.mxu0 0.0
      %1938 = vmatpush1.msra.mxu0 0.0
      %1939 = vmatprep.subr.mxu0 0.0
      %1940 = vmatpush1.msra.mxu0 0.0
      %1941 = vmatprep.subr.mxu0 0.0
      %1942 = vmatpush1.msra.mxu0 0.0
      %1943 = vmatprep.subr.mxu0 0.0
      %1944 = vmatpush1.msra.mxu0 0.0
      %1945 = vmatprep.subr.mxu0 0.0
      %1946 = vmatpush1.msra.mxu0 0.0
      %1947 = vmatprep.subr.mxu0 0.0
      %1948 = vmatpush1.msra.mxu0 0.0
      %1949 = vmatprep.subr.mxu0 0.0
      %1950 = vmatpush1.msra.mxu0 0.0
      %1951 = vmatprep.subr.mxu0 0.0
      %1952 = vmatpush1.msra.mxu0 0.0
      %1953 = vmatprep.subr.mxu0 0.0
      %1954 = vmatpush1.msra.mxu0 0.0
      %1955 = vmatprep.subr.mxu0 0.0
      %1956 = vmatpush1.msra.mxu0 0.0
      %1957 = vmatprep.subr.mxu0 0.0
      %1958 = vmatpush1.msra.mxu0 0.0
      %1959 = vmatprep.subr.mxu0 0.0
      %1960 = vmatpush1.msra.mxu0 0.0
      %1961 = vmatprep.subr.mxu0 0.0
      %1962 = vmatpush1.msra.mxu0 0.0
      %1963 = vmatprep.subr.mxu0 0.0
      %1964 = vmatpush1.msra.mxu0 0.0
      %1965 = vmatprep.subr.mxu0 0.0
      %1966 = vmatpush1.msra.mxu0 0.0
      %1967 = vmatprep.subr.mxu0 0.0
      %1968 = vmatpush1.msra.mxu0 0.0
      %1969 = vmatprep.subr.mxu0 0.0
      %1970 = vmatpush1.msra.mxu0 0.0
      %1971 = vmatprep.subr.mxu0 0.0
      %1972 = vmatpush1.msra.mxu0 0.0
      %1973 = vmatprep.subr.mxu0 0.0
      %1974 = vmatpush1.msra.mxu0 0.0
      %1975 = vmatprep.subr.mxu0 0.0
      %1976 = vmatpush1.msra.mxu0 0.0
      %1977 = vmatprep.subr.mxu0 0.0
      %1978 = vmatpush1.msra.mxu0 0.0
      %1979 = vmatprep.subr.mxu0 0.0
      %1980 = vmatpush1.msra.mxu0 0.0
      %1981 = vmatprep.subr.mxu0 0.0
      %1982 = vmatpush1.msra.mxu0 0.0
      %1983 = vmatprep.subr.mxu0 0.0
      %1984 = vmatpush1.msra.mxu0 0.0
      %1985 = vmatprep.subr.mxu0 0.0
      %1986 = vmatpush1.msra.mxu0 0.0
      %1987 = vmatprep.subr.mxu0 0.0
      %1988 = vmatpush1.msra.mxu0 0.0
      %1989 = vmatprep.subr.mxu0 0.0
      %1990 = vmatpush1.msra.mxu0 0.0
      %1991 = vmatprep.subr.mxu0 0.0
      %1992 = vmatpush1.msra.mxu0 0.0
      %1993 = vmatprep.mubr.f32.mxu0 0.0
      %1994 = vmatmul.mubr.f32.gmra.mrb[0].mxu0 %v1927
      %v1995 = vpop.f32.mrb[0].mxu0
      %v1996 = vadd.f32 %v1133, %v1995
      %v1997 = vpop.f32.mrb[0].mxu0
      %1998 = vdwg.mxu0
      %1999 = vmatprep.subr.mxu0 0.0
      %2000 = vmatpush1.msra.mxu0 %v1996
      %2001 = vmatprep.subr.mxu0 0.0
      %2002 = vmatpush1.msra.mxu0 0.0
      %2003 = vmatprep.subr.mxu0 0.0
      %2004 = vmatpush1.msra.mxu0 0.0
      %2005 = vmatprep.subr.mxu0 0.0
      %2006 = vmatpush1.msra.mxu0 0.0
      %2007 = vmatprep.subr.mxu0 0.0
      %2008 = vmatpush1.msra.mxu0 0.0
      %2009 = vmatprep.subr.mxu0 0.0
      %2010 = vmatpush1.msra.mxu0 0.0
      %2011 = vmatprep.subr.mxu0 0.0
      %2012 = vmatpush1.msra.mxu0 0.0
      %2013 = vmatprep.subr.mxu0 0.0
      %2014 = vmatpush1.msra.mxu0 0.0
      %2015 = vmatprep.subr.mxu0 0.0
      %2016 = vmatpush1.msra.mxu0 0.0
      %2017 = vmatprep.subr.mxu0 0.0
      %2018 = vmatpush1.msra.mxu0 0.0
      %2019 = vmatprep.subr.mxu0 0.0
      %2020 = vmatpush1.msra.mxu0 0.0
      %2021 = vmatprep.subr.mxu0 0.0
      %2022 = vmatpush1.msra.mxu0 0.0
      %2023 = vmatprep.subr.mxu0 0.0
      %2024 = vmatpush1.msra.mxu0 0.0
      %2025 = vmatprep.subr.mxu0 0.0
      %2026 = vmatpush1.msra.mxu0 0.0
      %2027 = vmatprep.subr.mxu0 0.0
      %2028 = vmatpush1.msra.mxu0 0.0
      %2029 = vmatprep.subr.mxu0 0.0
      %2030 = vmatpush1.msra.mxu0 0.0
      %2031 = vmatprep.subr.mxu0 0.0
      %2032 = vmatpush1.msra.mxu0 0.0
      %2033 = vmatprep.subr.mxu0 0.0
      %2034 = vmatpush1.msra.mxu0 0.0
      %2035 = vmatprep.subr.mxu0 0.0
      %2036 = vmatpush1.msra.mxu0 0.0
      %2037 = vmatprep.subr.mxu0 0.0
      %2038 = vmatpush1.msra.mxu0 0.0
      %2039 = vmatprep.subr.mxu0 0.0
      %2040 = vmatpush1.msra.mxu0 0.0
      %2041 = vmatprep.subr.mxu0 0.0
      %2042 = vmatpush1.msra.mxu0 0.0
      %2043 = vmatprep.subr.mxu0 0.0
      %2044 = vmatpush1.msra.mxu0 0.0
      %2045 = vmatprep.subr.mxu0 0.0
      %2046 = vmatpush1.msra.mxu0 0.0
      %2047 = vmatprep.subr.mxu0 0.0
      %2048 = vmatpush1.msra.mxu0 0.0
      %2049 = vmatprep.subr.mxu0 0.0
      %2050 = vmatpush1.msra.mxu0 0.0
      %2051 = vmatprep.subr.mxu0 0.0
      %2052 = vmatpush1.msra.mxu0 0.0
      %2053 = vmatprep.subr.mxu0 0.0
      %2054 = vmatpush1.msra.mxu0 0.0
      %2055 = vmatprep.subr.mxu0 0.0
      %2056 = vmatpush1.msra.mxu0 0.0
      %2057 = vmatprep.subr.mxu0 0.0
      %2058 = vmatpush1.msra.mxu0 0.0
      %2059 = vmatprep.subr.mxu0 0.0
      %2060 = vmatpush1.msra.mxu0 0.0
      %2061 = vmatprep.subr.mxu0 0.0
      %2062 = vmatpush1.msra.mxu0 0.0
      %2063 = vmatprep.mubr.f32.mxu0 0.0
      %2064 = vmatmul.mubr.f32.gmra.mrb[0].mxu0 %v345
      %v2065 = vpop.f32.mrb[0].mxu0
      %v2066 = vadd.f32 0.0, %v2065
      %v2067 = vpop.f32.mrb[0].mxu0
      %2068 = vmatprep.mubr.f32.mxu0 0.0
      %2069 = vmatmul.mubr.f32.gmra.mrb[0].mxu0 %v348
      %v2070 = vpop.f32.mrb[0].mxu0
      %v2071 = vadd.f32 0.0, %v2070
      %v2072 = vpop.f32.mrb[0].mxu0
      %2073 = vmatprep.mubr.f32.mxu0 0.0
      %2074 = vmatmul.mubr.f32.gmra.mrb[0].mxu0 %v351
      %v2075 = vpop.f32.mrb[0].mxu0
      %v2076 = vadd.f32 0.0, %v2075
      %v2077 = vpop.f32.mrb[0].mxu0
      %2078 = vmatprep.mubr.f32.mxu0 0.0
      %2079 = vmatmul.mubr.f32.gmra.mrb[0].mxu0 %v354
      %v2080 = vpop.f32.mrb[0].mxu0
      %v2081 = vadd.f32 0.0, %v2080
      %v2082 = vpop.f32.mrb[0].mxu0
      %2083 = vmatprep.mubr.f32.mxu0 0.0
      %2084 = vmatmul.mubr.f32.gmra.mrb[0].mxu0 %v357
      %v2085 = vpop.f32.mrb[0].mxu0
      %v2086 = vadd.f32 0.0, %v2085
      %v2087 = vpop.f32.mrb[0].mxu0
      %2088 = vmatprep.mubr.f32.mxu0 0.0
      %2089 = vmatmul.mubr.f32.gmra.mrb[0].mxu0 %v360
      %v2090 = vpop.f32.mrb[0].mxu0
      %v2091 = vadd.f32 0.0, %v2090
      %v2092 = vpop.f32.mrb[0].mxu0
      %2093 = vmatprep.mubr.f32.mxu0 0.0
      %2094 = vmatmul.mubr.f32.gmra.mrb[0].mxu0 %v363
      %v2095 = vpop.f32.mrb[0].mxu0
      %v2096 = vadd.f32 0.0, %v2095
      %v2097 = vpop.f32.mrb[0].mxu0
      %2098 = vmatprep.mubr.f32.mxu0 0.0
      %2099 = vmatmul.mubr.f32.gmra.mrb[0].mxu0 %v366
      %v2100 = vpop.f32.mrb[0].mxu0
      %v2101 = vadd.f32 0.0, %v2100
      %v2102 = vpop.f32.mrb[0].mxu0
      %2103 = vmatprep.mubr.f32.mxu0 0.0
      %2104 = vmatmul.mubr.f32.gmra.mrb[0].mxu0 %v369
      %v2105 = vpop.f32.mrb[0].mxu0
      %v2106 = vadd.f32 0.0, %v2105
      %v2107 = vpop.f32.mrb[0].mxu0
      %2108 = vmatprep.mubr.f32.mxu0 0.0
      %2109 = vmatmul.mubr.f32.gmra.mrb[0].mxu0 %v372
      %v2110 = vpop.f32.mrb[0].mxu0
      %v2111 = vadd.f32 0.0, %v2110
      %v2112 = vpop.f32.mrb[0].mxu0
      %2113 = vmatprep.mubr.f32.mxu0 0.0
      %2114 = vmatmul.mubr.f32.gmra.mrb[0].mxu0 %v375
      %v2115 = vpop.f32.mrb[0].mxu0
      %v2116 = vadd.f32 0.0, %v2115
      %v2117 = vpop.f32.mrb[0].mxu0
      %2118 = vmatprep.mubr.f32.mxu0 0.0
      %2119 = vmatmul.mubr.f32.gmra.mrb[0].mxu0 %v378
      %v2120 = vpop.f32.mrb[0].mxu0
      %v2121 = vadd.f32 0.0, %v2120
      %v2122 = vpop.f32.mrb[0].mxu0
      %2123 = vmatprep.mubr.f32.mxu0 0.0
      %2124 = vmatmul.mubr.f32.gmra.mrb[0].mxu0 %v381
      %v2125 = vpop.f32.mrb[0].mxu0
      %v2126 = vadd.f32 0.0, %v2125
      %v2127 = vpop.f32.mrb[0].mxu0
      %2128 = vmatprep.mubr.f32.mxu0 0.0
      %2129 = vmatmul.mubr.f32.gmra.mrb[0].mxu0 %v384
      %v2130 = vpop.f32.mrb[0].mxu0
      %v2131 = vadd.f32 0.0, %v2130
      %v2132 = vpop.f32.mrb[0].mxu0
      %2133 = vmatprep.mubr.f32.mxu0 0.0
      %2134 = vmatmul.mubr.f32.gmra.mrb[0].mxu0 %v387
      %v2135 = vpop.f32.mrb[0].mxu0
      %v2136 = vadd.f32 0.0, %v2135
      %v2137 = vpop.f32.mrb[0].mxu0
      %2138 = vmatprep.mubr.f32.mxu0 0.0
      %2139 = vmatmul.mubr.f32.gmra.mrb[0].mxu0 %v390
      %v2140 = vpop.f32.mrb[0].mxu0
      %v2141 = vadd.f32 0.0, %v2140
      %v2142 = vpop.f32.mrb[0].mxu0
      %2143 = vdwg.mxu0
      %v2145 = vsel %vm199, %v2066, 0
      %v2148 = vsel %vm199, %v2071, 0
      %v2151 = vsel %vm199, %v2076, 0
      %v2154 = vsel %vm199, %v2081, 0
      %v2157 = vsel %vm199, %v2086, 0
      %v2160 = vsel %vm199, %v2091, 0
      %v2163 = vsel %vm199, %v2096, 0
      %v2166 = vsel %vm199, %v2101, 0
      %2168 = vmatprep.subr.mxu0 0.0
      %2169 = vmatpush1.msra.mxu0 %v562
      %2170 = vmatprep.subr.mxu0 0.0
      %2171 = vmatpush1.msra.mxu0 0.0
      %2172 = vmatprep.subr.mxu0 0.0
      %2173 = vmatpush1.msra.mxu0 0.0
      %2174 = vmatprep.subr.mxu0 0.0
      %2175 = vmatpush1.msra.mxu0 0.0
      %2176 = vmatprep.subr.mxu0 0.0
      %2177 = vmatpush1.msra.mxu0 0.0
      %2178 = vmatprep.subr.mxu0 0.0
      %2179 = vmatpush1.msra.mxu0 0.0
      %2180 = vmatprep.subr.mxu0 0.0
      %2181 = vmatpush1.msra.mxu0 0.0
      %2182 = vmatprep.subr.mxu0 0.0
      %2183 = vmatpush1.msra.mxu0 0.0
      %2184 = vmatprep.subr.mxu0 0.0
      %2185 = vmatpush1.msra.mxu0 0.0
      %2186 = vmatprep.subr.mxu0 0.0
      %2187 = vmatpush1.msra.mxu0 0.0
      %2188 = vmatprep.subr.mxu0 0.0
      %2189 = vmatpush1.msra.mxu0 0.0
      %2190 = vmatprep.subr.mxu0 0.0
      %2191 = vmatpush1.msra.mxu0 0.0
      %2192 = vmatprep.subr.mxu0 0.0
      %2193 = vmatpush1.msra.mxu0 0.0
      %2194 = vmatprep.subr.mxu0 0.0
      %2195 = vmatpush1.msra.mxu0 0.0
      %2196 = vmatprep.subr.mxu0 0.0
      %2197 = vmatpush1.msra.mxu0 0.0
      %2198 = vmatprep.subr.mxu0 0.0
      %2199 = vmatpush1.msra.mxu0 0.0
      %2200 = vmatprep.subr.mxu0 0.0
      %2201 = vmatpush1.msra.mxu0 0.0
      %2202 = vmatprep.subr.mxu0 0.0
      %2203 = vmatpush1.msra.mxu0 0.0
      %2204 = vmatprep.subr.mxu0 0.0
      %2205 = vmatpush1.msra.mxu0 0.0
      %2206 = vmatprep.subr.mxu0 0.0
      %2207 = vmatpush1.msra.mxu0 0.0
      %2208 = vmatprep.subr.mxu0 0.0
      %2209 = vmatpush1.msra.mxu0 0.0
      %2210 = vmatprep.subr.mxu0 0.0
      %2211 = vmatpush1.msra.mxu0 0.0
      %2212 = vmatprep.subr.mxu0 0.0
      %2213 = vmatpush1.msra.mxu0 0.0
      %2214 = vmatprep.subr.mxu0 0.0
      %2215 = vmatpush1.msra.mxu0 0.0
      %2216 = vmatprep.subr.mxu0 0.0
      %2217 = vmatpush1.msra.mxu0 0.0
      %2218 = vmatprep.subr.mxu0 0.0
      %2219 = vmatpush1.msra.mxu0 0.0
      %2220 = vmatprep.subr.mxu0 0.0
      %2221 = vmatpush1.msra.mxu0 0.0
      %2222 = vmatprep.subr.mxu0 0.0
      %2223 = vmatpush1.msra.mxu0 0.0
      %2224 = vmatprep.subr.mxu0 0.0
      %2225 = vmatpush1.msra.mxu0 0.0
      %2226 = vmatprep.subr.mxu0 0.0
      %2227 = vmatpush1.msra.mxu0 0.0
      %2228 = vmatprep.subr.mxu0 0.0
      %2229 = vmatpush1.msra.mxu0 0.0
      %2230 = vmatprep.subr.mxu0 0.0
      %2231 = vmatpush1.msra.mxu0 0.0
      %2232 = vmatprep.mubr.f32.mxu0 0.0
      %2233 = vmatmul.mubr.f32.gmra.mrb[0].mxu0 %v2145
      %v2234 = vpop.f32.mrb[0].mxu0
      %v2235 = vadd.f32 0.0, %v2234
      %v2236 = vpop.f32.mrb[0].mxu0
      %2237 = vmatprep.mubr.f32.mxu0 0.0
      %2238 = vmatmul.mubr.f32.gmra.mrb[0].mxu0 %v2148
      %v2239 = vpop.f32.mrb[0].mxu0
      %v2240 = vadd.f32 0.0, %v2239
      %v2241 = vpop.f32.mrb[0].mxu0
      %2242 = vmatprep.mubr.f32.mxu0 0.0
      %2243 = vmatmul.mubr.f32.gmra.mrb[0].mxu0 %v2151
      %v2244 = vpop.f32.mrb[0].mxu0
      %v2245 = vadd.f32 0.0, %v2244
      %v2246 = vpop.f32.mrb[0].mxu0
      %2247 = vmatprep.mubr.f32.mxu0 0.0
      %2248 = vmatmul.mubr.f32.gmra.mrb[0].mxu0 %v2154
      %v2249 = vpop.f32.mrb[0].mxu0
      %v2250 = vadd.f32 0.0, %v2249
      %v2251 = vpop.f32.mrb[0].mxu0
      %2252 = vmatprep.mubr.f32.mxu0 0.0
      %2253 = vmatmul.mubr.f32.gmra.mrb[0].mxu0 %v2157
      %v2254 = vpop.f32.mrb[0].mxu0
      %v2255 = vadd.f32 0.0, %v2254
      %v2256 = vpop.f32.mrb[0].mxu0
      %2257 = vmatprep.mubr.f32.mxu0 0.0
      %2258 = vmatmul.mubr.f32.gmra.mrb[0].mxu0 %v2160
      %v2259 = vpop.f32.mrb[0].mxu0
      %v2260 = vadd.f32 0.0, %v2259
      %v2261 = vpop.f32.mrb[0].mxu0
      %2262 = vmatprep.mubr.f32.mxu0 0.0
      %2263 = vmatmul.mubr.f32.gmra.mrb[0].mxu0 %v2163
      %v2264 = vpop.f32.mrb[0].mxu0
      %v2265 = vadd.f32 0.0, %v2264
      %v2266 = vpop.f32.mrb[0].mxu0
      %2267 = vmatprep.mubr.f32.mxu0 0.0
      %2268 = vmatmul.mubr.f32.gmra.mrb[0].mxu0 %v2166
      %v2269 = vpop.f32.mrb[0].mxu0
      %v2270 = vadd.f32 0.0, %v2269
      %v2271 = vpop.f32.mrb[0].mxu0
      %2272 = vdwg.mxu0
      %v2273 = vadd.f32 %v295, %v2235
      %v2274 = vadd.f32 %v300, %v2240
      %v2275 = vadd.f32 %v305, %v2245
      %v2276 = vadd.f32 %v310, %v2250
      %v2277 = vadd.f32 %v315, %v2255
      %v2278 = vadd.f32 %v320, %v2260
      %v2279 = vadd.f32 %v325, %v2265
      %v2280 = vadd.f32 %v330, %v2270
      %v2282 = vsel %vm199, %v2106, 0
      %v2285 = vsel %vm199, %v2111, 0
      %v2288 = vsel %vm199, %v2116, 0
      %v2291 = vsel %vm199, %v2121, 0
      %v2294 = vsel %vm199, %v2126, 0
      %v2297 = vsel %vm199, %v2131, 0
      %v2300 = vsel %vm199, %v2136, 0
      %v2303 = vsel %vm199, %v2141, 0
      %2305 = vmatprep.subr.mxu0 0.0
      %2306 = vmatpush1.msra.mxu0 %v702
      %2307 = vmatprep.subr.mxu0 0.0
      %2308 = vmatpush1.msra.mxu0 0.0
      %2309 = vmatprep.subr.mxu0 0.0
      %2310 = vmatpush1.msra.mxu0 0.0
      %2311 = vmatprep.subr.mxu0 0.0
      %2312 = vmatpush1.msra.mxu0 0.0
      %2313 = vmatprep.subr.mxu0 0.0
      %2314 = vmatpush1.msra.mxu0 0.0
      %2315 = vmatprep.subr.mxu0 0.0
      %2316 = vmatpush1.msra.mxu0 0.0
      %2317 = vmatprep.subr.mxu0 0.0
      %2318 = vmatpush1.msra.mxu0 0.0
      %2319 = vmatprep.subr.mxu0 0.0
      %2320 = vmatpush1.msra.mxu0 0.0
      %2321 = vmatprep.subr.mxu0 0.0
      %2322 = vmatpush1.msra.mxu0 0.0
      %2323 = vmatprep.subr.mxu0 0.0
      %2324 = vmatpush1.msra.mxu0 0.0
      %2325 = vmatprep.subr.mxu0 0.0
      %2326 = vmatpush1.msra.mxu0 0.0
      %2327 = vmatprep.subr.mxu0 0.0
      %2328 = vmatpush1.msra.mxu0 0.0
      %2329 = vmatprep.subr.mxu0 0.0
      %2330 = vmatpush1.msra.mxu0 0.0
      %2331 = vmatprep.subr.mxu0 0.0
      %2332 = vmatpush1.msra.mxu0 0.0
      %2333 = vmatprep.subr.mxu0 0.0
      %2334 = vmatpush1.msra.mxu0 0.0
      %2335 = vmatprep.subr.mxu0 0.0
      %2336 = vmatpush1.msra.mxu0 0.0
      %2337 = vmatprep.subr.mxu0 0.0
      %2338 = vmatpush1.msra.mxu0 0.0
      %2339 = vmatprep.subr.mxu0 0.0
      %2340 = vmatpush1.msra.mxu0 0.0
      %2341 = vmatprep.subr.mxu0 0.0
      %2342 = vmatpush1.msra.mxu0 0.0
      %2343 = vmatprep.subr.mxu0 0.0
      %2344 = vmatpush1.msra.mxu0 0.0
      %2345 = vmatprep.subr.mxu0 0.0
      %2346 = vmatpush1.msra.mxu0 0.0
      %2347 = vmatprep.subr.mxu0 0.0
      %2348 = vmatpush1.msra.mxu0 0.0
      %2349 = vmatprep.subr.mxu0 0.0
      %2350 = vmatpush1.msra.mxu0 0.0
      %2351 = vmatprep.subr.mxu0 0.0
      %2352 = vmatpush1.msra.mxu0 0.0
      %2353 = vmatprep.subr.mxu0 0.0
      %2354 = vmatpush1.msra.mxu0 0.0
      %2355 = vmatprep.subr.mxu0 0.0
      %2356 = vmatpush1.msra.mxu0 0.0
      %2357 = vmatprep.subr.mxu0 0.0
      %2358 = vmatpush1.msra.mxu0 0.0
      %2359 = vmatprep.subr.mxu0 0.0
      %2360 = vmatpush1.msra.mxu0 0.0
      %2361 = vmatprep.subr.mxu0 0.0
      %2362 = vmatpush1.msra.mxu0 0.0
      %2363 = vmatprep.subr.mxu0 0.0
      %2364 = vmatpush1.msra.mxu0 0.0
      %2365 = vmatprep.subr.mxu0 0.0
      %2366 = vmatpush1.msra.mxu0 0.0
      %2367 = vmatprep.subr.mxu0 0.0
      %2368 = vmatpush1.msra.mxu0 0.0
      %2369 = vmatprep.mubr.f32.mxu0 0.0
      %2370 = vmatmul.mubr.f32.gmra.mrb[0].mxu0 %v2282
      %v2371 = vpop.f32.mrb[0].mxu0
      %v2372 = vadd.f32 0.0, %v2371
      %v2373 = vpop.f32.mrb[0].mxu0
      %2374 = vmatprep.mubr.f32.mxu0 0.0
      %2375 = vmatmul.mubr.f32.gmra.mrb[0].mxu0 %v2285
      %v2376 = vpop.f32.mrb[0].mxu0
      %v2377 = vadd.f32 0.0, %v2376
      %v2378 = vpop.f32.mrb[0].mxu0
      %2379 = vmatprep.mubr.f32.mxu0 0.0
      %2380 = vmatmul.mubr.f32.gmra.mrb[0].mxu0 %v2288
      %v2381 = vpop.f32.mrb[0].mxu0
      %v2382 = vadd.f32 0.0, %v2381
      %v2383 = vpop.f32.mrb[0].mxu0
      %2384 = vmatprep.mubr.f32.mxu0 0.0
      %2385 = vmatmul.mubr.f32.gmra.mrb[0].mxu0 %v2291
      %v2386 = vpop.f32.mrb[0].mxu0
      %v2387 = vadd.f32 0.0, %v2386
      %v2388 = vpop.f32.mrb[0].mxu0
      %2389 = vmatprep.mubr.f32.mxu0 0.0
      %2390 = vmatmul.mubr.f32.gmra.mrb[0].mxu0 %v2294
      %v2391 = vpop.f32.mrb[0].mxu0
      %v2392 = vadd.f32 0.0, %v2391
      %v2393 = vpop.f32.mrb[0].mxu0
      %2394 = vmatprep.mubr.f32.mxu0 0.0
      %2395 = vmatmul.mubr.f32.gmra.mrb[0].mxu0 %v2297
      %v2396 = vpop.f32.mrb[0].mxu0
      %v2397 = vadd.f32 0.0, %v2396
      %v2398 = vpop.f32.mrb[0].mxu0
      %2399 = vmatprep.mubr.f32.mxu0 0.0
      %2400 = vmatmul.mubr.f32.gmra.mrb[0].mxu0 %v2300
      %v2401 = vpop.f32.mrb[0].mxu0
      %v2402 = vadd.f32 0.0, %v2401
      %v2403 = vpop.f32.mrb[0].mxu0
      %2404 = vmatprep.mubr.f32.mxu0 0.0
      %2405 = vmatmul.mubr.f32.gmra.mrb[0].mxu0 %v2303
      %v2406 = vpop.f32.mrb[0].mxu0
      %v2407 = vadd.f32 0.0, %v2406
      %v2408 = vpop.f32.mrb[0].mxu0
      %2409 = vdwg.mxu0
      %v2410 = vadd.f32 %v2273, %v2372
      %v2411 = vadd.f32 %v2274, %v2377
      %v2412 = vadd.f32 %v2275, %v2382
      %v2413 = vadd.f32 %v2276, %v2387
      %v2414 = vadd.f32 %v2277, %v2392
      %v2415 = vadd.f32 %v2278, %v2397
      %v2416 = vadd.f32 %v2279, %v2402
      %v2417 = vadd.f32 %v2280, %v2407
      %v2418 = vmax.f32 %v2410, 0.0
      %v2419 = vmax.f32 %v2411, 0.0
      %v2420 = vmax.f32 %v2412, 0.0
      %v2421 = vmax.f32 %v2413, 0.0
      %v2422 = vmax.f32 %v2414, 0.0
      %v2423 = vmax.f32 %v2415, 0.0
      %v2424 = vmax.f32 %v2416, 0.0
      %v2425 = vmax.f32 %v2417, 0.0
      %2426 = vmatprep.subr.mxu0 0.0
      %2427 = vmatpush1.msra.mxu0 %v2418
      %2428 = vmatprep.subr.mxu0 0.0
      %2429 = vmatpush1.msra.mxu0 %v2419
      %2430 = vmatprep.subr.mxu0 0.0
      %2431 = vmatpush1.msra.mxu0 %v2420
      %2432 = vmatprep.subr.mxu0 0.0
      %2433 = vmatpush1.msra.mxu0 %v2421
      %2434 = vmatprep.subr.mxu0 0.0
      %2435 = vmatpush1.msra.mxu0 %v2422
      %2436 = vmatprep.subr.mxu0 0.0
      %2437 = vmatpush1.msra.mxu0 %v2423
      %2438 = vmatprep.subr.mxu0 0.0
      %2439 = vmatpush1.msra.mxu0 %v2424
      %2440 = vmatprep.subr.mxu0 0.0
      %2441 = vmatpush1.msra.mxu0 %v2425
      %2442 = vmatprep.subr.mxu0 0.0
      %2443 = vmatpush1.msra.mxu0 0.0
      %2444 = vmatprep.subr.mxu0 0.0
      %2445 = vmatpush1.msra.mxu0 0.0
      %2446 = vmatprep.subr.mxu0 0.0
      %2447 = vmatpush1.msra.mxu0 0.0
      %2448 = vmatprep.subr.mxu0 0.0
      %2449 = vmatpush1.msra.mxu0 0.0
      %2450 = vmatprep.subr.mxu0 0.0
      %2451 = vmatpush1.msra.mxu0 0.0
      %2452 = vmatprep.subr.mxu0 0.0
      %2453 = vmatpush1.msra.mxu0 0.0
      %2454 = vmatprep.subr.mxu0 0.0
      %2455 = vmatpush1.msra.mxu0 0.0
      %2456 = vmatprep.subr.mxu0 0.0
      %2457 = vmatpush1.msra.mxu0 0.0
      %2458 = vmatprep.subr.mxu0 0.0
      %2459 = vmatpush1.msra.mxu0 0.0
      %2460 = vmatprep.subr.mxu0 0.0
      %2461 = vmatpush1.msra.mxu0 0.0
      %2462 = vmatprep.subr.mxu0 0.0
      %2463 = vmatpush1.msra.mxu0 0.0
      %2464 = vmatprep.subr.mxu0 0.0
      %2465 = vmatpush1.msra.mxu0 0.0
      %2466 = vmatprep.subr.mxu0 0.0
      %2467 = vmatpush1.msra.mxu0 0.0
      %2468 = vmatprep.subr.mxu0 0.0
      %2469 = vmatpush1.msra.mxu0 0.0
      %2470 = vmatprep.subr.mxu0 0.0
      %2471 = vmatpush1.msra.mxu0 0.0
      %2472 = vmatprep.subr.mxu0 0.0
      %2473 = vmatpush1.msra.mxu0 0.0
      %2474 = vmatprep.subr.mxu0 0.0
      %2475 = vmatpush1.msra.mxu0 0.0
      %2476 = vmatprep.subr.mxu0 0.0
      %2477 = vmatpush1.msra.mxu0 0.0
      %2478 = vmatprep.subr.mxu0 0.0
      %2479 = vmatpush1.msra.mxu0 0.0
      %2480 = vmatprep.subr.mxu0 0.0
      %2481 = vmatpush1.msra.mxu0 0.0
      %2482 = vmatprep.subr.mxu0 0.0
      %2483 = vmatpush1.msra.mxu0 0.0
      %2484 = vmatprep.subr.mxu0 0.0
      %2485 = vmatpush1.msra.mxu0 0.0
      %2486 = vmatprep.subr.mxu0 0.0
      %2487 = vmatpush1.msra.mxu0 0.0
      %2488 = vmatprep.subr.mxu0 0.0
      %2489 = vmatpush1.msra.mxu0 0.0
      %2490 = vmatprep.mubr.f32.mxu0 0.0
      %2491 = vmatmul.mubr.f32.gmra.mrb[0].mxu0 %v828
      %v2492 = vpop.f32.mrb[0].mxu0
      %v2493 = vadd.f32 0.0, %v2492
      %v2494 = vpop.f32.mrb[0].mxu0
      %2495 = vdwg.mxu0
      %v2497 = vsel %vm827, %v2493, 0
      %2499 = vmatprep.subr.mxu0 0.0
      %2500 = vmatpush1.msra.mxu0 %v171
      %2501 = vmatprep.subr.mxu0 0.0
      %2502 = vmatpush1.msra.mxu0 %v172
      %2503 = vmatprep.subr.mxu0 0.0
      %2504 = vmatpush1.msra.mxu0 %v173
      %2505 = vmatprep.subr.mxu0 0.0
      %2506 = vmatpush1.msra.mxu0 %v174
      %2507 = vmatprep.subr.mxu0 0.0
      %2508 = vmatpush1.msra.mxu0 %v175
      %2509 = vmatprep.subr.mxu0 0.0
      %2510 = vmatpush1.msra.mxu0 %v176
      %2511 = vmatprep.subr.mxu0 0.0
      %2512 = vmatpush1.msra.mxu0 %v177
      %2513 = vmatprep.subr.mxu0 0.0
      %2514 = vmatpush1.msra.mxu0 %v178
      %2515 = vmatprep.subr.mxu0 0.0
      %2516 = vmatpush1.msra.mxu0 0.0
      %2517 = vmatprep.subr.mxu0 0.0
      %2518 = vmatpush1.msra.mxu0 0.0
      %2519 = vmatprep.subr.mxu0 0.0
      %2520 = vmatpush1.msra.mxu0 0.0
      %2521 = vmatprep.subr.mxu0 0.0
      %2522 = vmatpush1.msra.mxu0 0.0
      %2523 = vmatprep.subr.mxu0 0.0
      %2524 = vmatpush1.msra.mxu0 0.0
      %2525 = vmatprep.subr.mxu0 0.0
      %2526 = vmatpush1.msra.mxu0 0.0
      %2527 = vmatprep.subr.mxu0 0.0
      %2528 = vmatpush1.msra.mxu0 0.0
      %2529 = vmatprep.subr.mxu0 0.0
      %2530 = vmatpush1.msra.mxu0 0.0
      %2531 = vmatprep.subr.mxu0 0.0
      %2532 = vmatpush1.msra.mxu0 0.0
      %2533 = vmatprep.subr.mxu0 0.0
      %2534 = vmatpush1.msra.mxu0 0.0
      %2535 = vmatprep.subr.mxu0 0.0
      %2536 = vmatpush1.msra.mxu0 0.0
      %2537 = vmatprep.subr.mxu0 0.0
      %2538 = vmatpush1.msra.mxu0 0.0
      %2539 = vmatprep.subr.mxu0 0.0
      %2540 = vmatpush1.msra.mxu0 0.0
      %2541 = vmatprep.subr.mxu0 0.0
      %2542 = vmatpush1.msra.mxu0 0.0
      %2543 = vmatprep.subr.mxu0 0.0
      %2544 = vmatpush1.msra.mxu0 0.0
      %2545 = vmatprep.subr.mxu0 0.0
      %2546 = vmatpush1.msra.mxu0 0.0
      %2547 = vmatprep.subr.mxu0 0.0
      %2548 = vmatpush1.msra.mxu0 0.0
      %2549 = vmatprep.subr.mxu0 0.0
      %2550 = vmatpush1.msra.mxu0 0.0
      %2551 = vmatprep.subr.mxu0 0.0
      %2552 = vmatpush1.msra.mxu0 0.0
      %2553 = vmatprep.subr.mxu0 0.0
      %2554 = vmatpush1.msra.mxu0 0.0
      %2555 = vmatprep.subr.mxu0 0.0
      %2556 = vmatpush1.msra.mxu0 0.0
      %2557 = vmatprep.subr.mxu0 0.0
      %2558 = vmatpush1.msra.mxu0 0.0
      %2559 = vmatprep.subr.mxu0 0.0
      %2560 = vmatpush1.msra.mxu0 0.0
      %2561 = vmatprep.subr.mxu0 0.0
      %2562 = vmatpush1.msra.mxu0 0.0
      %2563 = vmatprep.mubr.f32.mxu0 0.0
      %2564 = vmatmul.mubr.f32.gmra.mrb[0].mxu0 %v2497
      %v2565 = vpop.f32.mrb[0].mxu0
      %v2566 = vadd.f32 %v342, %v2565
      %v2567 = vpop.f32.mrb[0].mxu0
      %2568 = vdwg.mxu0
      %v2570 = vsel %vm199, %v2566, 0
      %2572 = vmatprep.subr.mxu0 0.0
      %2573 = vmatpush1.msra.mxu0 %v977
      %2574 = vmatprep.subr.mxu0 0.0
      %2575 = vmatpush1.msra.mxu0 0.0
      %2576 = vmatprep.subr.mxu0 0.0
      %2577 = vmatpush1.msra.mxu0 0.0
      %2578 = vmatprep.subr.mxu0 0.0
      %2579 = vmatpush1.msra.mxu0 0.0
      %2580 = vmatprep.subr.mxu0 0.0
      %2581 = vmatpush1.msra.mxu0 0.0
      %2582 = vmatprep.subr.mxu0 0.0
      %2583 = vmatpush1.msra.mxu0 0.0
      %2584 = vmatprep.subr.mxu0 0.0
      %2585 = vmatpush1.msra.mxu0 0.0
      %2586 = vmatprep.subr.mxu0 0.0
      %2587 = vmatpush1.msra.mxu0 0.0
      %2588 = vmatprep.subr.mxu0 0.0
      %2589 = vmatpush1.msra.mxu0 0.0
      %2590 = vmatprep.subr.mxu0 0.0
      %2591 = vmatpush1.msra.mxu0 0.0
      %2592 = vmatprep.subr.mxu0 0.0
      %2593 = vmatpush1.msra.mxu0 0.0
      %2594 = vmatprep.subr.mxu0 0.0
      %2595 = vmatpush1.msra.mxu0 0.0
      %2596 = vmatprep.subr.mxu0 0.0
      %2597 = vmatpush1.msra.mxu0 0.0
      %2598 = vmatprep.subr.mxu0 0.0
      %2599 = vmatpush1.msra.mxu0 0.0
      %2600 = vmatprep.subr.mxu0 0.0
      %2601 = vmatpush1.msra.mxu0 0.0
      %2602 = vmatprep.subr.mxu0 0.0
      %2603 = vmatpush1.msra.mxu0 0.0
      %2604 = vmatprep.subr.mxu0 0.0
      %2605 = vmatpush1.msra.mxu0 0.0
      %2606 = vmatprep.subr.mxu0 0.0
      %2607 = vmatpush1.msra.mxu0 0.0
      %2608 = vmatprep.subr.mxu0 0.0
      %2609 = vmatpush1.msra.mxu0 0.0
      %2610 = vmatprep.subr.mxu0 0.0
      %2611 = vmatpush1.msra.mxu0 0.0
      %2612 = vmatprep.subr.mxu0 0.0
      %2613 = vmatpush1.msra.mxu0 0.0
      %2614 = vmatprep.subr.mxu0 0.0
      %2615 = vmatpush1.msra.mxu0 0.0
      %2616 = vmatprep.subr.mxu0 0.0
      %2617 = vmatpush1.msra.mxu0 0.0
      %2618 = vmatprep.subr.mxu0 0.0
      %2619 = vmatpush1.msra.mxu0 0.0
      %2620 = vmatprep.subr.mxu0 0.0
      %2621 = vmatpush1.msra.mxu0 0.0
      %2622 = vmatprep.subr.mxu0 0.0
      %2623 = vmatpush1.msra.mxu0 0.0
      %2624 = vmatprep.subr.mxu0 0.0
      %2625 = vmatpush1.msra.mxu0 0.0
      %2626 = vmatprep.subr.mxu0 0.0
      %2627 = vmatpush1.msra.mxu0 0.0
      %2628 = vmatprep.subr.mxu0 0.0
      %2629 = vmatpush1.msra.mxu0 0.0
      %2630 = vmatprep.subr.mxu0 0.0
      %2631 = vmatpush1.msra.mxu0 0.0
      %2632 = vmatprep.subr.mxu0 0.0
      %2633 = vmatpush1.msra.mxu0 0.0
      %2634 = vmatprep.subr.mxu0 0.0
      %2635 = vmatpush1.msra.mxu0 0.0
      %2636 = vmatprep.mubr.f32.mxu0 0.0
      %2637 = vmatmul.mubr.f32.gmra.mrb[0].mxu0 %v2570
      %v2638 = vpop.f32.mrb[0].mxu0
      %v2639 = vadd.f32 0.0, %v2638
      %v2640 = vpop.f32.mrb[0].mxu0
      %2641 = vdwg.mxu0
      %v2643 = vsel %vm199, %v1996, 0
      %2645 = vmatprep.subr.mxu0 0.0
      %2646 = vmatpush1.msra.mxu0 %v1052
      %2647 = vmatprep.subr.mxu0 0.0
      %2648 = vmatpush1.msra.mxu0 0.0
      %2649 = vmatprep.subr.mxu0 0.0
      %2650 = vmatpush1.msra.mxu0 0.0
      %2651 = vmatprep.subr.mxu0 0.0
      %2652 = vmatpush1.msra.mxu0 0.0
      %2653 = vmatprep.subr.mxu0 0.0
      %2654 = vmatpush1.msra.mxu0 0.0
      %2655 = vmatprep.subr.mxu0 0.0
      %2656 = vmatpush1.msra.mxu0 0.0
      %2657 = vmatprep.subr.mxu0 0.0
      %2658 = vmatpush1.msra.mxu0 0.0
      %2659 = vmatprep.subr.mxu0 0.0
      %2660 = vmatpush1.msra.mxu0 0.0
      %2661 = vmatprep.subr.mxu0 0.0
      %2662 = vmatpush1.msra.mxu0 0.0
      %2663 = vmatprep.subr.mxu0 0.0
      %2664 = vmatpush1.msra.mxu0 0.0
      %2665 = vmatprep.subr.mxu0 0.0
      %2666 = vmatpush1.msra.mxu0 0.0
      %2667 = vmatprep.subr.mxu0 0.0
      %2668 = vmatpush1.msra.mxu0 0.0
      %2669 = vmatprep.subr.mxu0 0.0
      %2670 = vmatpush1.msra.mxu0 0.0
      %2671 = vmatprep.subr.mxu0 0.0
      %2672 = vmatpush1.msra.mxu0 0.0
      %2673 = vmatprep.subr.mxu0 0.0
      %2674 = vmatpush1.msra.mxu0 0.0
      %2675 = vmatprep.subr.mxu0 0.0
      %2676 = vmatpush1.msra.mxu0 0.0
      %2677 = vmatprep.subr.mxu0 0.0
      %2678 = vmatpush1.msra.mxu0 0.0
      %2679 = vmatprep.subr.mxu0 0.0
      %2680 = vmatpush1.msra.mxu0 0.0
      %2681 = vmatprep.subr.mxu0 0.0
      %2682 = vmatpush1.msra.mxu0 0.0
      %2683 = vmatprep.subr.mxu0 0.0
      %2684 = vmatpush1.msra.mxu0 0.0
      %2685 = vmatprep.subr.mxu0 0.0
      %2686 = vmatpush1.msra.mxu0 0.0
      %2687 = vmatprep.subr.mxu0 0.0
      %2688 = vmatpush1.msra.mxu0 0.0
      %2689 = vmatprep.subr.mxu0 0.0
      %2690 = vmatpush1.msra.mxu0 0.0
      %2691 = vmatprep.subr.mxu0 0.0
      %2692 = vmatpush1.msra.mxu0 0.0
      %2693 = vmatprep.subr.mxu0 0.0
      %2694 = vmatpush1.msra.mxu0 0.0
      %2695 = vmatprep.subr.mxu0 0.0
      %2696 = vmatpush1.msra.mxu0 0.0
      %2697 = vmatprep.subr.mxu0 0.0
      %2698 = vmatpush1.msra.mxu0 0.0
      %2699 = vmatprep.subr.mxu0 0.0
      %2700 = vmatpush1.msra.mxu0 0.0
      %2701 = vmatprep.subr.mxu0 0.0
      %2702 = vmatpush1.msra.mxu0 0.0
      %2703 = vmatprep.subr.mxu0 0.0
      %2704 = vmatpush1.msra.mxu0 0.0
      %2705 = vmatprep.subr.mxu0 0.0
      %2706 = vmatpush1.msra.mxu0 0.0
      %2707 = vmatprep.subr.mxu0 0.0
      %2708 = vmatpush1.msra.mxu0 0.0
      %2709 = vmatprep.mubr.f32.mxu0 0.0
      %2710 = vmatmul.mubr.f32.gmra.mrb[0].mxu0 %v2643
      %v2711 = vpop.f32.mrb[0].mxu0
      %v2712 = vadd.f32 %v2639, %v2711
      %v2713 = vpop.f32.mrb[0].mxu0
      %2714 = vdwg.mxu0
      %v2715 = vadd.f32 %v2712, %v1127
      %v2716 = vmax.f32 %v2715, 0.0
      %v2718 = vsel %vm1134, %v2716, 0
      %2720 = vmatprep.subr.mxu0 0.0
      %2721 = vmatpush1.msra.mxu0 %v183
      %2722 = vmatprep.subr.mxu0 0.0
      %2723 = vmatpush1.msra.mxu0 %v184
      %2724 = vmatprep.subr.mxu0 0.0
      %2725 = vmatpush1.msra.mxu0 %v185
      %2726 = vmatprep.subr.mxu0 0.0
      %2727 = vmatpush1.msra.mxu0 %v186
      %2728 = vmatprep.subr.mxu0 0.0
      %2729 = vmatpush1.msra.mxu0 0.0
      %2730 = vmatprep.subr.mxu0 0.0
      %2731 = vmatpush1.msra.mxu0 0.0
      %2732 = vmatprep.subr.mxu0 0.0
      %2733 = vmatpush1.msra.mxu0 0.0
      %2734 = vmatprep.subr.mxu0 0.0
      %2735 = vmatpush1.msra.mxu0 0.0
      %2736 = vmatprep.subr.mxu0 0.0
      %2737 = vmatpush1.msra.mxu0 0.0
      %2738 = vmatprep.subr.mxu0 0.0
      %2739 = vmatpush1.msra.mxu0 0.0
      %2740 = vmatprep.subr.mxu0 0.0
      %2741 = vmatpush1.msra.mxu0 0.0
      %2742 = vmatprep.subr.mxu0 0.0
      %2743 = vmatpush1.msra.mxu0 0.0
      %2744 = vmatprep.subr.mxu0 0.0
      %2745 = vmatpush1.msra.mxu0 0.0
      %2746 = vmatprep.subr.mxu0 0.0
      %2747 = vmatpush1.msra.mxu0 0.0
      %2748 = vmatprep.subr.mxu0 0.0
      %2749 = vmatpush1.msra.mxu0 0.0
      %2750 = vmatprep.subr.mxu0 0.0
      %2751 = vmatpush1.msra.mxu0 0.0
      %2752 = vmatprep.subr.mxu0 0.0
      %2753 = vmatpush1.msra.mxu0 0.0
      %2754 = vmatprep.subr.mxu0 0.0
      %2755 = vmatpush1.msra.mxu0 0.0
      %2756 = vmatprep.subr.mxu0 0.0
      %2757 = vmatpush1.msra.mxu0 0.0
      %2758 = vmatprep.subr.mxu0 0.0
      %2759 = vmatpush1.msra.mxu0 0.0
      %2760 = vmatprep.subr.mxu0 0.0
      %2761 = vmatpush1.msra.mxu0 0.0
      %2762 = vmatprep.subr.mxu0 0.0
      %2763 = vmatpush1.msra.mxu0 0.0
      %2764 = vmatprep.subr.mxu0 0.0
      %2765 = vmatpush1.msra.mxu0 0.0
      %2766 = vmatprep.subr.mxu0 0.0
      %2767 = vmatpush1.msra.mxu0 0.0
      %2768 = vmatprep.subr.mxu0 0.0
      %2769 = vmatpush1.msra.mxu0 0.0
      %2770 = vmatprep.subr.mxu0 0.0
      %2771 = vmatpush1.msra.mxu0 0.0
      %2772 = vmatprep.subr.mxu0 0.0
      %2773 = vmatpush1.msra.mxu0 0.0
      %2774 = vmatprep.subr.mxu0 0.0
      %2775 = vmatpush1.msra.mxu0 0.0
      %2776 = vmatprep.subr.mxu0 0.0
      %2777 = vmatpush1.msra.mxu0 0.0
      %2778 = vmatprep.subr.mxu0 0.0
      %2779 = vmatpush1.msra.mxu0 0.0
      %2780 = vmatprep.subr.mxu0 0.0
      %2781 = vmatpush1.msra.mxu0 0.0
      %2782 = vmatprep.subr.mxu0 0.0
      %2783 = vmatpush1.msra.mxu0 0.0
      %2784 = vmatprep.mubr.f32.mxu0 0.0
      %2785 = vmatmul.mubr.f32.gmra.mrb[0].mxu0 %v2718
      %v2786 = vpop.f32.mrb[0].mxu0
      %v2787 = vadd.f32 %v1133, %v2786
      %v2788 = vpop.f32.mrb[0].mxu0
      %2789 = vdwg.mxu0
      %v2790 = vsel %vm199, %v2787, 0.0
      %v2791 = vrot.slane %v2790, 4
      %v2792 = vadd.f32 %v2790, %v2791
      %v2793 = vrot.slane %v2792, 2
      %v2794 = vadd.f32 %v2792, %v2793
      %v2795 = vrot.slane %v2794, 1
      %v2796 = vadd.f32 %v2794, %v2795
      %v2798 = vsel %vm199, %v2796, 0
      %v2801 = vsel %vm224, %v188, 0
      %2803 = vmatprep.subr.mxu0 0.0
      %2804 = vmatpush1.msra.mxu0 %v2801
      %2805 = vmatprep.subr.mxu0 0.0
      %2806 = vmatpush1.msra.mxu0 0.0
      %2807 = vmatprep.subr.mxu0 0.0
      %2808 = vmatpush1.msra.mxu0 0.0
      %2809 = vmatprep.subr.mxu0 0.0
      %2810 = vmatpush1.msra.mxu0 0.0
      %2811 = vmatprep.subr.mxu0 0.0
      %2812 = vmatpush1.msra.mxu0 0.0
      %2813 = vmatprep.subr.mxu0 0.0
      %2814 = vmatpush1.msra.mxu0 0.0
      %2815 = vmatprep.subr.mxu0 0.0
      %2816 = vmatpush1.msra.mxu0 0.0
      %2817 = vmatprep.subr.mxu0 0.0
      %2818 = vmatpush1.msra.mxu0 0.0
      %2819 = vmatprep.subr.mxu0 0.0
      %2820 = vmatpush1.msra.mxu0 0.0
      %2821 = vmatprep.subr.mxu0 0.0
      %2822 = vmatpush1.msra.mxu0 0.0
      %2823 = vmatprep.subr.mxu0 0.0
      %2824 = vmatpush1.msra.mxu0 0.0
      %2825 = vmatprep.subr.mxu0 0.0
      %2826 = vmatpush1.msra.mxu0 0.0
      %2827 = vmatprep.subr.mxu0 0.0
      %2828 = vmatpush1.msra.mxu0 0.0
      %2829 = vmatprep.subr.mxu0 0.0
      %2830 = vmatpush1.msra.mxu0 0.0
      %2831 = vmatprep.subr.mxu0 0.0
      %2832 = vmatpush1.msra.mxu0 0.0
      %2833 = vmatprep.subr.mxu0 0.0
      %2834 = vmatpush1.msra.mxu0 0.0
      %2835 = vmatprep.subr.mxu0 0.0
      %2836 = vmatpush1.msra.mxu0 0.0
      %2837 = vmatprep.subr.mxu0 0.0
      %2838 = vmatpush1.msra.mxu0 0.0
      %2839 = vmatprep.subr.mxu0 0.0
      %2840 = vmatpush1.msra.mxu0 0.0
      %2841 = vmatprep.subr.mxu0 0.0
      %2842 = vmatpush1.msra.mxu0 0.0
      %2843 = vmatprep.subr.mxu0 0.0
      %2844 = vmatpush1.msra.mxu0 0.0
      %2845 = vmatprep.subr.mxu0 0.0
      %2846 = vmatpush1.msra.mxu0 0.0
      %2847 = vmatprep.subr.mxu0 0.0
      %2848 = vmatpush1.msra.mxu0 0.0
      %2849 = vmatprep.subr.mxu0 0.0
      %2850 = vmatpush1.msra.mxu0 0.0
      %2851 = vmatprep.subr.mxu0 0.0
      %2852 = vmatpush1.msra.mxu0 0.0
      %2853 = vmatprep.subr.mxu0 0.0
      %2854 = vmatpush1.msra.mxu0 0.0
      %2855 = vmatprep.subr.mxu0 0.0
      %2856 = vmatpush1.msra.mxu0 0.0
      %2857 = vmatprep.subr.mxu0 0.0
      %2858 = vmatpush1.msra.mxu0 0.0
      %2859 = vmatprep.subr.mxu0 0.0
      %2860 = vmatpush1.msra.mxu0 0.0
      %2861 = vmatprep.subr.mxu0 0.0
      %2862 = vmatpush1.msra.mxu0 0.0
      %2863 = vmatprep.subr.mxu0 0.0
      %2864 = vmatpush1.msra.mxu0 0.0
      %2865 = vmatprep.subr.mxu0 0.0
      %2866 = vmatpush1.msra.mxu0 0.0
      %2867 = vmatprep.mubr.f32.mxu0 0.0
      %2868 = vmatmul.mubr.f32.gmra.mrb[0].mxu0 %v2798
      %v2869 = vpop.f32.mrb[0].mxu0
      %v2870 = vadd.f32 %v189, %v2869
      %v2871 = vpop.f32.mrb[0].mxu0
      %2872 = vdwg.mxu0
      %v2873 = vmax.f32 %v2870, 0.0
      %v2875 = vsel %vm1134, %v2873, 0
      %2877 = vmatprep.subr.mxu0 0.0
      %2878 = vmatpush1.msra.mxu0 %v190
      %2879 = vmatprep.subr.mxu0 0.0
      %2880 = vmatpush1.msra.mxu0 %v191
      %2881 = vmatprep.subr.mxu0 0.0
      %2882 = vmatpush1.msra.mxu0 %v192
      %2883 = vmatprep.subr.mxu0 0.0
      %2884 = vmatpush1.msra.mxu0 %v193
      %2885 = vmatprep.subr.mxu0 0.0
      %2886 = vmatpush1.msra.mxu0 0.0
      %2887 = vmatprep.subr.mxu0 0.0
      %2888 = vmatpush1.msra.mxu0 0.0
      %2889 = vmatprep.subr.mxu0 0.0
      %2890 = vmatpush1.msra.mxu0 0.0
      %2891 = vmatprep.subr.mxu0 0.0
      %2892 = vmatpush1.msra.mxu0 0.0
      %2893 = vmatprep.subr.mxu0 0.0
      %2894 = vmatpush1.msra.mxu0 0.0
      %2895 = vmatprep.subr.mxu0 0.0
      %2896 = vmatpush1.msra.mxu0 0.0
      %2897 = vmatprep.subr.mxu0 0.0
      %2898 = vmatpush1.msra.mxu0 0.0
      %2899 = vmatprep.subr.mxu0 0.0
      %2900 = vmatpush1.msra.mxu0 0.0
      %2901 = vmatprep.subr.mxu0 0.0
      %2902 = vmatpush1.msra.mxu0 0.0
      %2903 = vmatprep.subr.mxu0 0.0
      %2904 = vmatpush1.msra.mxu0 0.0
      %2905 = vmatprep.subr.mxu0 0.0
      %2906 = vmatpush1.msra.mxu0 0.0
      %2907 = vmatprep.subr.mxu0 0.0
      %2908 = vmatpush1.msra.mxu0 0.0
      %2909 = vmatprep.subr.mxu0 0.0
      %2910 = vmatpush1.msra.mxu0 0.0
      %2911 = vmatprep.subr.mxu0 0.0
      %2912 = vmatpush1.msra.mxu0 0.0
      %2913 = vmatprep.subr.mxu0 0.0
      %2914 = vmatpush1.msra.mxu0 0.0
      %2915 = vmatprep.subr.mxu0 0.0
      %2916 = vmatpush1.msra.mxu0 0.0
      %2917 = vmatprep.subr.mxu0 0.0
      %2918 = vmatpush1.msra.mxu0 0.0
      %2919 = vmatprep.subr.mxu0 0.0
      %2920 = vmatpush1.msra.mxu0 0.0
      %2921 = vmatprep.subr.mxu0 0.0
      %2922 = vmatpush1.msra.mxu0 0.0
      %2923 = vmatprep.subr.mxu0 0.0
      %2924 = vmatpush1.msra.mxu0 0.0
      %2925 = vmatprep.subr.mxu0 0.0
      %2926 = vmatpush1.msra.mxu0 0.0
      %2927 = vmatprep.subr.mxu0 0.0
      %2928 = vmatpush1.msra.mxu0 0.0
      %2929 = vmatprep.subr.mxu0 0.0
      %2930 = vmatpush1.msra.mxu0 0.0
      %2931 = vmatprep.subr.mxu0 0.0
      %2932 = vmatpush1.msra.mxu0 0.0
      %2933 = vmatprep.subr.mxu0 0.0
      %2934 = vmatpush1.msra.mxu0 0.0
      %2935 = vmatprep.subr.mxu0 0.0
      %2936 = vmatpush1.msra.mxu0 0.0
      %2937 = vmatprep.subr.mxu0 0.0
      %2938 = vmatpush1.msra.mxu0 0.0
      %2939 = vmatprep.subr.mxu0 0.0
      %2940 = vmatpush1.msra.mxu0 0.0
      %2941 = vmatprep.mubr.f32.mxu0 0.0
      %2942 = vmatmul.mubr.f32.gmra.mrb[0].mxu0 %v2875
      %v2943 = vpop.f32.mrb[0].mxu0
      %v2944 = vadd.f32 %v194, %v2943
      %v2945 = vpop.f32.mrb[0].mxu0
      %2946 = vdwg.mxu0
      %v2947 = vxor.u32 %v2944, 2147483648
      %v2948 = vmul.f32 %v2947, 1.442695
      %v2949 = vpow.pop %v2948
      %v2950 = vadd.f32 %v2949, 1.0
      %v2951 = vrcp.pop %v2950
      %v2952 = vmul.f32 1.0, %v2951
      %s2954 = vtos %v2952
      %v2955 = vstv %s2954
      %2957 = vst [vmem:[%s141] sm:$0xff] %v2955
      %p2958 = scmp.lt.s32.totalorder %s13, 3
      %s2959 = scalar_select %p2958, %s13, 3
      %s2960 = smul.addr %s2959, 8
      %s2961 = scalar_lea.vmem %s2, %s2960
      // Predicated region
      $region29: #{multi_mpnn_moa_batched.1} parent=27 // pred_check
        %p2962 = pneg %p78
      $region30: #{multi_mpnn_moa_batched.1} parent=27 // pred_check_branch
        %2964 = sbr.rel (%p2962) target = $region32
      $region31: #{multi_mpnn_moa_batched.1} parent=27 // pred_region
        _
      $region32: #{multi_mpnn_moa_batched.1} parent=27 // pred_fallthru
        _
    $region28: #{multi_mpnn_moa_batched.1} parent=5 // pred_fallthru
      _
    %p2965 = scmp.le.s32.totalorder 2, %s8
    // Predicated region
    $region33: #{multi_mpnn_moa_batched.1} parent=5 // pred_check
      %p2966 = pneg %p2965
    $region34: #{multi_mpnn_moa_batched.1} parent=5 // pred_check_branch
      %2968 = sbr.rel (%p2966) target = $region36
    $region35: #{multi_mpnn_moa_batched.1} parent=5 // pred_region
      %s2969 = ssub.s32 %s8, 2
      // Predicated region
      $region37: #{multi_mpnn_moa_batched.1} parent=35 // pred_check
        %p2970 = pneg %p84
      $region38: #{multi_mpnn_moa_batched.1} parent=35 // pred_check_branch
        %2972 = sbr.rel (%p2970) target = $region40
      $region39: #{multi_mpnn_moa_batched.1} parent=35 // pred_region
        %p2973 = scmp.lt.s32.totalorder %s14, 3
        %s2974 = scalar_select %p2973, %s14, 3
        %s2975 = smul.addr %s2974, 8
        %s2976 = scalar_lea.vmem %s2, %s2975
      $region40: #{multi_mpnn_moa_batched.1} parent=35 // pred_fallthru
        _
    $region36: #{multi_mpnn_moa_batched.1} parent=5 // pred_fallthru
      _
  $region6: #{multi_mpnn_moa_batched.1} parent=0 // loop_footer
    %s12 = sadd.s32 1, %s8
  $region7: #{multi_mpnn_moa_batched.1} parent=0 // loop_footer_branch
    %7 = sbr.rel target = $region3
  $region8: #{multi_mpnn_moa_batched.1} parent=0 // loop_exit
    _

</llo_original>
